<compile_context>
chip_gen: v6e
topology: v6e:2x2x1
jax: 0.10.0
libtpu: 0.0.40
codegen_flags: <defaults>
</compile_context>

<pallas_src>
import numpy as np

import jax
import jax.numpy as jnp
from jax import lax
from jax.experimental import pallas as pl
from jax.experimental.pallas import tpu as pltpu

LEAKY_SLOPE = 0.1
BN_EPS = 1e-5

VMEM_SPEC = pl.BlockSpec(memory_space=pltpu.MemorySpace.VMEM)


# ----------------------------------------------------------------------------
# Synthetic "parsed cfg" (what parse_cfg would return)
# ----------------------------------------------------------------------------
BLOCKS = [
    {"type": "net", "channels": 4, "width": 16, "height": 16},
    {"type": "convolutional", "batch_normalize": 1, "filters": 8, "size": 3,
     "stride": 1, "pad": 1, "activation": "leaky"},                       # ind 0
    {"type": "convolutional", "batch_normalize": 1, "filters": 16, "size": 3,
     "stride": 2, "pad": 1, "activation": "leaky"},                       # ind 1
    {"type": "convolutional", "batch_normalize": 1, "filters": 16, "size": 1,
     "stride": 1, "pad": 1, "activation": "leaky"},                       # ind 2
    {"type": "shortcut", "from": "-2", "activation": "leaky"},            # ind 3
    {"type": "convolutional", "batch_normalize": 1, "filters": 8, "size": 1,
     "stride": 1, "pad": 1, "activation": "leaky"},                       # ind 4
    {"type": "upsample", "stride": 2},                                    # ind 5
    {"type": "route", "layers": "-1,-6"},                                 # ind 6
    {"type": "convolutional", "batch_normalize": 0, "filters": 8, "size": 3,
     "stride": 1, "pad": 1, "activation": "linear"},                      # ind 7
]


def _conv_pad(block):
    k = block["size"]
    return (k - 1) // 2 if block["pad"] else 0


def _route_layers(block, ind):
    layers = [int(i) for i in block["layers"].split(",")]
    return [l if l > 0 else l + ind for l in layers]


# ----------------------------------------------------------------------------
# Parameters (deterministic init mirroring create_network shapes)
# ----------------------------------------------------------------------------
def init_params(key):
    params = {}
    out_filters = {}
    prev_filters = BLOCKS[0]["channels"]
    ind = -2
    for block in BLOCKS:
        ind += 1
        t = block["type"]
        if t == "net":
            continue
        if t == "convolutional":
            cout, k = block["filters"], block["size"]
            key, kw_, kb_, kg_, km_, kv_ = jax.random.split(key, 6)
            w = 0.1 * jax.random.normal(kw_, (cout, prev_filters, k, k),
                                        jnp.float32)
            if block["batch_normalize"]:
                gamma = jax.random.uniform(kg_, (cout,), jnp.float32, 0.5, 1.5)
                beta = 0.1 * jax.random.normal(kb_, (cout,), jnp.float32)
                mean = 0.1 * jax.random.normal(km_, (cout,), jnp.float32)
                var = jax.random.uniform(kv_, (cout,), jnp.float32, 0.5, 1.5)
                scale = gamma / jnp.sqrt(var + BN_EPS)       # fused eval-mode BN
                bias = beta - mean * scale
            else:
                scale = jnp.ones((cout,), jnp.float32)
                bias = 0.1 * jax.random.normal(kb_, (cout,), jnp.float32)
            params[ind] = {"w": w, "scale": scale, "bias": bias}
            prev_filters = cout
        elif t == "route":
            # FIX: channel bookkeeping after a route (previous version forgot
            # this, producing Cin=8 weights for a 16-channel input).
            prev_filters = sum(out_filters[l] for l in _route_layers(block, ind))
        elif t == "shortcut":
            prev_filters = out_filters[ind - 1]
        elif t == "upsample":
            pass
        out_filters[ind] = prev_filters
    return params


# ----------------------------------------------------------------------------
# Static plan derived from BLOCKS (shape inference + layout decisions)
# ----------------------------------------------------------------------------
def _make_plan():
    """Returns (shapes, ops, pad_buffers, final_ind).

    shapes[ind] = (H, W, C) of outputs[ind]  (ind == -1 is the network input).
    ops          = op descriptors executed (unrolled) inside the fused kernel.
    pad_buffers  = {(source_ind, pad): (Hp, Wp*C)} zero-padded VMEM scratch.
    """
    shapes = {}
    route_parts = {}
    ops = []
    pad_buffers = {}
    ind = -2
    for block in BLOCKS:
        ind += 1
        t = block["type"]
        if t == "net":
            shapes[ind] = (block["height"], block["width"], block["channels"])
            continue
        if t == "convolutional":
            k, s, p = block["size"], block["stride"], _conv_pad(block)
            src = ind - 1
            parts_src = route_parts.get(src, [src])
            H, W, _ = shapes[parts_src[0]]
            Ho = (H + 2 * p - k) // s + 1
            Wo = (W + 2 * p - k) // s + 1
            assert (k - 1) + s * Ho <= H + 2 * p    # exact strided row coverage
            parts, c_off = [], 0
            for sp in parts_src:
                Hs, Ws, Cs = shapes[sp]
                assert (Hs, Ws) == (H, W)
                if p > 0:
                    pad_buffers.setdefault((sp, p),
                                           (Hs + 2 * p, (Ws + 2 * p) * Cs))
                parts.append(dict(src=sp, c_off=c_off, c_in=Cs, padded=p > 0))
                c_off += Cs
            ops.append(dict(kind="conv", ind=ind, k=k, stride=s, pad=p, W=W,
                            Ho=Ho, Wo=Wo, cout=block["filters"], parts=parts,
                            activation=block["activation"]))
            shapes[ind] = (Ho, Wo, block["filters"])
        elif t == "upsample":
            s = block["stride"]
            H, W, C = shapes[ind - 1]
            ops.append(dict(kind="upsample", ind=ind, stride=s, H=H, W=W, C=C))
            shapes[ind] = (H * s, W * s, C)
        elif t == "route":
            parts = []
            for l in _route_layers(block, ind):
                parts.extend(route_parts.get(l, [l]))
            route_parts[ind] = parts
            H, W, _ = shapes[parts[0]]
            shapes[ind] = (H, W, sum(shapes[q][2] for q in parts))
            ops.append(dict(kind="route", ind=ind, parts=parts))
        elif t == "shortcut":
            fl = int(block["from"])
            fl = fl if fl > 0 else fl + ind
            ops.append(dict(kind="shortcut", ind=ind, a=fl, b=ind - 1,
                            activation=block["activation"]))
            shapes[ind] = shapes[ind - 1]
        else:
            raise ValueError("unknown block type %s" % t)
    assert BLOCKS[-1]["type"] != "route"
    return shapes, ops, pad_buffers, ind


# ----------------------------------------------------------------------------
# Host-side (one-time) weight packing
# ----------------------------------------------------------------------------
def _band_matrices(w_oikk, scale, *, w_in, pad, stride, c_lo, c_hi):
    """Per-kh banded conv matrices with BN scale folded in.

    m[kh, wi*Cin + ci, wo*Cout + co] =
        w[co, c_lo+ci, kh, kw] * scale[co]   if wi == stride*wo + kw, else 0
    so that  out_row(n, ho) = sum_kh  padded_in_row(n, stride*ho + kh) @ m[kh].
    The kw taps, the W-direction stride and the W zero-padding are all baked
    into the band structure.
    """
    w = (np.asarray(w_oikk, np.float32) *
         np.asarray(scale, np.float32)[:, None, None, None])
    w = np.transpose(w[:, c_lo:c_hi], (2, 3, 1, 0))   # (kh, kw, cin, cout)
    k, _, cin, cout = w.shape
    wp = w_in + 2 * pad
    wo = (w_in + 2 * pad - k) // stride + 1
    m = np.zeros((k, wp * cin, wo * cout), np.float32)
    for kh in range(k):
        for kw in range(k):
            for o in range(wo):
                wi = stride * o + kw
                m[kh, wi * cin:(wi + 1) * cin,
                  o * cout:(o + 1) * cout] = w[kh, kw]
    return m


def _upsample_matrix(w, c, s):
    """(W*C, s*W*C) 0/1 matrix: nearest-neighbour x`s` upsample along W on the
    flattened lane-dense (W*C) axis."""
    u = np.zeros((w * c, s * w * c), np.float32)
    eye = np.eye(c, dtype=np.float32)
    for wi in range(w):
        for d in range(s):
            u[wi * c:(wi + 1) * c,
              (s * wi + d) * c:(s * wi + d + 1) * c] = eye
    return u


def _prepare_weights(params, ops):
    """Packs all weights for the fused kernel (runs once, at wrap time).
    Mutates the op descriptors with argument indices and returns the flat list
    of arrays passed to pallas_call."""
    arrays = []
    for op in ops:
        if op["kind"] == "conv":
            pr = params[op["ind"]]
            for part in op["parts"]:
                m = _band_matrices(pr["w"], pr["scale"], w_in=op["W"],
                                   pad=op["pad"], stride=op["stride"],
                                   c_lo=part["c_off"],
                                   c_hi=part["c_off"] + part["c_in"])
                part["arg"] = len(arrays)
                arrays.append(jnp.asarray(m))
            bias = np.tile(np.asarray(pr["bias"], np.float32), op["Wo"])
            op["bias_arg"] = len(arrays)
            arrays.append(jnp.asarray(bias.reshape(1, -1)))
        elif op["kind"] == "upsample":
            op["u_arg"] = len(arrays)
            arrays.append(jnp.asarray(
                _upsample_matrix(op["W"], op["C"], op["stride"])))
    return arrays


# ----------------------------------------------------------------------------
# The fused Pallas kernel (whole network, single invocation, all in VMEM)
# ----------------------------------------------------------------------------
def _make_fused_kernel(shapes, ops, pad_index, n_weights, final_ind):

    def activate(v, act):
        if act == "leaky":
            return jnp.where(v > 0, v, LEAKY_SLOPE * v)
        if act == "relu":
            return jnp.maximum(v, 0.0)
        return v

    def kernel(*refs):
        x_ref = refs[0]
        w_refs = refs[1:1 + n_weights]
        o_ref = refs[1 + n_weights]
        pad_refs = refs[2 + n_weights:]

        N = x_ref.shape[0]

        # Every inter-layer activation lives in VMEM with a lane-dense
        # (N, H, W*C) layout: H on sublanes, flattened (W, C) on lanes.
        vals = {-1: x_ref[...]}

        def publish(ind):
            # Copy outputs[ind] into every zero-padded scratch view of it
            # (consumed later by convs with pad > 0).
            H, W, C = shapes[ind]
            for (src, p), slot in pad_index.items():
                if src != ind:
                    continue
                buf = pad_refs[slot]
                buf[...] = jnp.zeros(buf.shape, jnp.float32)
                buf[:, p:p + H, p * C:(p + W) * C] = vals[ind]

        publish(-1)

        for op in ops:
            kind, ind = op["kind"], op["ind"]
            if kind == "conv":
                k, s, p = op["k"], op["stride"], op["pad"]
                Ho, Wo, cout = op["Ho"], op["Wo"], op["cout"]
                acc = jnp.zeros((N * Ho, Wo * cout), jnp.float32)
                # split-K over route parts: the channel concat is never built.
                for part in op["parts"]:
                    if part["padded"]:
                        src = pad_refs[pad_index[(part["src"], p)]][...]
                    else:
                        src = vals[part["src"]]
                    wband = w_refs[part["arg"]][...]  # (k, Wp*Cin, Wo*Cout)
                    for kh in range(k):
                        rows = src[:, kh:kh + s * Ho, :]
                        if s > 1:
                            rows = rows.reshape(N, Ho, s,
                                                rows.shape[-1])[:, :, 0, :]
                        patch = rows.reshape(N * Ho, rows.shape[-1])
                        acc = acc + jnp.dot(patch, wband[kh],
                                            preferred_element_type=jnp.float32)
                y = activate(acc + w_refs[op["bias_arg"]][...],
                             op["activation"])
                vals[ind] = y.reshape(N, Ho, Wo * cout)
                publish(ind)
            elif kind == "upsample":
                s, H, W, C = op["stride"], op["H"], op["W"], op["C"]
                z = vals[ind - 1].reshape(N * H, W * C)
                zw = jnp.dot(z, w_refs[op["u_arg"]][...],
                             preferred_element_type=jnp.float32)  # W direction
                zw = jnp.broadcast_to(zw.reshape(N, H, 1, s * W * C),
                                      (N, H, s, s * W * C))        # H direction
                vals[ind] = zw.reshape(N, H * s, s * W * C)
                publish(ind)
            elif kind == "route":
                # Handled symbolically: consuming convs read the source parts
                # directly (split-K), so nothing is materialised here.
                vals[ind] = None
            elif kind == "shortcut":
                y = activate(vals[op["a"]] + vals[op["b"]], op["activation"])
                vals[ind] = y
                publish(ind)

        o_ref[...] = vals[final_ind].reshape(o_ref.shape)

    return kernel


# ----------------------------------------------------------------------------
# Public wrapper: NCHW in / NCHW out, exactly like the PyTorch module
# ----------------------------------------------------------------------------
def make_darknet_forward(params):
    shapes, ops, pad_buffers, final_ind = _make_plan()
    weights = _prepare_weights(params, ops)      # one-time weight packing
    pad_keys = list(pad_buffers.keys())
    pad_index = {kk: i for i, kk in enumerate(pad_keys)}
    kernel = _make_fused_kernel(shapes, ops, pad_index, len(weights), final_ind)
    H0, W0, C0 = shapes[-1]
    Hf, Wf, Cf = shapes[final_ind]

    @jax.jit
    def forward(x_nchw, weight_list):
        N = x_nchw.shape[0]
        x = jnp.transpose(x_nchw, (0, 2, 3, 1)).astype(jnp.float32)  # NCHW->NHWC
        x = x.reshape(N, H0, W0 * C0)            # lane-dense (N, H, W*C) rows
        out2d = pl.pallas_call(
            kernel,
            out_shape=jax.ShapeDtypeStruct((N * Hf, Wf * Cf), jnp.float32),
            in_specs=[VMEM_SPEC] * (1 + len(weight_list)),
            out_specs=VMEM_SPEC,
            scratch_shapes=[pltpu.VMEM((N,) + pad_buffers[kk], jnp.float32)
                            for kk in pad_keys],
        )(x, *weight_list)
        out = out2d.reshape(N, Hf, Wf, Cf)       # NHWC
        return jnp.transpose(out, (0, 3, 1, 2))  # -> NCHW

    return lambda x_nchw: forward(x_nchw, tuple(weights))


# ----------------------------------------------------------------------------
# Pure-JAX (XLA) reference with identical semantics, for verification
# ----------------------------------------------------------------------------
def darknet_reference(params, x_nchw):
    x = jnp.transpose(x_nchw, (0, 2, 3, 1)).astype(jnp.float32)
    outputs = {}
    ind = -2
    for block in BLOCKS:
        ind += 1
        t = block["type"]
        if t == "net":
            continue
        if t == "convolutional":
            p = params[ind]
            pad = _conv_pad(block)
            w_hwio = jnp.transpose(p["w"], (2, 3, 1, 0))
            y = lax.conv_general_dilated(
                x, w_hwio,
                window_strides=(block["stride"], block["stride"]),
                padding=[(pad, pad), (pad, pad)],
                dimension_numbers=("NHWC", "HWIO", "NHWC"))
            y = y * p["scale"].reshape(1, 1, 1, -1) + p["bias"].reshape(1, 1, 1, -1)
            if block["activation"] == "leaky":
                y = jnp.where(y > 0, y, LEAKY_SLOPE * y)
            x = y
            outputs[ind] = x
        elif t == "upsample":
            s = block["stride"]
            x = jnp.repeat(jnp.repeat(x, s, axis=1), s, axis=2)
            outputs[ind] = x
        elif t == "route":
            layers = _route_layers(block, ind)
            x = outputs[layers[0]] if len(layers) == 1 else jnp.concatenate(
                [outputs[l] for l in layers], axis=-1)
            outputs[ind] = x
        elif t == "shortcut":
            fl = int(block["from"])
            fl = fl if fl > 0 else fl + ind
            y = outputs[fl] + outputs[ind - 1]
            if block["activation"] == "leaky":
                y = jnp.where(y > 0, y, LEAKY_SLOPE * y)
            elif block["activation"] == "relu":
                y = jnp.maximum(y, 0.0)
            x = y
            outputs[ind] = x
    return jnp.transpose(x, (0, 3, 1, 2))


# ----------------------------------------------------------------------------
if __name__ == "__main__":
    key = jax.random.PRNGKey(0)
    key, kx = jax.random.split(key)
    x = jax.random.normal(kx, (2, 4, 16, 16), jnp.float32)   # NCHW like PyTorch

    params = init_params(key)

    darknet_forward = make_darknet_forward(params)
    out = jax.block_until_ready(darknet_forward(x))

    ref = jax.block_until_ready(darknet_reference(params, x))
    assert out.shape == ref.shape == (2, 8, 16, 16), (out.shape, ref.shape)
    max_err = float(jnp.max(jnp.abs(out - ref)))
    assert jnp.allclose(out, ref, rtol=3e-2, atol=3e-2), max_err

    print("KERNEL_OK")
</pallas_src>

<mosaic_0001>
module attributes {stable_mosaic.version = 11 : i64} {
  func.func @kernel(%arg0: memref<2x16x64xf32, #tpu.memory_space<vmem>>, %arg1: memref<3x72x128xf32, #tpu.memory_space<vmem>>, %arg2: memref<1x128xf32, #tpu.memory_space<vmem>>, %arg3: memref<3x144x128xf32, #tpu.memory_space<vmem>>, %arg4: memref<1x128xf32, #tpu.memory_space<vmem>>, %arg5: memref<1x128x128xf32, #tpu.memory_space<vmem>>, %arg6: memref<1x128xf32, #tpu.memory_space<vmem>>, %arg7: memref<1x128x64xf32, #tpu.memory_space<vmem>>, %arg8: memref<1x64xf32, #tpu.memory_space<vmem>>, %arg9: memref<64x128xf32, #tpu.memory_space<vmem>>, %arg10: memref<3x144x128xf32, #tpu.memory_space<vmem>>, %arg11: memref<3x144x128xf32, #tpu.memory_space<vmem>>, %arg12: memref<1x128xf32, #tpu.memory_space<vmem>>, %arg13: memref<32x128xf32, #tpu.memory_space<vmem>>, %arg14: memref<2x18x72xf32, #tpu.memory_space<vmem>>, %arg15: memref<2x18x144xf32, #tpu.memory_space<vmem>>, %arg16: memref<2x18x144xf32, #tpu.memory_space<vmem>>) attributes {dimension_semantics = [], scalar_prefetch = 0 : i64, scratch_operands = 3 : i64, tpu.core_type = #tpu.core_type<tc>} {
    %c0 = arith.constant 0 : index
    %c0_0 = arith.constant 0 : index
    %c0_1 = arith.constant 0 : index
    %0 = vector.load %arg0[%c0, %c0_0, %c0_1] : memref<2x16x64xf32, #tpu.memory_space<vmem>>, vector<2x16x64xf32>
    %cst = arith.constant 0.000000e+00 : f32
    %1 = vector.broadcast %cst : f32 to vector<2x18x72xf32>
    %c0_2 = arith.constant 0 : index
    %c0_3 = arith.constant 0 : index
    %c0_4 = arith.constant 0 : index
    %2 = vector.load %arg14[%c0_2, %c0_3, %c0_4] : memref<2x18x72xf32, #tpu.memory_space<vmem>>, vector<2x18x72xf32>
    tpu.vector_store %arg14[%c0_2, %c0_3, %c0_4], %1 {strides = array<i32>} : memref<2x18x72xf32, #tpu.memory_space<vmem>>, vector<2x18x72xf32>,
    %c0_5 = arith.constant 0 : index
    %c1 = arith.constant 1 : index
    %c4 = arith.constant 4 : index
    %3 = vector.load %arg14[%c0_5, %c1, %c4] : memref<2x18x72xf32, #tpu.memory_space<vmem>>, vector<2x16x64xf32>
    tpu.vector_store %arg14[%c0_5, %c1, %c4], %0 {strides = array<i32>} : memref<2x18x72xf32, #tpu.memory_space<vmem>>, vector<2x16x64xf32>,
    %cst_6 = arith.constant 0.000000e+00 : f32
    %4 = vector.broadcast %cst_6 : f32 to vector<32x128xf32>
    %c0_7 = arith.constant 0 : index
    %c0_8 = arith.constant 0 : index
    %c0_9 = arith.constant 0 : index
    %5 = vector.load %arg14[%c0_7, %c0_8, %c0_9] : memref<2x18x72xf32, #tpu.memory_space<vmem>>, vector<2x18x72xf32>
    %c0_10 = arith.constant 0 : index
    %c0_11 = arith.constant 0 : index
    %c0_12 = arith.constant 0 : index
    %6 = vector.load %arg1[%c0_10, %c0_11, %c0_12] : memref<3x72x128xf32, #tpu.memory_space<vmem>>, vector<3x72x128xf32>
    %7 = vector.extract_strided_slice %5 {offsets = [0, 0, 0], sizes = [2, 16, 72], strides = [1, 1, 1]} : vector<2x18x72xf32> to vector<2x16x72xf32>
    %8 = vector.shape_cast %7 : vector<2x16x72xf32> to vector<32x72xf32>
    %9 = vector.extract_strided_slice %6 {offsets = [0, 0, 0], sizes = [1, 72, 128], strides = [1, 1, 1]} : vector<3x72x128xf32> to vector<1x72x128xf32>
    %10 = vector.shape_cast %9 : vector<1x72x128xf32> to vector<72x128xf32>
    %cst_13 = arith.constant dense<0.000000e+00> : vector<32x128xf32>
    %11 = tpu.matmul %8, %10, %cst_13 {dimension_numbers = #tpu.dot_dimension_numbers<[1], [0], [0], [1], [0, 0, 1, 1], [], []>} : vector<32x72xf32>, vector<72x128xf32>, vector<32x128xf32> -> vector<32x128xf32>
    %12 = arith.addf %4, %11 : vector<32x128xf32>
    %13 = vector.extract_strided_slice %5 {offsets = [0, 1, 0], sizes = [2, 16, 72], strides = [1, 1, 1]} : vector<2x18x72xf32> to vector<2x16x72xf32>
    %14 = vector.shape_cast %13 : vector<2x16x72xf32> to vector<32x72xf32>
    %15 = vector.extract_strided_slice %6 {offsets = [1, 0, 0], sizes = [1, 72, 128], strides = [1, 1, 1]} : vector<3x72x128xf32> to vector<1x72x128xf32>
    %16 = vector.shape_cast %15 : vector<1x72x128xf32> to vector<72x128xf32>
    %cst_14 = arith.constant dense<0.000000e+00> : vector<32x128xf32>
    %17 = tpu.matmul %14, %16, %cst_14 {dimension_numbers = #tpu.dot_dimension_numbers<[1], [0], [0], [1], [0, 0, 1, 1], [], []>} : vector<32x72xf32>, vector<72x128xf32>, vector<32x128xf32> -> vector<32x128xf32>
    %18 = arith.addf %12, %17 : vector<32x128xf32>
    %19 = vector.extract_strided_slice %5 {offsets = [0, 2, 0], sizes = [2, 16, 72], strides = [1, 1, 1]} : vector<2x18x72xf32> to vector<2x16x72xf32>
    %20 = vector.shape_cast %19 : vector<2x16x72xf32> to vector<32x72xf32>
    %21 = vector.extract_strided_slice %6 {offsets = [2, 0, 0], sizes = [1, 72, 128], strides = [1, 1, 1]} : vector<3x72x128xf32> to vector<1x72x128xf32>
    %22 = vector.shape_cast %21 : vector<1x72x128xf32> to vector<72x128xf32>
    %cst_15 = arith.constant dense<0.000000e+00> : vector<32x128xf32>
    %23 = tpu.matmul %20, %22, %cst_15 {dimension_numbers = #tpu.dot_dimension_numbers<[1], [0], [0], [1], [0, 0, 1, 1], [], []>} : vector<32x72xf32>, vector<72x128xf32>, vector<32x128xf32> -> vector<32x128xf32>
    %24 = arith.addf %18, %23 : vector<32x128xf32>
    %c0_16 = arith.constant 0 : index
    %c0_17 = arith.constant 0 : index
    %25 = vector.load %arg2[%c0_16, %c0_17] : memref<1x128xf32, #tpu.memory_space<vmem>>, vector<1x128xf32>
    %26 = vector.broadcast %25 : vector<1x128xf32> to vector<32x128xf32>
    %27 = arith.addf %24, %26 : vector<32x128xf32>
    %cst_18 = arith.constant 0.000000e+00 : f32
    %28 = vector.broadcast %cst_18 : f32 to vector<32x128xf32>
    %29 = arith.cmpf ogt, %27, %28 : vector<32x128xf32>
    %cst_19 = arith.constant 1.000000e-01 : f32
    %30 = vector.broadcast %cst_19 : f32 to vector<32x128xf32>
    %31 = arith.mulf %30, %27 : vector<32x128xf32>
    %32 = arith.select %29, %27, %31 : vector<32x128xi1>, vector<32x128xf32>
    %33 = vector.shape_cast %32 : vector<32x128xf32> to vector<2x16x128xf32>
    %cst_20 = arith.constant 0.000000e+00 : f32
    %34 = vector.broadcast %cst_20 : f32 to vector<2x18x144xf32>
    %c0_21 = arith.constant 0 : index
    %c0_22 = arith.constant 0 : index
    %c0_23 = arith.constant 0 : index
    %35 = vector.load %arg15[%c0_21, %c0_22, %c0_23] : memref<2x18x144xf32, #tpu.memory_space<vmem>>, vector<2x18x144xf32>
    tpu.vector_store %arg15[%c0_21, %c0_22, %c0_23], %34 {strides = array<i32>} : memref<2x18x144xf32, #tpu.memory_space<vmem>>, vector<2x18x144xf32>,
    %c0_24 = arith.constant 0 : index
    %c1_25 = arith.constant 1 : index
    %c8 = arith.constant 8 : index
    %36 = vector.load %arg15[%c0_24, %c1_25, %c8] : memref<2x18x144xf32, #tpu.memory_space<vmem>>, vector<2x16x128xf32>
    tpu.vector_store %arg15[%c0_24, %c1_25, %c8], %33 {strides = array<i32>} : memref<2x18x144xf32, #tpu.memory_space<vmem>>, vector<2x16x128xf32>,
    %cst_26 = arith.constant 0.000000e+00 : f32
    %37 = vector.broadcast %cst_26 : f32 to vector<16x128xf32>
    %c0_27 = arith.constant 0 : index
    %c0_28 = arith.constant 0 : index
    %c0_29 = arith.constant 0 : index
    %38 = vector.load %arg15[%c0_27, %c0_28, %c0_29] : memref<2x18x144xf32, #tpu.memory_space<vmem>>, vector<2x18x144xf32>
    %c0_30 = arith.constant 0 : index
    %c0_31 = arith.constant 0 : index
    %c0_32 = arith.constant 0 : index
    %39 = vector.load %arg3[%c0_30, %c0_31, %c0_32] : memref<3x144x128xf32, #tpu.memory_space<vmem>>, vector<3x144x128xf32>
    %40 = vector.extract_strided_slice %38 {offsets = [0, 0, 0], sizes = [2, 16, 144], strides = [1, 1, 1]} : vector<2x18x144xf32> to vector<2x16x144xf32>
    %41 = vector.shape_cast %40 : vector<2x16x144xf32> to vector<2x8x2x144xf32>
    %42 = vector.extract_strided_slice %41 {offsets = [0, 0, 0, 0], sizes = [2, 8, 1, 144], strides = [1, 1, 1, 1]} : vector<2x8x2x144xf32> to vector<2x8x1x144xf32>
    %43 = vector.shape_cast %42 : vector<2x8x1x144xf32> to vector<2x8x144xf32>
    %44 = vector.shape_cast %43 : vector<2x8x144xf32> to vector<16x144xf32>
    %45 = vector.extract_strided_slice %39 {offsets = [0, 0, 0], sizes = [1, 144, 128], strides = [1, 1, 1]} : vector<3x144x128xf32> to vector<1x144x128xf32>
    %46 = vector.shape_cast %45 : vector<1x144x128xf32> to vector<144x128xf32>
    %cst_33 = arith.constant dense<0.000000e+00> : vector<16x128xf32>
    %47 = tpu.matmul %44, %46, %cst_33 {dimension_numbers = #tpu.dot_dimension_numbers<[1], [0], [0], [1], [0, 0, 1, 1], [], []>} : vector<16x144xf32>, vector<144x128xf32>, vector<16x128xf32> -> vector<16x128xf32>
    %48 = arith.addf %37, %47 : vector<16x128xf32>
    %49 = vector.extract_strided_slice %38 {offsets = [0, 1, 0], sizes = [2, 16, 144], strides = [1, 1, 1]} : vector<2x18x144xf32> to vector<2x16x144xf32>
    %50 = vector.shape_cast %49 : vector<2x16x144xf32> to vector<2x8x2x144xf32>
    %51 = vector.extract_strided_slice %50 {offsets = [0, 0, 0, 0], sizes = [2, 8, 1, 144], strides = [1, 1, 1, 1]} : vector<2x8x2x144xf32> to vector<2x8x1x144xf32>
    %52 = vector.shape_cast %51 : vector<2x8x1x144xf32> to vector<2x8x144xf32>
    %53 = vector.shape_cast %52 : vector<2x8x144xf32> to vector<16x144xf32>
    %54 = vector.extract_strided_slice %39 {offsets = [1, 0, 0], sizes = [1, 144, 128], strides = [1, 1, 1]} : vector<3x144x128xf32> to vector<1x144x128xf32>
    %55 = vector.shape_cast %54 : vector<1x144x128xf32> to vector<144x128xf32>
    %cst_34 = arith.constant dense<0.000000e+00> : vector<16x128xf32>
    %56 = tpu.matmul %53, %55, %cst_34 {dimension_numbers = #tpu.dot_dimension_numbers<[1], [0], [0], [1], [0, 0, 1, 1], [], []>} : vector<16x144xf32>, vector<144x128xf32>, vector<16x128xf32> -> vector<16x128xf32>
    %57 = arith.addf %48, %56 : vector<16x128xf32>
    %58 = vector.extract_strided_slice %38 {offsets = [0, 2, 0], sizes = [2, 16, 144], strides = [1, 1, 1]} : vector<2x18x144xf32> to vector<2x16x144xf32>
    %59 = vector.shape_cast %58 : vector<2x16x144xf32> to vector<2x8x2x144xf32>
    %60 = vector.extract_strided_slice %59 {offsets = [0, 0, 0, 0], sizes = [2, 8, 1, 144], strides = [1, 1, 1, 1]} : vector<2x8x2x144xf32> to vector<2x8x1x144xf32>
    %61 = vector.shape_cast %60 : vector<2x8x1x144xf32> to vector<2x8x144xf32>
    %62 = vector.shape_cast %61 : vector<2x8x144xf32> to vector<16x144xf32>
    %63 = vector.extract_strided_slice %39 {offsets = [2, 0, 0], sizes = [1, 144, 128], strides = [1, 1, 1]} : vector<3x144x128xf32> to vector<1x144x128xf32>
    %64 = vector.shape_cast %63 : vector<1x144x128xf32> to vector<144x128xf32>
    %cst_35 = arith.constant dense<0.000000e+00> : vector<16x128xf32>
    %65 = tpu.matmul %62, %64, %cst_35 {dimension_numbers = #tpu.dot_dimension_numbers<[1], [0], [0], [1], [0, 0, 1, 1], [], []>} : vector<16x144xf32>, vector<144x128xf32>, vector<16x128xf32> -> vector<16x128xf32>
    %66 = arith.addf %57, %65 : vector<16x128xf32>
    %c0_36 = arith.constant 0 : index
    %c0_37 = arith.constant 0 : index
    %67 = vector.load %arg4[%c0_36, %c0_37] : memref<1x128xf32, #tpu.memory_space<vmem>>, vector<1x128xf32>
    %68 = vector.broadcast %67 : vector<1x128xf32> to vector<16x128xf32>
    %69 = arith.addf %66, %68 : vector<16x128xf32>
    %cst_38 = arith.constant 0.000000e+00 : f32
    %70 = vector.broadcast %cst_38 : f32 to vector<16x128xf32>
    %71 = arith.cmpf ogt, %69, %70 : vector<16x128xf32>
    %cst_39 = arith.constant 1.000000e-01 : f32
    %72 = vector.broadcast %cst_39 : f32 to vector<16x128xf32>
    %73 = arith.mulf %72, %69 : vector<16x128xf32>
    %74 = arith.select %71, %69, %73 : vector<16x128xi1>, vector<16x128xf32>
    %75 = vector.shape_cast %74 : vector<16x128xf32> to vector<2x8x128xf32>
    %cst_40 = arith.constant 0.000000e+00 : f32
    %76 = vector.broadcast %cst_40 : f32 to vector<16x128xf32>
    %c0_41 = arith.constant 0 : index
    %c0_42 = arith.constant 0 : index
    %c0_43 = arith.constant 0 : index
    %77 = vector.load %arg5[%c0_41, %c0_42, %c0_43] : memref<1x128x128xf32, #tpu.memory_space<vmem>>, vector<1x128x128xf32>
    %78 = vector.shape_cast %75 : vector<2x8x128xf32> to vector<16x128xf32>
    %79 = vector.shape_cast %77 : vector<1x128x128xf32> to vector<128x128xf32>
    %cst_44 = arith.constant dense<0.000000e+00> : vector<16x128xf32>
    %80 = tpu.matmul %78, %79, %cst_44 {dimension_numbers = #tpu.dot_dimension_numbers<[1], [0], [0], [1], [0, 0, 1, 1], [], []>} : vector<16x128xf32>, vector<128x128xf32>, vector<16x128xf32> -> vector<16x128xf32>
    %81 = arith.addf %76, %80 : vector<16x128xf32>
    %c0_45 = arith.constant 0 : index
    %c0_46 = arith.constant 0 : index
    %82 = vector.load %arg6[%c0_45, %c0_46] : memref<1x128xf32, #tpu.memory_space<vmem>>, vector<1x128xf32>
    %83 = vector.broadcast %82 : vector<1x128xf32> to vector<16x128xf32>
    %84 = arith.addf %81, %83 : vector<16x128xf32>
    %cst_47 = arith.constant 0.000000e+00 : f32
    %85 = vector.broadcast %cst_47 : f32 to vector<16x128xf32>
    %86 = arith.cmpf ogt, %84, %85 : vector<16x128xf32>
    %cst_48 = arith.constant 1.000000e-01 : f32
    %87 = vector.broadcast %cst_48 : f32 to vector<16x128xf32>
    %88 = arith.mulf %87, %84 : vector<16x128xf32>
    %89 = arith.select %86, %84, %88 : vector<16x128xi1>, vector<16x128xf32>
    %90 = vector.shape_cast %89 : vector<16x128xf32> to vector<2x8x128xf32>
    %91 = arith.addf %75, %90 : vector<2x8x128xf32>
    %cst_49 = arith.constant 0.000000e+00 : f32
    %92 = vector.broadcast %cst_49 : f32 to vector<2x8x128xf32>
    %93 = arith.cmpf ogt, %91, %92 : vector<2x8x128xf32>
    %cst_50 = arith.constant 1.000000e-01 : f32
    %94 = vector.broadcast %cst_50 : f32 to vector<2x8x128xf32>
    %95 = arith.mulf %94, %91 : vector<2x8x128xf32>
    %96 = arith.select %93, %91, %95 : vector<2x8x128xi1>, vector<2x8x128xf32>
    %cst_51 = arith.constant 0.000000e+00 : f32
    %97 = vector.broadcast %cst_51 : f32 to vector<16x64xf32>
    %c0_52 = arith.constant 0 : index
    %c0_53 = arith.constant 0 : index
    %c0_54 = arith.constant 0 : index
    %98 = vector.load %arg7[%c0_52, %c0_53, %c0_54] : memref<1x128x64xf32, #tpu.memory_space<vmem>>, vector<1x128x64xf32>
    %99 = vector.shape_cast %96 : vector<2x8x128xf32> to vector<16x128xf32>
    %100 = vector.shape_cast %98 : vector<1x128x64xf32> to vector<128x64xf32>
    %cst_55 = arith.constant dense<0.000000e+00> : vector<16x64xf32>
    %101 = tpu.matmul %99, %100, %cst_55 {dimension_numbers = #tpu.dot_dimension_numbers<[1], [0], [0], [1], [0, 0, 1, 1], [], []>} : vector<16x128xf32>, vector<128x64xf32>, vector<16x64xf32> -> vector<16x64xf32>
    %102 = arith.addf %97, %101 : vector<16x64xf32>
    %c0_56 = arith.constant 0 : index
    %c0_57 = arith.constant 0 : index
    %103 = vector.load %arg8[%c0_56, %c0_57] : memref<1x64xf32, #tpu.memory_space<vmem>>, vector<1x64xf32>
    %104 = vector.broadcast %103 : vector<1x64xf32> to vector<16x64xf32>
    %105 = arith.addf %102, %104 : vector<16x64xf32>
    %cst_58 = arith.constant 0.000000e+00 : f32
    %106 = vector.broadcast %cst_58 : f32 to vector<16x64xf32>
    %107 = arith.cmpf ogt, %105, %106 : vector<16x64xf32>
    %cst_59 = arith.constant 1.000000e-01 : f32
    %108 = vector.broadcast %cst_59 : f32 to vector<16x64xf32>
    %109 = arith.mulf %108, %105 : vector<16x64xf32>
    %110 = arith.select %107, %105, %109 : vector<16x64xi1>, vector<16x64xf32>
    %111 = vector.shape_cast %110 : vector<16x64xf32> to vector<2x8x64xf32>
    %112 = vector.shape_cast %111 : vector<2x8x64xf32> to vector<16x64xf32>
    %c0_60 = arith.constant 0 : index
    %c0_61 = arith.constant 0 : index
    %113 = vector.load %arg9[%c0_60, %c0_61] : memref<64x128xf32, #tpu.memory_space<vmem>>, vector<64x128xf32>
    %cst_62 = arith.constant dense<0.000000e+00> : vector<16x128xf32>
    %114 = tpu.matmul %112, %113, %cst_62 {dimension_numbers = #tpu.dot_dimension_numbers<[1], [0], [0], [1], [0, 0, 1, 1], [], []>} : vector<16x64xf32>, vector<64x128xf32>, vector<16x128xf32> -> vector<16x128xf32>
    %115 = vector.shape_cast %114 : vector<16x128xf32> to vector<2x8x1x128xf32>
    %116 = vector.shape_cast %115 : vector<2x8x1x128xf32> to vector<2x8x1x128xf32>
    %117 = vector.broadcast %116 : vector<2x8x1x128xf32> to vector<2x8x2x128xf32>
    %118 = vector.shape_cast %117 : vector<2x8x2x128xf32> to vector<2x16x128xf32>
    %cst_63 = arith.constant 0.000000e+00 : f32
    %119 = vector.broadcast %cst_63 : f32 to vector<2x18x144xf32>
    %c0_64 = arith.constant 0 : index
    %c0_65 = arith.constant 0 : index
    %c0_66 = arith.constant 0 : index
    %120 = vector.load %arg16[%c0_64, %c0_65, %c0_66] : memref<2x18x144xf32, #tpu.memory_space<vmem>>, vector<2x18x144xf32>
    tpu.vector_store %arg16[%c0_64, %c0_65, %c0_66], %119 {strides = array<i32>} : memref<2x18x144xf32, #tpu.memory_space<vmem>>, vector<2x18x144xf32>,
    %c0_67 = arith.constant 0 : index
    %c1_68 = arith.constant 1 : index
    %c8_69 = arith.constant 8 : index
    %121 = vector.load %arg16[%c0_67, %c1_68, %c8_69] : memref<2x18x144xf32, #tpu.memory_space<vmem>>, vector<2x16x128xf32>
    tpu.vector_store %arg16[%c0_67, %c1_68, %c8_69], %118 {strides = array<i32>} : memref<2x18x144xf32, #tpu.memory_space<vmem>>, vector<2x16x128xf32>,
    %cst_70 = arith.constant 0.000000e+00 : f32
    %122 = vector.broadcast %cst_70 : f32 to vector<32x128xf32>
    %c0_71 = arith.constant 0 : index
    %c0_72 = arith.constant 0 : index
    %c0_73 = arith.constant 0 : index
    %123 = vector.load %arg16[%c0_71, %c0_72, %c0_73] : memref<2x18x144xf32, #tpu.memory_space<vmem>>, vector<2x18x144xf32>
    %c0_74 = arith.constant 0 : index
    %c0_75 = arith.constant 0 : index
    %c0_76 = arith.constant 0 : index
    %124 = vector.load %arg10[%c0_74, %c0_75, %c0_76] : memref<3x144x128xf32, #tpu.memory_space<vmem>>, vector<3x144x128xf32>
    %125 = vector.extract_strided_slice %123 {offsets = [0, 0, 0], sizes = [2, 16, 144], strides = [1, 1, 1]} : vector<2x18x144xf32> to vector<2x16x144xf32>
    %126 = vector.shape_cast %125 : vector<2x16x144xf32> to vector<32x144xf32>
    %127 = vector.extract_strided_slice %124 {offsets = [0, 0, 0], sizes = [1, 144, 128], strides = [1, 1, 1]} : vector<3x144x128xf32> to vector<1x144x128xf32>
    %128 = vector.shape_cast %127 : vector<1x144x128xf32> to vector<144x128xf32>
    %cst_77 = arith.constant dense<0.000000e+00> : vector<32x128xf32>
    %129 = tpu.matmul %126, %128, %cst_77 {dimension_numbers = #tpu.dot_dimension_numbers<[1], [0], [0], [1], [0, 0, 1, 1], [], []>} : vector<32x144xf32>, vector<144x128xf32>, vector<32x128xf32> -> vector<32x128xf32>
    %130 = arith.addf %122, %129 : vector<32x128xf32>
    %131 = vector.extract_strided_slice %123 {offsets = [0, 1, 0], sizes = [2, 16, 144], strides = [1, 1, 1]} : vector<2x18x144xf32> to vector<2x16x144xf32>
    %132 = vector.shape_cast %131 : vector<2x16x144xf32> to vector<32x144xf32>
    %133 = vector.extract_strided_slice %124 {offsets = [1, 0, 0], sizes = [1, 144, 128], strides = [1, 1, 1]} : vector<3x144x128xf32> to vector<1x144x128xf32>
    %134 = vector.shape_cast %133 : vector<1x144x128xf32> to vector<144x128xf32>
    %cst_78 = arith.constant dense<0.000000e+00> : vector<32x128xf32>
    %135 = tpu.matmul %132, %134, %cst_78 {dimension_numbers = #tpu.dot_dimension_numbers<[1], [0], [0], [1], [0, 0, 1, 1], [], []>} : vector<32x144xf32>, vector<144x128xf32>, vector<32x128xf32> -> vector<32x128xf32>
    %136 = arith.addf %130, %135 : vector<32x128xf32>
    %137 = vector.extract_strided_slice %123 {offsets = [0, 2, 0], sizes = [2, 16, 144], strides = [1, 1, 1]} : vector<2x18x144xf32> to vector<2x16x144xf32>
    %138 = vector.shape_cast %137 : vector<2x16x144xf32> to vector<32x144xf32>
    %139 = vector.extract_strided_slice %124 {offsets = [2, 0, 0], sizes = [1, 144, 128], strides = [1, 1, 1]} : vector<3x144x128xf32> to vector<1x144x128xf32>
    %140 = vector.shape_cast %139 : vector<1x144x128xf32> to vector<144x128xf32>
    %cst_79 = arith.constant dense<0.000000e+00> : vector<32x128xf32>
    %141 = tpu.matmul %138, %140, %cst_79 {dimension_numbers = #tpu.dot_dimension_numbers<[1], [0], [0], [1], [0, 0, 1, 1], [], []>} : vector<32x144xf32>, vector<144x128xf32>, vector<32x128xf32> -> vector<32x128xf32>
    %142 = arith.addf %136, %141 : vector<32x128xf32>
    %c0_80 = arith.constant 0 : index
    %c0_81 = arith.constant 0 : index
    %c0_82 = arith.constant 0 : index
    %143 = vector.load %arg15[%c0_80, %c0_81, %c0_82] : memref<2x18x144xf32, #tpu.memory_space<vmem>>, vector<2x18x144xf32>
    %c0_83 = arith.constant 0 : index
    %c0_84 = arith.constant 0 : index
    %c0_85 = arith.constant 0 : index
    %144 = vector.load %arg11[%c0_83, %c0_84, %c0_85] : memref<3x144x128xf32, #tpu.memory_space<vmem>>, vector<3x144x128xf32>
    %145 = vector.extract_strided_slice %143 {offsets = [0, 0, 0], sizes = [2, 16, 144], strides = [1, 1, 1]} : vector<2x18x144xf32> to vector<2x16x144xf32>
    %146 = vector.shape_cast %145 : vector<2x16x144xf32> to vector<32x144xf32>
    %147 = vector.extract_strided_slice %144 {offsets = [0, 0, 0], sizes = [1, 144, 128], strides = [1, 1, 1]} : vector<3x144x128xf32> to vector<1x144x128xf32>
    %148 = vector.shape_cast %147 : vector<1x144x128xf32> to vector<144x128xf32>
    %cst_86 = arith.constant dense<0.000000e+00> : vector<32x128xf32>
    %149 = tpu.matmul %146, %148, %cst_86 {dimension_numbers = #tpu.dot_dimension_numbers<[1], [0], [0], [1], [0, 0, 1, 1], [], []>} : vector<32x144xf32>, vector<144x128xf32>, vector<32x128xf32> -> vector<32x128xf32>
    %150 = arith.addf %142, %149 : vector<32x128xf32>
    %151 = vector.extract_strided_slice %143 {offsets = [0, 1, 0], sizes = [2, 16, 144], strides = [1, 1, 1]} : vector<2x18x144xf32> to vector<2x16x144xf32>
    %152 = vector.shape_cast %151 : vector<2x16x144xf32> to vector<32x144xf32>
    %153 = vector.extract_strided_slice %144 {offsets = [1, 0, 0], sizes = [1, 144, 128], strides = [1, 1, 1]} : vector<3x144x128xf32> to vector<1x144x128xf32>
    %154 = vector.shape_cast %153 : vector<1x144x128xf32> to vector<144x128xf32>
    %cst_87 = arith.constant dense<0.000000e+00> : vector<32x128xf32>
    %155 = tpu.matmul %152, %154, %cst_87 {dimension_numbers = #tpu.dot_dimension_numbers<[1], [0], [0], [1], [0, 0, 1, 1], [], []>} : vector<32x144xf32>, vector<144x128xf32>, vector<32x128xf32> -> vector<32x128xf32>
    %156 = arith.addf %150, %155 : vector<32x128xf32>
    %157 = vector.extract_strided_slice %143 {offsets = [0, 2, 0], sizes = [2, 16, 144], strides = [1, 1, 1]} : vector<2x18x144xf32> to vector<2x16x144xf32>
    %158 = vector.shape_cast %157 : vector<2x16x144xf32> to vector<32x144xf32>
    %159 = vector.extract_strided_slice %144 {offsets = [2, 0, 0], sizes = [1, 144, 128], strides = [1, 1, 1]} : vector<3x144x128xf32> to vector<1x144x128xf32>
    %160 = vector.shape_cast %159 : vector<1x144x128xf32> to vector<144x128xf32>
    %cst_88 = arith.constant dense<0.000000e+00> : vector<32x128xf32>
    %161 = tpu.matmul %158, %160, %cst_88 {dimension_numbers = #tpu.dot_dimension_numbers<[1], [0], [0], [1], [0, 0, 1, 1], [], []>} : vector<32x144xf32>, vector<144x128xf32>, vector<32x128xf32> -> vector<32x128xf32>
    %162 = arith.addf %156, %161 : vector<32x128xf32>
    %c0_89 = arith.constant 0 : index
    %c0_90 = arith.constant 0 : index
    %163 = vector.load %arg12[%c0_89, %c0_90] : memref<1x128xf32, #tpu.memory_space<vmem>>, vector<1x128xf32>
    %164 = vector.broadcast %163 : vector<1x128xf32> to vector<32x128xf32>
    %165 = arith.addf %162, %164 : vector<32x128xf32>
    %166 = vector.shape_cast %165 : vector<32x128xf32> to vector<2x16x128xf32>
    %167 = vector.shape_cast %166 : vector<2x16x128xf32> to vector<32x128xf32>
    %c0_91 = arith.constant 0 : index
    %c0_92 = arith.constant 0 : index
    %168 = vector.load %arg13[%c0_91, %c0_92] : memref<32x128xf32, #tpu.memory_space<vmem>>, vector<32x128xf32>
    tpu.vector_store %arg13[%c0_91, %c0_92], %167 {strides = array<i32>} : memref<32x128xf32, #tpu.memory_space<vmem>>, vector<32x128xf32>,
    return
  }
}

</mosaic_0001>

<llo_original>
// kernel: forward.1
$region0: #{forward.1}
  #allocation0 [shape = 'u32[]', space=smem, size = 0x4, offset = 0x4, fixed_abs, tag = 'smem constant byte address 0x4 - core index']
  #allocation1 [shape = 'u32[144,128]{1,0:T(1,128)}', space=vmem, size = 0x12000, scoped, tag = 'internal scratch']
  #allocation2 [shape = 'f32[2,18,72]{2,1,0:T(8,128)}', space=vmem, size = 0x6000, scoped, tag = 'scratch operand']
  #allocation3 [shape = 'f32[2,18,144]{2,1,0:T(8,128)}', space=vmem, size = 0xc000, scoped, tag = 'scratch operand']
  #allocation4 [shape = 'f32[2,18,144]{2,1,0:T(8,128)}', space=vmem, size = 0xc000, scoped, tag = 'scratch operand']
  %s0 = inlined_call_operand.vmem [shape: f32[2,16,64], index: 0, kind: input, shape index: {}]
  %s1 = inlined_call_operand.hbm [shape: f32[3,72,128], index: 1, kind: input, shape index: {}]
  %s2 = inlined_call_operand.hbm [shape: f32[1,128], index: 2, kind: input, shape index: {}]
  %s3 = inlined_call_operand.vmem [shape: f32[3,144,128], index: 3, kind: input, shape index: {}]
  %s4 = inlined_call_operand.hbm [shape: f32[1,128], index: 4, kind: input, shape index: {}]
  %s5 = inlined_call_operand.vmem [shape: f32[1,128,128], index: 5, kind: input, shape index: {}]
  %s6 = inlined_call_operand.hbm [shape: f32[1,128], index: 6, kind: input, shape index: {}]
  %s7 = inlined_call_operand.vmem [shape: f32[1,128,64], index: 7, kind: input, shape index: {}]
  %s8 = inlined_call_operand.hbm [shape: f32[1,64], index: 8, kind: input, shape index: {}]
  %s9 = inlined_call_operand.vmem [shape: f32[64,128], index: 9, kind: input, shape index: {}]
  %s10 = inlined_call_operand.hbm [shape: f32[3,144,128], index: 10, kind: input, shape index: {}]
  %s11 = inlined_call_operand.hbm [shape: f32[3,144,128], index: 11, kind: input, shape index: {}]
  %s12 = inlined_call_operand.vmem [shape: f32[1,128], index: 12, kind: input, shape index: {}]
  %s13 = inlined_call_operand.vmem [shape: f32[32,128], index: 13, kind: output, shape index: {}]
  %s14 = sld [smem:[#allocation0]]
  $region90: #{forward.1} parent=0
    _
  %s16 = ssub.s32 1, %s14
  %s17 = scalar_select 0, %s16, %s14
  $region1: #{forward.1} parent=0
    #allocation5 [shape = 'u8[110592]{0}', space=vmem, size = 0x1b000, scoped, tag = 'input window, operand 1, single buffered']
    #allocation6 [shape = 's32[1]{0}', space=sflag, size = 0x4, scoped, tag = 'scoped memory for forward.1']
    #allocation7 [shape = 'u8[512]{0}', space=vmem, size = 0x400, scoped, tag = 'input window, operand 2, single buffered']
    #allocation8 [shape = 's32[1]{0}', space=sflag, size = 0x4, scoped, tag = 'scoped memory for forward.1']
    #allocation9 [shape = 'u8[512]{0}', space=vmem, size = 0x400, scoped, tag = 'input window, operand 4, single buffered']
    #allocation10 [shape = 'u8[512]{0}', space=vmem, size = 0x400, scoped, tag = 'input window, operand 6, single buffered']
    #allocation11 [shape = 's32[1]{0}', space=sflag, size = 0x4, scoped, tag = 'scoped memory for forward.1']
    #allocation12 [shape = 'u8[512]{0}', space=vmem, size = 0x400, scoped, tag = 'input window, operand 8, single buffered']
    #allocation13 [shape = 'u8[221184]{0}', space=vmem, size = 0x36000, scoped, tag = 'input window, operand 10, single buffered']
    #allocation14 [shape = 's32[1]{0}', space=sflag, size = 0x4, scoped, tag = 'scoped memory for forward.1']
    #allocation15 [shape = 'u8[221184]{0}', space=vmem, size = 0x36000, scoped, tag = 'input window, operand 11, single buffered']
    %18 = vsyncpa [#allocation6], 0
    %19 = vsyncpa [#allocation8], 0
    %20 = vsyncpa [#allocation11], 0
    %21 = vsyncpa [#allocation14], 0
    // Predicated region
    $region2: #{forward.1} parent=1 // pred_check
      _
    $region3: #{forward.1} parent=1 // pred_check_branch
      %23 = sbr.rel (0) target = $region5
    $region4: #{forward.1} parent=1 // pred_region
      _
    $region5: #{forward.1} parent=1 // pred_fallthru
      _
    // Predicated region
    $region6: #{forward.1} parent=1 // pred_check
      _
    $region7: #{forward.1} parent=1 // pred_check_branch
      %25 = sbr.rel (0) target = $region9
    $region8: #{forward.1} parent=1 // pred_region
      %s27 = ssub.s32 3456, 3456
      %28 = vsyncadd [#allocation6], %s27
      %s29 = sshll.u32 [#allocation5], 4
      %s30 = int_to_ptr.vmem [resolvable:$true] %s29
      %35 = dma.hbm_to_vmem [thread:$0]  %s1, 3456, %s30, [#allocation6], 128, 128, 8
    $region9: #{forward.1} parent=1 // pred_fallthru
      _
    // Predicated region
    $region10: #{forward.1} parent=1 // pred_check
      _
    $region11: #{forward.1} parent=1 // pred_check_branch
      %37 = sbr.rel (0) target = $region13
    $region12: #{forward.1} parent=1 // pred_region
      %s39 = ssub.s32 16, 16
      %40 = vsyncadd [#allocation8], %s39
      %s42 = sshll.u32 [#allocation7], 4
      %s43 = int_to_ptr.vmem [resolvable:$true] %s42
      %45 = dma.hbm_to_vmem [thread:$0]  %s2, 16, %s43, [#allocation8]
    $region13: #{forward.1} parent=1 // pred_fallthru
      _
    // Predicated region
    $region14: #{forward.1} parent=1 // pred_check
      _
    $region15: #{forward.1} parent=1 // pred_check_branch
      %47 = sbr.rel (0) target = $region17
    $region16: #{forward.1} parent=1 // pred_region
      _
    $region17: #{forward.1} parent=1 // pred_fallthru
      _
    // Predicated region
    $region18: #{forward.1} parent=1 // pred_check
      _
    $region19: #{forward.1} parent=1 // pred_check_branch
      %49 = sbr.rel (0) target = $region21
    $region20: #{forward.1} parent=1 // pred_region
      %s51 = ssub.s32 16, 16
      %52 = vsyncadd [#allocation8], %s51
      %s54 = sshll.u32 [#allocation9], 4
      %s55 = int_to_ptr.vmem [resolvable:$true] %s54
      %57 = dma.hbm_to_vmem [thread:$0]  %s4, 16, %s55, [#allocation8]
    $region21: #{forward.1} parent=1 // pred_fallthru
      _
    // Predicated region
    $region22: #{forward.1} parent=1 // pred_check
      _
    $region23: #{forward.1} parent=1 // pred_check_branch
      %59 = sbr.rel (0) target = $region25
    $region24: #{forward.1} parent=1 // pred_region
      _
    $region25: #{forward.1} parent=1 // pred_fallthru
      _
    // Predicated region
    $region26: #{forward.1} parent=1 // pred_check
      _
    $region27: #{forward.1} parent=1 // pred_check_branch
      %61 = sbr.rel (0) target = $region29
    $region28: #{forward.1} parent=1 // pred_region
      %s63 = ssub.s32 16, 16
      %64 = vsyncadd [#allocation11], %s63
      %s66 = sshll.u32 [#allocation10], 4
      %s67 = int_to_ptr.vmem [resolvable:$true] %s66
      %69 = dma.hbm_to_vmem [thread:$0]  %s6, 16, %s67, [#allocation11]
    $region29: #{forward.1} parent=1 // pred_fallthru
      _
    // Predicated region
    $region30: #{forward.1} parent=1 // pred_check
      _
    $region31: #{forward.1} parent=1 // pred_check_branch
      %71 = sbr.rel (0) target = $region33
    $region32: #{forward.1} parent=1 // pred_region
      _
    $region33: #{forward.1} parent=1 // pred_fallthru
      _
    // Predicated region
    $region34: #{forward.1} parent=1 // pred_check
      _
    $region35: #{forward.1} parent=1 // pred_check_branch
      %73 = sbr.rel (0) target = $region37
    $region36: #{forward.1} parent=1 // pred_region
      %s75 = ssub.s32 16, 16
      %76 = vsyncadd [#allocation11], %s75
      %s78 = sshll.u32 [#allocation12], 4
      %s79 = int_to_ptr.vmem [resolvable:$true] %s78
      %81 = dma.hbm_to_vmem [thread:$0]  %s8, 16, %s79, [#allocation11]
    $region37: #{forward.1} parent=1 // pred_fallthru
      _
    // Predicated region
    $region38: #{forward.1} parent=1 // pred_check
      _
    $region39: #{forward.1} parent=1 // pred_check_branch
      %83 = sbr.rel (0) target = $region41
    $region40: #{forward.1} parent=1 // pred_region
      _
    $region41: #{forward.1} parent=1 // pred_fallthru
      _
    // Predicated region
    $region42: #{forward.1} parent=1 // pred_check
      _
    $region43: #{forward.1} parent=1 // pred_check_branch
      %85 = sbr.rel (0) target = $region45
    $region44: #{forward.1} parent=1 // pred_region
      %s87 = ssub.s32 6912, 6912
      %88 = vsyncadd [#allocation14], %s87
      %s89 = sshll.u32 [#allocation13], 4
      %s90 = int_to_ptr.vmem [resolvable:$true] %s89
      %95 = dma.hbm_to_vmem [thread:$0]  %s10, 6912, %s90, [#allocation14], 128, 128, 8
    $region45: #{forward.1} parent=1 // pred_fallthru
      _
    // Predicated region
    $region46: #{forward.1} parent=1 // pred_check
      _
    $region47: #{forward.1} parent=1 // pred_check_branch
      %97 = sbr.rel (0) target = $region49
    $region48: #{forward.1} parent=1 // pred_region
      %s99 = ssub.s32 6912, 6912
      %100 = vsyncadd [#allocation14], %s99
      %s101 = sshll.u32 [#allocation15], 4
      %s102 = int_to_ptr.vmem [resolvable:$true] %s101
      %107 = dma.hbm_to_vmem [thread:$0]  %s11, 6912, %s102, [#allocation14], 128, 128, 8
    $region49: #{forward.1} parent=1 // pred_fallthru
      _
    // Predicated region
    $region50: #{forward.1} parent=1 // pred_check
      _
    $region51: #{forward.1} parent=1 // pred_check_branch
      %109 = sbr.rel (0) target = $region53
    $region52: #{forward.1} parent=1 // pred_region
      _
    $region53: #{forward.1} parent=1 // pred_fallthru
      _
    // Predicated region
    $region54: #{forward.1} parent=1 // pred_check
      _
    $region55: #{forward.1} parent=1 // pred_check_branch
      %111 = sbr.rel (0) target = $region57
    $region56: #{forward.1} parent=1 // pred_region
      %112 = dma.done [#allocation6], 3456
    $region57: #{forward.1} parent=1 // pred_fallthru
      _
    // Predicated region
    $region58: #{forward.1} parent=1 // pred_check
      _
    $region59: #{forward.1} parent=1 // pred_check_branch
      %114 = sbr.rel (0) target = $region61
    $region60: #{forward.1} parent=1 // pred_region
      %115 = dma.done [#allocation8], 16
    $region61: #{forward.1} parent=1 // pred_fallthru
      _
    // Predicated region
    $region62: #{forward.1} parent=1 // pred_check
      _
    $region63: #{forward.1} parent=1 // pred_check_branch
      %117 = sbr.rel (0) target = $region65
    $region64: #{forward.1} parent=1 // pred_region
      %118 = dma.done [#allocation8], 16
    $region65: #{forward.1} parent=1 // pred_fallthru
      _
    // Predicated region
    $region66: #{forward.1} parent=1 // pred_check
      _
    $region67: #{forward.1} parent=1 // pred_check_branch
      %120 = sbr.rel (0) target = $region69
    $region68: #{forward.1} parent=1 // pred_region
      %121 = dma.done [#allocation11], 16
    $region69: #{forward.1} parent=1 // pred_fallthru
      _
    // Predicated region
    $region70: #{forward.1} parent=1 // pred_check
      _
    $region71: #{forward.1} parent=1 // pred_check_branch
      %123 = sbr.rel (0) target = $region73
    $region72: #{forward.1} parent=1 // pred_region
      %124 = dma.done [#allocation11], 16
    $region73: #{forward.1} parent=1 // pred_fallthru
      _
    // Predicated region
    $region74: #{forward.1} parent=1 // pred_check
      _
    $region75: #{forward.1} parent=1 // pred_check_branch
      %126 = sbr.rel (0) target = $region77
    $region76: #{forward.1} parent=1 // pred_region
      %127 = dma.done [#allocation14], 6912
    $region77: #{forward.1} parent=1 // pred_fallthru
      _
    // Predicated region
    $region78: #{forward.1} parent=1 // pred_check
      _
    $region79: #{forward.1} parent=1 // pred_check_branch
      %129 = sbr.rel (0) target = $region81
    $region80: #{forward.1} parent=1 // pred_region
      %130 = dma.done [#allocation14], 6912
    $region81: #{forward.1} parent=1 // pred_fallthru
      _
    %v131 = vld [vmem:[%s0] sm:$0xff]
    %v132 = vld [vmem:[%s0 + $0x8] sm:$0xff]
    %v133 = vld [vmem:[%s0 + $0x10] sm:$0xff]
    %v134 = vld [vmem:[%s0 + $0x18] sm:$0xff]
    %vm135 = vcmask 588800
    %136 = vst.msk [vmem:[#allocation2] sm:$0xff] %vm135, 0.0
    %137 = vst.msk [vmem:[#allocation2 + $0x8] sm:$0xff] %vm135, 0.0
    %vm138 = vcmask 582656
    %139 = vst.msk [vmem:[#allocation2 + $0x10] sm:$0x3] %vm138, 0.0
    %140 = vst.msk [vmem:[#allocation2 + $0x18] sm:$0xff] %vm135, 0.0
    %141 = vst.msk [vmem:[#allocation2 + $0x20] sm:$0xff] %vm135, 0.0
    %142 = vst.msk [vmem:[#allocation2 + $0x28] sm:$0x3] %vm138, 0.0
    %147 = vrot.lane.b32.xlu0 %v131, 4
    %v148 = vpop.permute.xlu0 %147
    %149 = vrot.lane.b32.xlu0 %v132, 4
    %v150 = vpop.permute.xlu0 %149
    %151 = vrot.lane.b32.xlu0 %v133, 4
    %v152 = vpop.permute.xlu0 %151
    %153 = vrot.lane.b32.xlu0 %v134, 4
    %v154 = vpop.permute.xlu0 %153
    %vm159 = vcmask 556064
    %160 = vst.msk [vmem:[#allocation2 + $0x1] sm:$0xff] %vm159, %v148
    %161 = vst.msk [vmem:[#allocation2 + $0x9] sm:$0xff] %vm159, %v150
    %162 = vst.msk [vmem:[#allocation2 + $0x19] sm:$0xff] %vm159, %v152
    %163 = vst.msk [vmem:[#allocation2 + $0x21] sm:$0xff] %vm159, %v154
    %v164 = vld [vmem:[#allocation2] sm:$0xff]
    %v165 = vld [vmem:[#allocation2 + $0x8] sm:$0xff]
    %v166 = vld [vmem:[#allocation2 + $0x10] sm:$0x3]
    %v167 = vld [vmem:[#allocation2 + $0x18] sm:$0xff]
    %v168 = vld [vmem:[#allocation2 + $0x20] sm:$0xff]
    %v169 = vld [vmem:[#allocation2 + $0x28] sm:$0x3]
    %v170 = vld [vmem:[#allocation5] sm:$0xff]
    %v171 = vld [vmem:[#allocation5 + $0x8] sm:$0xff]
    %v172 = vld [vmem:[#allocation5 + $0x10] sm:$0xff]
    %v173 = vld [vmem:[#allocation5 + $0x18] sm:$0xff]
    %v174 = vld [vmem:[#allocation5 + $0x20] sm:$0xff]
    %v175 = vld [vmem:[#allocation5 + $0x28] sm:$0xff]
    %v176 = vld [vmem:[#allocation5 + $0x30] sm:$0xff]
    %v177 = vld [vmem:[#allocation5 + $0x38] sm:$0xff]
    %v178 = vld [vmem:[#allocation5 + $0x40] sm:$0xff]
    %v179 = vld [vmem:[#allocation5 + $0x48] sm:$0xff]
    %v180 = vld [vmem:[#allocation5 + $0x50] sm:$0xff]
    %v181 = vld [vmem:[#allocation5 + $0x58] sm:$0xff]
    %v182 = vld [vmem:[#allocation5 + $0x60] sm:$0xff]
    %v183 = vld [vmem:[#allocation5 + $0x68] sm:$0xff]
    %v184 = vld [vmem:[#allocation5 + $0x70] sm:$0xff]
    %v185 = vld [vmem:[#allocation5 + $0x78] sm:$0xff]
    %v186 = vld [vmem:[#allocation5 + $0x80] sm:$0xff]
    %v187 = vld [vmem:[#allocation5 + $0x88] sm:$0xff]
    %v188 = vld [vmem:[#allocation5 + $0x90] sm:$0xff]
    %v189 = vld [vmem:[#allocation5 + $0x98] sm:$0xff]
    %v190 = vld [vmem:[#allocation5 + $0xa0] sm:$0xff]
    %v191 = vld [vmem:[#allocation5 + $0xa8] sm:$0xff]
    %v192 = vld [vmem:[#allocation5 + $0xb0] sm:$0xff]
    %v193 = vld [vmem:[#allocation5 + $0xb8] sm:$0xff]
    %v194 = vld [vmem:[#allocation5 + $0xc0] sm:$0xff]
    %v195 = vld [vmem:[#allocation5 + $0xc8] sm:$0xff]
    %v196 = vld [vmem:[#allocation5 + $0xd0] sm:$0xff]
    %vm203 = vcmask 1046528
    %v204 = vrot.slane %v164, 1
    %v205 = vrot.slane %v165, 1
    %v206 = vsel %vm203, %v204, %v205
    %v207 = vrot.slane %v166, 1
    %v208 = vsel %vm203, %v205, %v207
    %v209 = vrot.slane %v167, 1
    %v210 = vrot.slane %v168, 1
    %v211 = vsel %vm203, %v209, %v210
    %v212 = vrot.slane %v169, 1
    %v213 = vsel %vm203, %v210, %v212
    %v214 = vsel %vm135, %v206, 0
    %v216 = vsel %vm135, %v208, 0
    %v218 = vsel %vm135, %v211, 0
    %v220 = vsel %vm135, %v213, 0
    %222 = vmatprep.subr.mxu0 0.0
    %223 = vmatpush1.msra.mxu0 0.0
    %224 = vmatprep.subr.mxu0 0.0
    %225 = vmatpush1.msra.mxu0 0.0
    %226 = vmatprep.subr.mxu0 0.0
    %227 = vmatpush1.msra.mxu0 0.0
    %228 = vmatprep.subr.mxu0 0.0
    %229 = vmatpush1.msra.mxu0 0.0
    %230 = vmatprep.subr.mxu0 0.0
    %231 = vmatpush1.msra.mxu0 0.0
    %232 = vmatprep.subr.mxu0 0.0
    %233 = vmatpush1.msra.mxu0 0.0
    %234 = vmatprep.subr.mxu0 0.0
    %235 = vmatpush1.msra.mxu0 0.0
    %236 = vmatprep.subr.mxu0 0.0
    %237 = vmatpush1.msra.mxu0 %v187
    %238 = vmatprep.subr.mxu0 0.0
    %239 = vmatpush1.msra.mxu0 %v186
    %240 = vmatprep.subr.mxu0 0.0
    %241 = vmatpush1.msra.mxu0 %v185
    %242 = vmatprep.subr.mxu0 0.0
    %243 = vmatpush1.msra.mxu0 %v184
    %244 = vmatprep.subr.mxu0 0.0
    %245 = vmatpush1.msra.mxu0 %v183
    %246 = vmatprep.subr.mxu0 0.0
    %247 = vmatpush1.msra.mxu0 %v182
    %248 = vmatprep.subr.mxu0 0.0
    %249 = vmatpush1.msra.mxu0 %v181
    %250 = vmatprep.subr.mxu0 0.0
    %251 = vmatpush1.msra.mxu0 %v180
    %252 = vmatprep.subr.mxu0 0.0
    %253 = vmatpush1.msra.mxu0 %v179
    %254 = vmatprep.subr.mxu0 0.0
    %255 = vmatpush2.msra.mxu0 0.0
    %256 = vmatprep.subr.mxu0 0.0
    %257 = vmatpush2.msra.mxu0 0.0
    %258 = vmatprep.subr.mxu0 0.0
    %259 = vmatpush2.msra.mxu0 0.0
    %260 = vmatprep.subr.mxu0 0.0
    %261 = vmatpush2.msra.mxu0 0.0
    %262 = vmatprep.subr.mxu0 0.0
    %263 = vmatpush2.msra.mxu0 0.0
    %264 = vmatprep.subr.mxu0 0.0
    %265 = vmatpush2.msra.mxu0 0.0
    %266 = vmatprep.subr.mxu0 0.0
    %267 = vmatpush2.msra.mxu0 0.0
    %268 = vmatprep.subr.mxu0 0.0
    %269 = vmatpush2.msra.mxu0 0.0
    %270 = vmatprep.subr.mxu0 0.0
    %271 = vmatpush2.msra.mxu0 0.0
    %272 = vmatprep.subr.mxu0 0.0
    %273 = vmatpush2.msra.mxu0 0.0
    %274 = vmatprep.subr.mxu0 0.0
    %275 = vmatpush2.msra.mxu0 0.0
    %276 = vmatprep.subr.mxu0 0.0
    %277 = vmatpush2.msra.mxu0 0.0
    %278 = vmatprep.subr.mxu0 0.0
    %279 = vmatpush2.msra.mxu0 0.0
    %280 = vmatprep.subr.mxu0 0.0
    %281 = vmatpush2.msra.mxu0 0.0
    %282 = vmatprep.subr.mxu0 0.0
    %283 = vmatpush2.msra.mxu0 0.0
    %284 = vmatprep.subr.mxu0 0.0
    %285 = vmatpush2.msra.mxu0 0.0
    %286 = vmatprep.mubr.f32.mxu0 0.0
    %287 = vmatmul.mubr.f32.gmra.mxu0 %v214
    %v288 = vpop.f32.mrf.mxu0
    %v289 = vadd.f32 0.0, %v288
    %v290 = vpop.f32.mrf.mxu0
    %291 = vmatprep.mubr.f32.mxu0 0.0
    %292 = vmatmul.mubr.f32.gmra.mxu0 %v216
    %v293 = vpop.f32.mrf.mxu0
    %v294 = vadd.f32 0.0, %v293
    %v295 = vpop.f32.mrf.mxu0
    %296 = vmatprep.mubr.f32.mxu0 0.0
    %297 = vmatmul.mubr.f32.gmra.mxu0 %v218
    %v298 = vpop.f32.mrf.mxu0
    %v299 = vadd.f32 0.0, %v298
    %v300 = vpop.f32.mrf.mxu0
    %301 = vmatprep.mubr.f32.mxu0 0.0
    %302 = vmatmul.mubr.f32.gmra.mxu0 %v220
    %v303 = vpop.f32.mrf.mxu0
    %v304 = vadd.f32 0.0, %v303
    %v305 = vpop.f32.mrf.mxu0
    %306 = vdwg.mxu0
    %v307 = vsel %vm135, %v164, 0
    %v309 = vsel %vm135, %v165, 0
    %v311 = vsel %vm135, %v167, 0
    %v313 = vsel %vm135, %v168, 0
    %315 = vmatprep.subr.mxu0 0.0
    %316 = vmatpush1.msra.mxu0 0.0
    %317 = vmatprep.subr.mxu0 0.0
    %318 = vmatpush1.msra.mxu0 0.0
    %319 = vmatprep.subr.mxu0 0.0
    %320 = vmatpush1.msra.mxu0 0.0
    %321 = vmatprep.subr.mxu0 0.0
    %322 = vmatpush1.msra.mxu0 0.0
    %323 = vmatprep.subr.mxu0 0.0
    %324 = vmatpush1.msra.mxu0 0.0
    %325 = vmatprep.subr.mxu0 0.0
    %326 = vmatpush1.msra.mxu0 0.0
    %327 = vmatprep.subr.mxu0 0.0
    %328 = vmatpush1.msra.mxu0 0.0
    %329 = vmatprep.subr.mxu0 0.0
    %330 = vmatpush1.msra.mxu0 %v178
    %331 = vmatprep.subr.mxu0 0.0
    %332 = vmatpush1.msra.mxu0 %v177
    %333 = vmatprep.subr.mxu0 0.0
    %334 = vmatpush1.msra.mxu0 %v176
    %335 = vmatprep.subr.mxu0 0.0
    %336 = vmatpush1.msra.mxu0 %v175
    %337 = vmatprep.subr.mxu0 0.0
    %338 = vmatpush1.msra.mxu0 %v174
    %339 = vmatprep.subr.mxu0 0.0
    %340 = vmatpush1.msra.mxu0 %v173
    %341 = vmatprep.subr.mxu0 0.0
    %342 = vmatpush1.msra.mxu0 %v172
    %343 = vmatprep.subr.mxu0 0.0
    %344 = vmatpush1.msra.mxu0 %v171
    %345 = vmatprep.subr.mxu0 0.0
    %346 = vmatpush1.msra.mxu0 %v170
    %347 = vmatprep.subr.mxu0 0.0
    %348 = vmatpush2.msra.mxu0 0.0
    %349 = vmatprep.subr.mxu0 0.0
    %350 = vmatpush2.msra.mxu0 0.0
    %351 = vmatprep.subr.mxu0 0.0
    %352 = vmatpush2.msra.mxu0 0.0
    %353 = vmatprep.subr.mxu0 0.0
    %354 = vmatpush2.msra.mxu0 0.0
    %355 = vmatprep.subr.mxu0 0.0
    %356 = vmatpush2.msra.mxu0 0.0
    %357 = vmatprep.subr.mxu0 0.0
    %358 = vmatpush2.msra.mxu0 0.0
    %359 = vmatprep.subr.mxu0 0.0
    %360 = vmatpush2.msra.mxu0 0.0
    %361 = vmatprep.subr.mxu0 0.0
    %362 = vmatpush2.msra.mxu0 0.0
    %363 = vmatprep.subr.mxu0 0.0
    %364 = vmatpush2.msra.mxu0 0.0
    %365 = vmatprep.subr.mxu0 0.0
    %366 = vmatpush2.msra.mxu0 0.0
    %367 = vmatprep.subr.mxu0 0.0
    %368 = vmatpush2.msra.mxu0 0.0
    %369 = vmatprep.subr.mxu0 0.0
    %370 = vmatpush2.msra.mxu0 0.0
    %371 = vmatprep.subr.mxu0 0.0
    %372 = vmatpush2.msra.mxu0 0.0
    %373 = vmatprep.subr.mxu0 0.0
    %374 = vmatpush2.msra.mxu0 0.0
    %375 = vmatprep.subr.mxu0 0.0
    %376 = vmatpush2.msra.mxu0 0.0
    %377 = vmatprep.subr.mxu0 0.0
    %378 = vmatpush2.msra.mxu0 0.0
    %379 = vmatprep.mubr.f32.mxu0 0.0
    %380 = vmatmul.mubr.f32.gmra.mxu0 %v307
    %v381 = vpop.f32.mrf.mxu0
    %v382 = vadd.f32 %v289, %v381
    %v383 = vpop.f32.mrf.mxu0
    %384 = vmatprep.mubr.f32.mxu0 0.0
    %385 = vmatmul.mubr.f32.gmra.mxu0 %v309
    %v386 = vpop.f32.mrf.mxu0
    %v387 = vadd.f32 %v294, %v386
    %v388 = vpop.f32.mrf.mxu0
    %389 = vmatprep.mubr.f32.mxu0 0.0
    %390 = vmatmul.mubr.f32.gmra.mxu0 %v311
    %v391 = vpop.f32.mrf.mxu0
    %v392 = vadd.f32 %v299, %v391
    %v393 = vpop.f32.mrf.mxu0
    %394 = vmatprep.mubr.f32.mxu0 0.0
    %395 = vmatmul.mubr.f32.gmra.mxu0 %v313
    %v396 = vpop.f32.mrf.mxu0
    %v397 = vadd.f32 %v304, %v396
    %v398 = vpop.f32.mrf.mxu0
    %399 = vdwg.mxu0
    %vm400 = vcmask 1045504
    %v401 = vrot.slane %v164, 2
    %v402 = vrot.slane %v165, 2
    %v403 = vsel %vm400, %v401, %v402
    %v404 = vrot.slane %v166, 2
    %v405 = vsel %vm400, %v402, %v404
    %v406 = vrot.slane %v167, 2
    %v407 = vrot.slane %v168, 2
    %v408 = vsel %vm400, %v406, %v407
    %v409 = vrot.slane %v169, 2
    %v410 = vsel %vm400, %v407, %v409
    %v411 = vsel %vm135, %v403, 0
    %v413 = vsel %vm135, %v405, 0
    %v415 = vsel %vm135, %v408, 0
    %v417 = vsel %vm135, %v410, 0
    %419 = vmatprep.subr.mxu0 0.0
    %420 = vmatpush1.msra.mxu0 0.0
    %421 = vmatprep.subr.mxu0 0.0
    %422 = vmatpush1.msra.mxu0 0.0
    %423 = vmatprep.subr.mxu0 0.0
    %424 = vmatpush1.msra.mxu0 0.0
    %425 = vmatprep.subr.mxu0 0.0
    %426 = vmatpush1.msra.mxu0 0.0
    %427 = vmatprep.subr.mxu0 0.0
    %428 = vmatpush1.msra.mxu0 0.0
    %429 = vmatprep.subr.mxu0 0.0
    %430 = vmatpush1.msra.mxu0 0.0
    %431 = vmatprep.subr.mxu0 0.0
    %432 = vmatpush1.msra.mxu0 0.0
    %433 = vmatprep.subr.mxu0 0.0
    %434 = vmatpush1.msra.mxu0 %v196
    %435 = vmatprep.subr.mxu0 0.0
    %436 = vmatpush1.msra.mxu0 %v195
    %437 = vmatprep.subr.mxu0 0.0
    %438 = vmatpush1.msra.mxu0 %v194
    %439 = vmatprep.subr.mxu0 0.0
    %440 = vmatpush1.msra.mxu0 %v193
    %441 = vmatprep.subr.mxu0 0.0
    %442 = vmatpush1.msra.mxu0 %v192
    %443 = vmatprep.subr.mxu0 0.0
    %444 = vmatpush1.msra.mxu0 %v191
    %445 = vmatprep.subr.mxu0 0.0
    %446 = vmatpush1.msra.mxu0 %v190
    %447 = vmatprep.subr.mxu0 0.0
    %448 = vmatpush1.msra.mxu0 %v189
    %449 = vmatprep.subr.mxu0 0.0
    %450 = vmatpush1.msra.mxu0 %v188
    %451 = vmatprep.subr.mxu0 0.0
    %452 = vmatpush2.msra.mxu0 0.0
    %453 = vmatprep.subr.mxu0 0.0
    %454 = vmatpush2.msra.mxu0 0.0
    %455 = vmatprep.subr.mxu0 0.0
    %456 = vmatpush2.msra.mxu0 0.0
    %457 = vmatprep.subr.mxu0 0.0
    %458 = vmatpush2.msra.mxu0 0.0
    %459 = vmatprep.subr.mxu0 0.0
    %460 = vmatpush2.msra.mxu0 0.0
    %461 = vmatprep.subr.mxu0 0.0
    %462 = vmatpush2.msra.mxu0 0.0
    %463 = vmatprep.subr.mxu0 0.0
    %464 = vmatpush2.msra.mxu0 0.0
    %465 = vmatprep.subr.mxu0 0.0
    %466 = vmatpush2.msra.mxu0 0.0
    %467 = vmatprep.subr.mxu0 0.0
    %468 = vmatpush2.msra.mxu0 0.0
    %469 = vmatprep.subr.mxu0 0.0
    %470 = vmatpush2.msra.mxu0 0.0
    %471 = vmatprep.subr.mxu0 0.0
    %472 = vmatpush2.msra.mxu0 0.0
    %473 = vmatprep.subr.mxu0 0.0
    %474 = vmatpush2.msra.mxu0 0.0
    %475 = vmatprep.subr.mxu0 0.0
    %476 = vmatpush2.msra.mxu0 0.0
    %477 = vmatprep.subr.mxu0 0.0
    %478 = vmatpush2.msra.mxu0 0.0
    %479 = vmatprep.subr.mxu0 0.0
    %480 = vmatpush2.msra.mxu0 0.0
    %481 = vmatprep.subr.mxu0 0.0
    %482 = vmatpush2.msra.mxu0 0.0
    %483 = vmatprep.mubr.f32.mxu0 0.0
    %484 = vmatmul.mubr.f32.gmra.mxu0 %v411
    %v485 = vpop.f32.mrf.mxu0
    %v486 = vadd.f32 0.0, %v485
    %v487 = vpop.f32.mrf.mxu0
    %488 = vmatprep.mubr.f32.mxu0 0.0
    %489 = vmatmul.mubr.f32.gmra.mxu0 %v413
    %v490 = vpop.f32.mrf.mxu0
    %v491 = vadd.f32 0.0, %v490
    %v492 = vpop.f32.mrf.mxu0
    %493 = vmatprep.mubr.f32.mxu0 0.0
    %494 = vmatmul.mubr.f32.gmra.mxu0 %v415
    %v495 = vpop.f32.mrf.mxu0
    %v496 = vadd.f32 0.0, %v495
    %v497 = vpop.f32.mrf.mxu0
    %498 = vmatprep.mubr.f32.mxu0 0.0
    %499 = vmatmul.mubr.f32.gmra.mxu0 %v417
    %v500 = vpop.f32.mrf.mxu0
    %v501 = vadd.f32 0.0, %v500
    %v502 = vpop.f32.mrf.mxu0
    %503 = vdwg.mxu0
    %v504 = vadd.f32 %v382, %v486
    %v505 = vadd.f32 %v387, %v491
    %v506 = vadd.f32 %v392, %v496
    %v507 = vadd.f32 %v397, %v501
    %v508 = vld [vmem:[#allocation7] sm:$0x1]
    %v510 = vlaneseq
    %v511 = vshrl.u32 %v510, 7
    %v512 = vsub.s32 0, %v511
    %v513 = vrot.slane %v508, %v512
    %v515 = vadd.f32 %v504, %v513
    %v516 = vadd.f32 %v505, %v513
    %v517 = vadd.f32 %v506, %v513
    %v518 = vadd.f32 %v507, %v513
    %vm519 = vcmp.gt.f32.partialorder %v515, 0.0
    %vm520 = vcmp.gt.f32.partialorder %v516, 0.0
    %vm521 = vcmp.gt.f32.partialorder %v517, 0.0
    %vm522 = vcmp.gt.f32.partialorder %v518, 0.0
    %v523 = vmul.f32 %v515, 0.1
    %v524 = vmul.f32 %v516, 0.1
    %v525 = vmul.f32 %v517, 0.1
    %v526 = vmul.f32 %v518, 0.1
    %v527 = vsel %vm519, %v515, %v523
    %v528 = vsel %vm520, %v516, %v524
    %v529 = vsel %vm521, %v517, %v525
    %v530 = vsel %vm522, %v518, %v526
    %531 = vst [vmem:[#allocation3] sm:$0xff] 0.0
    %vm532 = vcmask 130048
    %533 = vst.msk [vmem:[#allocation3 + $0x8] sm:$0xff] %vm532, 0.0
    %534 = vst [vmem:[#allocation3 + $0x10] sm:$0xff] 0.0
    %535 = vst.msk [vmem:[#allocation3 + $0x18] sm:$0xff] %vm532, 0.0
    %536 = vst [vmem:[#allocation3 + $0x20] sm:$0x3] 0.0
    %vm537 = vcmask 123904
    %538 = vst.msk [vmem:[#allocation3 + $0x28] sm:$0x3] %vm537, 0.0
    %539 = vst [vmem:[#allocation3 + $0x30] sm:$0xff] 0.0
    %540 = vst.msk [vmem:[#allocation3 + $0x38] sm:$0xff] %vm532, 0.0
    %541 = vst [vmem:[#allocation3 + $0x40] sm:$0xff] 0.0
    %542 = vst.msk [vmem:[#allocation3 + $0x48] sm:$0xff] %vm532, 0.0
    %543 = vst [vmem:[#allocation3 + $0x50] sm:$0x3] 0.0
    %544 = vst.msk [vmem:[#allocation3 + $0x58] sm:$0x3] %vm537, 0.0
    %vm549 = vcmask 1040384
    %v550 = vrot.slane %v527, 7
    %v551 = vrot.slane %v528, 7
    %v552 = vsel %vm549, %v550, %v551
    %v553 = vrot.slane %v529, 7
    %v554 = vrot.slane %v530, 7
    %v555 = vsel %vm549, %v553, %v554
    %556 = vrot.lane.b32.xlu0 %v550, 8
    %v557 = vpop.permute.xlu0 %556
    %558 = vrot.lane.b32.xlu0 %v552, 8
    %v559 = vpop.permute.xlu0 %558
    %560 = vrot.lane.b32.xlu0 %v551, 8
    %v561 = vpop.permute.xlu0 %560
    %562 = vrot.lane.b32.xlu0 %v553, 8
    %v563 = vpop.permute.xlu0 %562
    %564 = vrot.lane.b32.xlu0 %v555, 8
    %v565 = vpop.permute.xlu0 %564
    %566 = vrot.lane.b32.xlu0 %v554, 8
    %v567 = vpop.permute.xlu0 %566
    %vm574 = vcmask 1047617
    %575 = vst.msk [vmem:[#allocation3] sm:$0xfe] %vm574, %v557
    %vm576 = vcmask 64513
    %577 = vst.msk [vmem:[#allocation3 + $0x8] sm:$0xfe] %vm576, %v557
    %vm578 = vcmask 1047616
    %579 = vst.msk [vmem:[#allocation3 + $0x10] sm:$0xff] %vm578, %v559
    %vm580 = vcmask 64512
    %581 = vst.msk [vmem:[#allocation3 + $0x18] sm:$0xff] %vm580, %v559
    %vm582 = vcmask 1040448
    %583 = vst.msk [vmem:[#allocation3 + $0x20] sm:$0x1] %vm582, %v561
    %vm584 = vcmask 57344
    %585 = vst.msk [vmem:[#allocation3 + $0x28] sm:$0x1] %vm584, %v561
    %586 = vst.msk [vmem:[#allocation3 + $0x30] sm:$0xfe] %vm574, %v563
    %587 = vst.msk [vmem:[#allocation3 + $0x38] sm:$0xfe] %vm576, %v563
    %588 = vst.msk [vmem:[#allocation3 + $0x40] sm:$0xff] %vm578, %v565
    %589 = vst.msk [vmem:[#allocation3 + $0x48] sm:$0xff] %vm580, %v565
    %590 = vst.msk [vmem:[#allocation3 + $0x50] sm:$0x1] %vm582, %v567
    %591 = vst.msk [vmem:[#allocation3 + $0x58] sm:$0x1] %vm584, %v567
    %v592 = vld [vmem:[#allocation3] sm:$0xff]
    %v593 = vld [vmem:[#allocation3 + $0x8] sm:$0xff]
    %v594 = vld [vmem:[#allocation3 + $0x10] sm:$0xff]
    %v595 = vld [vmem:[#allocation3 + $0x18] sm:$0xff]
    %v596 = vld [vmem:[#allocation3 + $0x20] sm:$0x3]
    %v597 = vld [vmem:[#allocation3 + $0x28] sm:$0x3]
    %v598 = vld [vmem:[#allocation3 + $0x30] sm:$0xff]
    %v599 = vld [vmem:[#allocation3 + $0x38] sm:$0xff]
    %v600 = vld [vmem:[#allocation3 + $0x40] sm:$0xff]
    %v601 = vld [vmem:[#allocation3 + $0x48] sm:$0xff]
    %v602 = vld [vmem:[#allocation3 + $0x50] sm:$0x3]
    %v603 = vld [vmem:[#allocation3 + $0x58] sm:$0x3]
    %v604 = vld [vmem:[%s3] sm:$0xff]
    %v605 = vld [vmem:[%s3 + $0x8] sm:$0xff]
    %v606 = vld [vmem:[%s3 + $0x10] sm:$0xff]
    %v607 = vld [vmem:[%s3 + $0x18] sm:$0xff]
    %v608 = vld [vmem:[%s3 + $0x20] sm:$0xff]
    %v609 = vld [vmem:[%s3 + $0x28] sm:$0xff]
    %v610 = vld [vmem:[%s3 + $0x30] sm:$0xff]
    %v611 = vld [vmem:[%s3 + $0x38] sm:$0xff]
    %v612 = vld [vmem:[%s3 + $0x40] sm:$0xff]
    %v613 = vld [vmem:[%s3 + $0x48] sm:$0xff]
    %v614 = vld [vmem:[%s3 + $0x50] sm:$0xff]
    %v615 = vld [vmem:[%s3 + $0x58] sm:$0xff]
    %v616 = vld [vmem:[%s3 + $0x60] sm:$0xff]
    %v617 = vld [vmem:[%s3 + $0x68] sm:$0xff]
    %v618 = vld [vmem:[%s3 + $0x70] sm:$0xff]
    %v619 = vld [vmem:[%s3 + $0x78] sm:$0xff]
    %v620 = vld [vmem:[%s3 + $0x80] sm:$0xff]
    %v621 = vld [vmem:[%s3 + $0x88] sm:$0xff]
    %v622 = vld [vmem:[%s3 + $0x90] sm:$0xff]
    %v623 = vld [vmem:[%s3 + $0x98] sm:$0xff]
    %v624 = vld [vmem:[%s3 + $0xa0] sm:$0xff]
    %v625 = vld [vmem:[%s3 + $0xa8] sm:$0xff]
    %v626 = vld [vmem:[%s3 + $0xb0] sm:$0xff]
    %v627 = vld [vmem:[%s3 + $0xb8] sm:$0xff]
    %v628 = vld [vmem:[%s3 + $0xc0] sm:$0xff]
    %v629 = vld [vmem:[%s3 + $0xc8] sm:$0xff]
    %v630 = vld [vmem:[%s3 + $0xd0] sm:$0xff]
    %v631 = vld [vmem:[%s3 + $0xd8] sm:$0xff]
    %v632 = vld [vmem:[%s3 + $0xe0] sm:$0xff]
    %v633 = vld [vmem:[%s3 + $0xe8] sm:$0xff]
    %v634 = vld [vmem:[%s3 + $0xf0] sm:$0xff]
    %v635 = vld [vmem:[%s3 + $0xf8] sm:$0xff]
    %v636 = vld [vmem:[%s3 + $0x100] sm:$0xff]
    %v637 = vld [vmem:[%s3 + $0x108] sm:$0xff]
    %v638 = vld [vmem:[%s3 + $0x110] sm:$0xff]
    %v639 = vld [vmem:[%s3 + $0x118] sm:$0xff]
    %v640 = vld [vmem:[%s3 + $0x120] sm:$0xff]
    %v641 = vld [vmem:[%s3 + $0x128] sm:$0xff]
    %v642 = vld [vmem:[%s3 + $0x130] sm:$0xff]
    %v643 = vld [vmem:[%s3 + $0x138] sm:$0xff]
    %v644 = vld [vmem:[%s3 + $0x140] sm:$0xff]
    %v645 = vld [vmem:[%s3 + $0x148] sm:$0xff]
    %v646 = vld [vmem:[%s3 + $0x150] sm:$0xff]
    %v647 = vld [vmem:[%s3 + $0x158] sm:$0xff]
    %v648 = vld [vmem:[%s3 + $0x160] sm:$0xff]
    %v649 = vld [vmem:[%s3 + $0x168] sm:$0xff]
    %v650 = vld [vmem:[%s3 + $0x170] sm:$0xff]
    %v651 = vld [vmem:[%s3 + $0x178] sm:$0xff]
    %v652 = vld [vmem:[%s3 + $0x180] sm:$0xff]
    %v653 = vld [vmem:[%s3 + $0x188] sm:$0xff]
    %v654 = vld [vmem:[%s3 + $0x190] sm:$0xff]
    %v655 = vld [vmem:[%s3 + $0x198] sm:$0xff]
    %v656 = vld [vmem:[%s3 + $0x1a0] sm:$0xff]
    %v657 = vld [vmem:[%s3 + $0x1a8] sm:$0xff]
    %v666 = vcombine.low %v592, %v593
    %v667 = vcombine.high %v592, %v593
    %v669 = vunpack.c.l.s4 1983009808
    %v670 = vunpack.c.0.s8 %v669
    %v671 = vlaneseq
    %v672 = vshrl.u32 %v671, 7
    %v673 = vsub.s32 %v670, %v672
    %v674 = vrot.slane %v666, %v673
    %v676 = vunpack.c.l.s4 1983009808
    %v677 = vunpack.c.0.s8 %v676
    %v678 = vlaneseq
    %v679 = vshrl.u32 %v678, 7
    %v680 = vsub.s32 %v677, %v679
    %v681 = vrot.slane %v667, %v680
    %v682 = vcombine.high %v674, %v674
    %v683 = vcombine.high %v681, %v681
    %v684 = vcombine.low %v594, %v595
    %v685 = vcombine.high %v594, %v595
    %v687 = vunpack.c.l.s4 1983009808
    %v688 = vunpack.c.0.s8 %v687
    %v689 = vlaneseq
    %v690 = vshrl.u32 %v689, 7
    %v691 = vsub.s32 %v688, %v690
    %v692 = vrot.slane %v684, %v691
    %v694 = vunpack.c.l.s4 1983009808
    %v695 = vunpack.c.0.s8 %v694
    %v696 = vlaneseq
    %v697 = vshrl.u32 %v696, 7
    %v698 = vsub.s32 %v695, %v697
    %v699 = vrot.slane %v685, %v698
    %v700 = vcombine.high %v692, %v692
    %v701 = vcombine.high %v699, %v699
    %v702 = vcombine.low %v598, %v599
    %v703 = vcombine.high %v598, %v599
    %v705 = vunpack.c.l.s4 1983009808
    %v706 = vunpack.c.0.s8 %v705
    %v707 = vlaneseq
    %v708 = vshrl.u32 %v707, 7
    %v709 = vsub.s32 %v706, %v708
    %v710 = vrot.slane %v702, %v709
    %v712 = vunpack.c.l.s4 1983009808
    %v713 = vunpack.c.0.s8 %v712
    %v714 = vlaneseq
    %v715 = vshrl.u32 %v714, 7
    %v716 = vsub.s32 %v713, %v715
    %v717 = vrot.slane %v703, %v716
    %v718 = vcombine.high %v710, %v710
    %v719 = vcombine.high %v717, %v717
    %v720 = vcombine.low %v600, %v601
    %v721 = vcombine.high %v600, %v601
    %v723 = vunpack.c.l.s4 1983009808
    %v724 = vunpack.c.0.s8 %v723
    %v725 = vlaneseq
    %v726 = vshrl.u32 %v725, 7
    %v727 = vsub.s32 %v724, %v726
    %v728 = vrot.slane %v720, %v727
    %v730 = vunpack.c.l.s4 1983009808
    %v731 = vunpack.c.0.s8 %v730
    %v732 = vlaneseq
    %v733 = vshrl.u32 %v732, 7
    %v734 = vsub.s32 %v731, %v733
    %v735 = vrot.slane %v721, %v734
    %v736 = vcombine.high %v728, %v728
    %v737 = vcombine.high %v735, %v735
    %v742 = vcombine.low %v596, %v597
    %v744 = vunpack.c.l.s4 1983009808
    %v745 = vunpack.c.0.s8 %v744
    %v746 = vlaneseq
    %v747 = vshrl.u32 %v746, 7
    %v748 = vsub.s32 %v745, %v747
    %v749 = vrot.slane %v742, %v748
    %v750 = vcombine.low %v602, %v603
    %v752 = vunpack.c.l.s4 1983009808
    %v753 = vunpack.c.0.s8 %v752
    %v754 = vlaneseq
    %v755 = vshrl.u32 %v754, 7
    %v756 = vsub.s32 %v753, %v755
    %v757 = vrot.slane %v750, %v756
    %vm758 = vcmask 1042434
    %vm759 = vmor %vm549, %vm758
    %vm760 = vcmask 1044484
    %vm761 = vmor %vm759, %vm760
    %vm762 = vcmask 1046534
    %vm763 = vmor %vm761, %vm762
    %v764 = vrot.slane %v674, 7
    %v765 = vrot.slane %v764, 2
    %v766 = vrot.slane %v682, 7
    %v767 = vsel %vm763, %v765, %v766
    %v768 = vrot.slane %v766, 2
    %v769 = vrot.slane %v681, 7
    %v770 = vsel %vm763, %v768, %v769
    %v771 = vrot.slane %v769, 2
    %v772 = vrot.slane %v683, 7
    %v773 = vsel %vm763, %v771, %v772
    %v774 = vrot.slane %v772, 2
    %v775 = vrot.slane %v692, 7
    %v776 = vsel %vm763, %v774, %v775
    %v777 = vrot.slane %v775, 2
    %v778 = vrot.slane %v700, 7
    %v779 = vsel %vm763, %v777, %v778
    %v780 = vrot.slane %v778, 2
    %v781 = vrot.slane %v699, 7
    %v782 = vsel %vm763, %v780, %v781
    %v783 = vrot.slane %v781, 2
    %v784 = vrot.slane %v701, 7
    %v785 = vsel %vm763, %v783, %v784
    %v786 = vrot.slane %v784, 2
    %v787 = vrot.slane %v749, 7
    %v788 = vsel %vm763, %v786, %v787
    %v789 = vrot.slane %v710, 7
    %v790 = vrot.slane %v789, 2
    %v791 = vrot.slane %v718, 7
    %v792 = vsel %vm763, %v790, %v791
    %v793 = vrot.slane %v791, 2
    %v794 = vrot.slane %v717, 7
    %v795 = vsel %vm763, %v793, %v794
    %v796 = vrot.slane %v794, 2
    %v797 = vrot.slane %v719, 7
    %v798 = vsel %vm763, %v796, %v797
    %v799 = vrot.slane %v797, 2
    %v800 = vrot.slane %v728, 7
    %v801 = vsel %vm763, %v799, %v800
    %v802 = vrot.slane %v800, 2
    %v803 = vrot.slane %v736, 7
    %v804 = vsel %vm763, %v802, %v803
    %v805 = vrot.slane %v803, 2
    %v806 = vrot.slane %v735, 7
    %v807 = vsel %vm763, %v805, %v806
    %v808 = vrot.slane %v806, 2
    %v809 = vrot.slane %v737, 7
    %v810 = vsel %vm763, %v808, %v809
    %v811 = vrot.slane %v809, 2
    %v812 = vrot.slane %v757, 7
    %v813 = vsel %vm763, %v811, %v812
    %v814 = vlaneseq
    %v815 = vshrl.u32 %v814, 7
    %v816 = vsub.s32 0, %v815
    %v817 = vrot.slane %v767, %v816
    %v818 = vlaneseq
    %v819 = vshrl.u32 %v818, 7
    %v820 = vsub.s32 2, %v819
    %v821 = vrot.slane %v767, %v820
    %v822 = vlaneseq
    %v823 = vshrl.u32 %v822, 7
    %v824 = vsub.s32 0, %v823
    %v825 = vrot.slane %v770, %v824
    %v826 = vlaneseq
    %v827 = vshrl.u32 %v826, 7
    %v828 = vsub.s32 2, %v827
    %v829 = vrot.slane %v770, %v828
    %v830 = vlaneseq
    %v831 = vshrl.u32 %v830, 7
    %v832 = vsub.s32 0, %v831
    %v833 = vrot.slane %v773, %v832
    %v834 = vlaneseq
    %v835 = vshrl.u32 %v834, 7
    %v836 = vsub.s32 2, %v835
    %v837 = vrot.slane %v773, %v836
    %v838 = vlaneseq
    %v839 = vshrl.u32 %v838, 7
    %v840 = vsub.s32 0, %v839
    %v841 = vrot.slane %v776, %v840
    %v842 = vlaneseq
    %v843 = vshrl.u32 %v842, 7
    %v844 = vsub.s32 2, %v843
    %v845 = vrot.slane %v776, %v844
    %v846 = vlaneseq
    %v847 = vshrl.u32 %v846, 7
    %v848 = vsub.s32 0, %v847
    %v849 = vrot.slane %v779, %v848
    %v850 = vlaneseq
    %v851 = vshrl.u32 %v850, 7
    %v852 = vsub.s32 2, %v851
    %v853 = vrot.slane %v779, %v852
    %v854 = vlaneseq
    %v855 = vshrl.u32 %v854, 7
    %v856 = vsub.s32 0, %v855
    %v857 = vrot.slane %v782, %v856
    %v858 = vlaneseq
    %v859 = vshrl.u32 %v858, 7
    %v860 = vsub.s32 2, %v859
    %v861 = vrot.slane %v782, %v860
    %v862 = vlaneseq
    %v863 = vshrl.u32 %v862, 7
    %v864 = vsub.s32 0, %v863
    %v865 = vrot.slane %v785, %v864
    %v866 = vlaneseq
    %v867 = vshrl.u32 %v866, 7
    %v868 = vsub.s32 2, %v867
    %v869 = vrot.slane %v785, %v868
    %v870 = vlaneseq
    %v871 = vshrl.u32 %v870, 7
    %v872 = vsub.s32 0, %v871
    %v873 = vrot.slane %v788, %v872
    %v874 = vlaneseq
    %v875 = vshrl.u32 %v874, 7
    %v876 = vsub.s32 2, %v875
    %v877 = vrot.slane %v788, %v876
    %v878 = vlaneseq
    %v879 = vshrl.u32 %v878, 7
    %v880 = vsub.s32 0, %v879
    %v881 = vrot.slane %v792, %v880
    %v882 = vlaneseq
    %v883 = vshrl.u32 %v882, 7
    %v884 = vsub.s32 2, %v883
    %v885 = vrot.slane %v792, %v884
    %v886 = vlaneseq
    %v887 = vshrl.u32 %v886, 7
    %v888 = vsub.s32 0, %v887
    %v889 = vrot.slane %v795, %v888
    %v890 = vlaneseq
    %v891 = vshrl.u32 %v890, 7
    %v892 = vsub.s32 2, %v891
    %v893 = vrot.slane %v795, %v892
    %v894 = vlaneseq
    %v895 = vshrl.u32 %v894, 7
    %v896 = vsub.s32 0, %v895
    %v897 = vrot.slane %v798, %v896
    %v898 = vlaneseq
    %v899 = vshrl.u32 %v898, 7
    %v900 = vsub.s32 2, %v899
    %v901 = vrot.slane %v798, %v900
    %v902 = vlaneseq
    %v903 = vshrl.u32 %v902, 7
    %v904 = vsub.s32 0, %v903
    %v905 = vrot.slane %v801, %v904
    %v906 = vlaneseq
    %v907 = vshrl.u32 %v906, 7
    %v908 = vsub.s32 2, %v907
    %v909 = vrot.slane %v801, %v908
    %v910 = vlaneseq
    %v911 = vshrl.u32 %v910, 7
    %v912 = vsub.s32 0, %v911
    %v913 = vrot.slane %v804, %v912
    %v914 = vlaneseq
    %v915 = vshrl.u32 %v914, 7
    %v916 = vsub.s32 2, %v915
    %v917 = vrot.slane %v804, %v916
    %v918 = vlaneseq
    %v919 = vshrl.u32 %v918, 7
    %v920 = vsub.s32 0, %v919
    %v921 = vrot.slane %v807, %v920
    %v922 = vlaneseq
    %v923 = vshrl.u32 %v922, 7
    %v924 = vsub.s32 2, %v923
    %v925 = vrot.slane %v807, %v924
    %v926 = vlaneseq
    %v927 = vshrl.u32 %v926, 7
    %v928 = vsub.s32 0, %v927
    %v929 = vrot.slane %v810, %v928
    %v930 = vlaneseq
    %v931 = vshrl.u32 %v930, 7
    %v932 = vsub.s32 2, %v931
    %v933 = vrot.slane %v810, %v932
    %v934 = vlaneseq
    %v935 = vshrl.u32 %v934, 7
    %v936 = vsub.s32 0, %v935
    %v937 = vrot.slane %v813, %v936
    %v938 = vlaneseq
    %v939 = vshrl.u32 %v938, 7
    %v940 = vsub.s32 2, %v939
    %v941 = vrot.slane %v813, %v940
    %vm942 = vcmask 1041409
    %v943 = vsel %vm942, %v825, %v817
    %v944 = vsel %vm758, %v833, %v943
    %vm945 = vcmask 1043459
    %v946 = vsel %vm945, %v841, %v944
    %v947 = vsel %vm760, %v849, %v946
    %vm948 = vcmask 1045509
    %v949 = vsel %vm948, %v857, %v947
    %v950 = vsel %vm762, %v865, %v949
    %vm951 = vcmask 1047559
    %v952 = vsel %vm951, %v873, %v950
    %v953 = vsel %vm942, %v829, %v821
    %v954 = vsel %vm758, %v837, %v953
    %v955 = vsel %vm945, %v845, %v954
    %v956 = vsel %vm760, %v853, %v955
    %v957 = vsel %vm948, %v861, %v956
    %v958 = vsel %vm762, %v869, %v957
    %v959 = vsel %vm951, %v877, %v958
    %v960 = vsel %vm942, %v889, %v881
    %v961 = vsel %vm758, %v897, %v960
    %v962 = vsel %vm945, %v905, %v961
    %v963 = vsel %vm760, %v913, %v962
    %v964 = vsel %vm948, %v921, %v963
    %v965 = vsel %vm762, %v929, %v964
    %v966 = vsel %vm951, %v937, %v965
    %v967 = vsel %vm942, %v893, %v885
    %v968 = vsel %vm758, %v901, %v967
    %v969 = vsel %vm945, %v909, %v968
    %v970 = vsel %vm760, %v917, %v969
    %v971 = vsel %vm948, %v925, %v970
    %v972 = vsel %vm762, %v933, %v971
    %v973 = vsel %vm951, %v941, %v972
    %v976 = vsel %vm532, %v959, 0
    %v978 = vsel %vm532, %v973, 0
    %980 = vmatprep.subr.mxu0 0.0
    %981 = vmatpush1.msra.mxu0 %v637
    %982 = vmatprep.subr.mxu0 0.0
    %983 = vmatpush1.msra.mxu0 %v636
    %984 = vmatprep.subr.mxu0 0.0
    %985 = vmatpush1.msra.mxu0 %v635
    %986 = vmatprep.subr.mxu0 0.0
    %987 = vmatpush1.msra.mxu0 %v634
    %988 = vmatprep.subr.mxu0 0.0
    %989 = vmatpush1.msra.mxu0 %v633
    %990 = vmatprep.subr.mxu0 0.0
    %991 = vmatpush1.msra.mxu0 %v632
    %992 = vmatprep.subr.mxu0 0.0
    %993 = vmatpush1.msra.mxu0 %v631
    %994 = vmatprep.subr.mxu0 0.0
    %995 = vmatpush1.msra.mxu0 %v630
    %996 = vmatprep.subr.mxu0 0.0
    %997 = vmatpush1.msra.mxu0 %v629
    %998 = vmatprep.subr.mxu0 0.0
    %999 = vmatpush1.msra.mxu0 %v628
    %1000 = vmatprep.subr.mxu0 0.0
    %1001 = vmatpush1.msra.mxu0 %v627
    %1002 = vmatprep.subr.mxu0 0.0
    %1003 = vmatpush1.msra.mxu0 %v626
    %1004 = vmatprep.subr.mxu0 0.0
    %1005 = vmatpush1.msra.mxu0 %v625
    %1006 = vmatprep.subr.mxu0 0.0
    %1007 = vmatpush1.msra.mxu0 %v624
    %1008 = vmatprep.subr.mxu0 0.0
    %1009 = vmatpush1.msra.mxu0 %v623
    %1010 = vmatprep.subr.mxu0 0.0
    %1011 = vmatpush1.msra.mxu0 %v622
    %1012 = vmatprep.subr.mxu0 0.0
    %1013 = vmatpush2.msra.mxu0 0.0
    %1014 = vmatprep.subr.mxu0 0.0
    %1015 = vmatpush2.msra.mxu0 0.0
    %1016 = vmatprep.subr.mxu0 0.0
    %1017 = vmatpush2.msra.mxu0 0.0
    %1018 = vmatprep.subr.mxu0 0.0
    %1019 = vmatpush2.msra.mxu0 0.0
    %1020 = vmatprep.subr.mxu0 0.0
    %1021 = vmatpush2.msra.mxu0 0.0
    %1022 = vmatprep.subr.mxu0 0.0
    %1023 = vmatpush2.msra.mxu0 0.0
    %1024 = vmatprep.subr.mxu0 0.0
    %1025 = vmatpush2.msra.mxu0 0.0
    %1026 = vmatprep.subr.mxu0 0.0
    %1027 = vmatpush2.msra.mxu0 0.0
    %1028 = vmatprep.subr.mxu0 0.0
    %1029 = vmatpush2.msra.mxu0 0.0
    %1030 = vmatprep.subr.mxu0 0.0
    %1031 = vmatpush2.msra.mxu0 0.0
    %1032 = vmatprep.subr.mxu0 0.0
    %1033 = vmatpush2.msra.mxu0 0.0
    %1034 = vmatprep.subr.mxu0 0.0
    %1035 = vmatpush2.msra.mxu0 0.0
    %1036 = vmatprep.subr.mxu0 0.0
    %1037 = vmatpush2.msra.mxu0 0.0
    %1038 = vmatprep.subr.mxu0 0.0
    %1039 = vmatpush2.msra.mxu0 0.0
    %1040 = vmatprep.subr.mxu0 0.0
    %1041 = vmatpush2.msra.mxu0 %v639
    %1042 = vmatprep.subr.mxu0 0.0
    %1043 = vmatpush2.msra.mxu0 %v638
    %1044 = vmatprep.mubr.f32.mxu0 %v976
    %1045 = vmatmul.mubr.f32.gmra.mxu0 %v952
    %v1046 = vpop.f32.mrf.mxu0
    %v1047 = vadd.f32 0.0, %v1046
    %v1048 = vpop.f32.mrf.mxu0
    %1049 = vmatprep.mubr.f32.mxu0 %v978
    %1050 = vmatmul.mubr.f32.gmra.mxu0 %v966
    %v1051 = vpop.f32.mrf.mxu0
    %v1052 = vadd.f32 0.0, %v1051
    %v1053 = vpop.f32.mrf.mxu0
    %1054 = vdwg.mxu0
    %v1055 = vlaneseq
    %v1056 = vshrl.u32 %v1055, 7
    %v1057 = vsub.s32 0, %v1056
    %v1058 = vrot.slane %v674, %v1057
    %v1059 = vlaneseq
    %v1060 = vshrl.u32 %v1059, 7
    %v1061 = vsub.s32 2, %v1060
    %v1062 = vrot.slane %v674, %v1061
    %v1063 = vlaneseq
    %v1064 = vshrl.u32 %v1063, 7
    %v1065 = vsub.s32 0, %v1064
    %v1066 = vrot.slane %v682, %v1065
    %v1067 = vlaneseq
    %v1068 = vshrl.u32 %v1067, 7
    %v1069 = vsub.s32 2, %v1068
    %v1070 = vrot.slane %v682, %v1069
    %v1071 = vlaneseq
    %v1072 = vshrl.u32 %v1071, 7
    %v1073 = vsub.s32 0, %v1072
    %v1074 = vrot.slane %v681, %v1073
    %v1075 = vlaneseq
    %v1076 = vshrl.u32 %v1075, 7
    %v1077 = vsub.s32 2, %v1076
    %v1078 = vrot.slane %v681, %v1077
    %v1079 = vlaneseq
    %v1080 = vshrl.u32 %v1079, 7
    %v1081 = vsub.s32 0, %v1080
    %v1082 = vrot.slane %v683, %v1081
    %v1083 = vlaneseq
    %v1084 = vshrl.u32 %v1083, 7
    %v1085 = vsub.s32 2, %v1084
    %v1086 = vrot.slane %v683, %v1085
    %v1087 = vlaneseq
    %v1088 = vshrl.u32 %v1087, 7
    %v1089 = vsub.s32 0, %v1088
    %v1090 = vrot.slane %v692, %v1089
    %v1091 = vlaneseq
    %v1092 = vshrl.u32 %v1091, 7
    %v1093 = vsub.s32 2, %v1092
    %v1094 = vrot.slane %v692, %v1093
    %v1095 = vlaneseq
    %v1096 = vshrl.u32 %v1095, 7
    %v1097 = vsub.s32 0, %v1096
    %v1098 = vrot.slane %v700, %v1097
    %v1099 = vlaneseq
    %v1100 = vshrl.u32 %v1099, 7
    %v1101 = vsub.s32 2, %v1100
    %v1102 = vrot.slane %v700, %v1101
    %v1103 = vlaneseq
    %v1104 = vshrl.u32 %v1103, 7
    %v1105 = vsub.s32 0, %v1104
    %v1106 = vrot.slane %v699, %v1105
    %v1107 = vlaneseq
    %v1108 = vshrl.u32 %v1107, 7
    %v1109 = vsub.s32 2, %v1108
    %v1110 = vrot.slane %v699, %v1109
    %v1111 = vlaneseq
    %v1112 = vshrl.u32 %v1111, 7
    %v1113 = vsub.s32 0, %v1112
    %v1114 = vrot.slane %v701, %v1113
    %v1115 = vlaneseq
    %v1116 = vshrl.u32 %v1115, 7
    %v1117 = vsub.s32 2, %v1116
    %v1118 = vrot.slane %v701, %v1117
    %v1119 = vlaneseq
    %v1120 = vshrl.u32 %v1119, 7
    %v1121 = vsub.s32 0, %v1120
    %v1122 = vrot.slane %v710, %v1121
    %v1123 = vlaneseq
    %v1124 = vshrl.u32 %v1123, 7
    %v1125 = vsub.s32 2, %v1124
    %v1126 = vrot.slane %v710, %v1125
    %v1127 = vlaneseq
    %v1128 = vshrl.u32 %v1127, 7
    %v1129 = vsub.s32 0, %v1128
    %v1130 = vrot.slane %v718, %v1129
    %v1131 = vlaneseq
    %v1132 = vshrl.u32 %v1131, 7
    %v1133 = vsub.s32 2, %v1132
    %v1134 = vrot.slane %v718, %v1133
    %v1135 = vlaneseq
    %v1136 = vshrl.u32 %v1135, 7
    %v1137 = vsub.s32 0, %v1136
    %v1138 = vrot.slane %v717, %v1137
    %v1139 = vlaneseq
    %v1140 = vshrl.u32 %v1139, 7
    %v1141 = vsub.s32 2, %v1140
    %v1142 = vrot.slane %v717, %v1141
    %v1143 = vlaneseq
    %v1144 = vshrl.u32 %v1143, 7
    %v1145 = vsub.s32 0, %v1144
    %v1146 = vrot.slane %v719, %v1145
    %v1147 = vlaneseq
    %v1148 = vshrl.u32 %v1147, 7
    %v1149 = vsub.s32 2, %v1148
    %v1150 = vrot.slane %v719, %v1149
    %v1151 = vlaneseq
    %v1152 = vshrl.u32 %v1151, 7
    %v1153 = vsub.s32 0, %v1152
    %v1154 = vrot.slane %v728, %v1153
    %v1155 = vlaneseq
    %v1156 = vshrl.u32 %v1155, 7
    %v1157 = vsub.s32 2, %v1156
    %v1158 = vrot.slane %v728, %v1157
    %v1159 = vlaneseq
    %v1160 = vshrl.u32 %v1159, 7
    %v1161 = vsub.s32 0, %v1160
    %v1162 = vrot.slane %v736, %v1161
    %v1163 = vlaneseq
    %v1164 = vshrl.u32 %v1163, 7
    %v1165 = vsub.s32 2, %v1164
    %v1166 = vrot.slane %v736, %v1165
    %v1167 = vlaneseq
    %v1168 = vshrl.u32 %v1167, 7
    %v1169 = vsub.s32 0, %v1168
    %v1170 = vrot.slane %v735, %v1169
    %v1171 = vlaneseq
    %v1172 = vshrl.u32 %v1171, 7
    %v1173 = vsub.s32 2, %v1172
    %v1174 = vrot.slane %v735, %v1173
    %v1175 = vlaneseq
    %v1176 = vshrl.u32 %v1175, 7
    %v1177 = vsub.s32 0, %v1176
    %v1178 = vrot.slane %v737, %v1177
    %v1179 = vlaneseq
    %v1180 = vshrl.u32 %v1179, 7
    %v1181 = vsub.s32 2, %v1180
    %v1182 = vrot.slane %v737, %v1181
    %v1183 = vsel %vm942, %v1066, %v1058
    %v1184 = vsel %vm758, %v1074, %v1183
    %v1185 = vsel %vm945, %v1082, %v1184
    %v1186 = vsel %vm760, %v1090, %v1185
    %v1187 = vsel %vm948, %v1098, %v1186
    %v1188 = vsel %vm762, %v1106, %v1187
    %v1189 = vsel %vm951, %v1114, %v1188
    %v1190 = vsel %vm942, %v1070, %v1062
    %v1191 = vsel %vm758, %v1078, %v1190
    %v1192 = vsel %vm945, %v1086, %v1191
    %v1193 = vsel %vm760, %v1094, %v1192
    %v1194 = vsel %vm948, %v1102, %v1193
    %v1195 = vsel %vm762, %v1110, %v1194
    %v1196 = vsel %vm951, %v1118, %v1195
    %v1197 = vsel %vm942, %v1130, %v1122
    %v1198 = vsel %vm758, %v1138, %v1197
    %v1199 = vsel %vm945, %v1146, %v1198
    %v1200 = vsel %vm760, %v1154, %v1199
    %v1201 = vsel %vm948, %v1162, %v1200
    %v1202 = vsel %vm762, %v1170, %v1201
    %v1203 = vsel %vm951, %v1178, %v1202
    %v1204 = vsel %vm942, %v1134, %v1126
    %v1205 = vsel %vm758, %v1142, %v1204
    %v1206 = vsel %vm945, %v1150, %v1205
    %v1207 = vsel %vm760, %v1158, %v1206
    %v1208 = vsel %vm948, %v1166, %v1207
    %v1209 = vsel %vm762, %v1174, %v1208
    %v1210 = vsel %vm951, %v1182, %v1209
    %v1213 = vsel %vm532, %v1196, 0
    %v1215 = vsel %vm532, %v1210, 0
    %1217 = vmatprep.subr.mxu0 0.0
    %1218 = vmatpush1.msra.mxu0 %v619
    %1219 = vmatprep.subr.mxu0 0.0
    %1220 = vmatpush1.msra.mxu0 %v618
    %1221 = vmatprep.subr.mxu0 0.0
    %1222 = vmatpush1.msra.mxu0 %v617
    %1223 = vmatprep.subr.mxu0 0.0
    %1224 = vmatpush1.msra.mxu0 %v616
    %1225 = vmatprep.subr.mxu0 0.0
    %1226 = vmatpush1.msra.mxu0 %v615
    %1227 = vmatprep.subr.mxu0 0.0
    %1228 = vmatpush1.msra.mxu0 %v614
    %1229 = vmatprep.subr.mxu0 0.0
    %1230 = vmatpush1.msra.mxu0 %v613
    %1231 = vmatprep.subr.mxu0 0.0
    %1232 = vmatpush1.msra.mxu0 %v612
    %1233 = vmatprep.subr.mxu0 0.0
    %1234 = vmatpush1.msra.mxu0 %v611
    %1235 = vmatprep.subr.mxu0 0.0
    %1236 = vmatpush1.msra.mxu0 %v610
    %1237 = vmatprep.subr.mxu0 0.0
    %1238 = vmatpush1.msra.mxu0 %v609
    %1239 = vmatprep.subr.mxu0 0.0
    %1240 = vmatpush1.msra.mxu0 %v608
    %1241 = vmatprep.subr.mxu0 0.0
    %1242 = vmatpush1.msra.mxu0 %v607
    %1243 = vmatprep.subr.mxu0 0.0
    %1244 = vmatpush1.msra.mxu0 %v606
    %1245 = vmatprep.subr.mxu0 0.0
    %1246 = vmatpush1.msra.mxu0 %v605
    %1247 = vmatprep.subr.mxu0 0.0
    %1248 = vmatpush1.msra.mxu0 %v604
    %1249 = vmatprep.subr.mxu0 0.0
    %1250 = vmatpush2.msra.mxu0 0.0
    %1251 = vmatprep.subr.mxu0 0.0
    %1252 = vmatpush2.msra.mxu0 0.0
    %1253 = vmatprep.subr.mxu0 0.0
    %1254 = vmatpush2.msra.mxu0 0.0
    %1255 = vmatprep.subr.mxu0 0.0
    %1256 = vmatpush2.msra.mxu0 0.0
    %1257 = vmatprep.subr.mxu0 0.0
    %1258 = vmatpush2.msra.mxu0 0.0
    %1259 = vmatprep.subr.mxu0 0.0
    %1260 = vmatpush2.msra.mxu0 0.0
    %1261 = vmatprep.subr.mxu0 0.0
    %1262 = vmatpush2.msra.mxu0 0.0
    %1263 = vmatprep.subr.mxu0 0.0
    %1264 = vmatpush2.msra.mxu0 0.0
    %1265 = vmatprep.subr.mxu0 0.0
    %1266 = vmatpush2.msra.mxu0 0.0
    %1267 = vmatprep.subr.mxu0 0.0
    %1268 = vmatpush2.msra.mxu0 0.0
    %1269 = vmatprep.subr.mxu0 0.0
    %1270 = vmatpush2.msra.mxu0 0.0
    %1271 = vmatprep.subr.mxu0 0.0
    %1272 = vmatpush2.msra.mxu0 0.0
    %1273 = vmatprep.subr.mxu0 0.0
    %1274 = vmatpush2.msra.mxu0 0.0
    %1275 = vmatprep.subr.mxu0 0.0
    %1276 = vmatpush2.msra.mxu0 0.0
    %1277 = vmatprep.subr.mxu0 0.0
    %1278 = vmatpush2.msra.mxu0 %v621
    %1279 = vmatprep.subr.mxu0 0.0
    %1280 = vmatpush2.msra.mxu0 %v620
    %1281 = vmatprep.mubr.f32.mxu0 %v1213
    %1282 = vmatmul.mubr.f32.gmra.mxu0 %v1189
    %v1283 = vpop.f32.mrf.mxu0
    %v1284 = vadd.f32 %v1047, %v1283
    %v1285 = vpop.f32.mrf.mxu0
    %1286 = vmatprep.mubr.f32.mxu0 %v1215
    %1287 = vmatmul.mubr.f32.gmra.mxu0 %v1203
    %v1288 = vpop.f32.mrf.mxu0
    %v1289 = vadd.f32 %v1052, %v1288
    %v1290 = vpop.f32.mrf.mxu0
    %1291 = vdwg.mxu0
    %v1292 = vlaneseq
    %v1293 = vshrl.u32 %v1292, 7
    %v1294 = vsub.s32 0, %v1293
    %v1295 = vrot.slane %v749, %v1294
    %v1296 = vlaneseq
    %v1297 = vshrl.u32 %v1296, 7
    %v1298 = vsub.s32 2, %v1297
    %v1299 = vrot.slane %v749, %v1298
    %v1300 = vlaneseq
    %v1301 = vshrl.u32 %v1300, 7
    %v1302 = vsub.s32 0, %v1301
    %v1303 = vrot.slane %v757, %v1302
    %v1304 = vlaneseq
    %v1305 = vshrl.u32 %v1304, 7
    %v1306 = vsub.s32 2, %v1305
    %v1307 = vrot.slane %v757, %v1306
    %v1308 = vsel %vm942, %v1074, %v1066
    %v1309 = vsel %vm758, %v1082, %v1308
    %v1310 = vsel %vm945, %v1090, %v1309
    %v1311 = vsel %vm760, %v1098, %v1310
    %v1312 = vsel %vm948, %v1106, %v1311
    %v1313 = vsel %vm762, %v1114, %v1312
    %v1314 = vsel %vm951, %v1295, %v1313
    %v1315 = vsel %vm942, %v1078, %v1070
    %v1316 = vsel %vm758, %v1086, %v1315
    %v1317 = vsel %vm945, %v1094, %v1316
    %v1318 = vsel %vm760, %v1102, %v1317
    %v1319 = vsel %vm948, %v1110, %v1318
    %v1320 = vsel %vm762, %v1118, %v1319
    %v1321 = vsel %vm951, %v1299, %v1320
    %v1322 = vsel %vm942, %v1138, %v1130
    %v1323 = vsel %vm758, %v1146, %v1322
    %v1324 = vsel %vm945, %v1154, %v1323
    %v1325 = vsel %vm760, %v1162, %v1324
    %v1326 = vsel %vm948, %v1170, %v1325
    %v1327 = vsel %vm762, %v1178, %v1326
    %v1328 = vsel %vm951, %v1303, %v1327
    %v1329 = vsel %vm942, %v1142, %v1134
    %v1330 = vsel %vm758, %v1150, %v1329
    %v1331 = vsel %vm945, %v1158, %v1330
    %v1332 = vsel %vm760, %v1166, %v1331
    %v1333 = vsel %vm948, %v1174, %v1332
    %v1334 = vsel %vm762, %v1182, %v1333
    %v1335 = vsel %vm951, %v1307, %v1334
    %v1338 = vsel %vm532, %v1321, 0
    %v1340 = vsel %vm532, %v1335, 0
    %1342 = vmatprep.subr.mxu0 0.0
    %1343 = vmatpush1.msra.mxu0 %v655
    %1344 = vmatprep.subr.mxu0 0.0
    %1345 = vmatpush1.msra.mxu0 %v654
    %1346 = vmatprep.subr.mxu0 0.0
    %1347 = vmatpush1.msra.mxu0 %v653
    %1348 = vmatprep.subr.mxu0 0.0
    %1349 = vmatpush1.msra.mxu0 %v652
    %1350 = vmatprep.subr.mxu0 0.0
    %1351 = vmatpush1.msra.mxu0 %v651
    %1352 = vmatprep.subr.mxu0 0.0
    %1353 = vmatpush1.msra.mxu0 %v650
    %1354 = vmatprep.subr.mxu0 0.0
    %1355 = vmatpush1.msra.mxu0 %v649
    %1356 = vmatprep.subr.mxu0 0.0
    %1357 = vmatpush1.msra.mxu0 %v648
    %1358 = vmatprep.subr.mxu0 0.0
    %1359 = vmatpush1.msra.mxu0 %v647
    %1360 = vmatprep.subr.mxu0 0.0
    %1361 = vmatpush1.msra.mxu0 %v646
    %1362 = vmatprep.subr.mxu0 0.0
    %1363 = vmatpush1.msra.mxu0 %v645
    %1364 = vmatprep.subr.mxu0 0.0
    %1365 = vmatpush1.msra.mxu0 %v644
    %1366 = vmatprep.subr.mxu0 0.0
    %1367 = vmatpush1.msra.mxu0 %v643
    %1368 = vmatprep.subr.mxu0 0.0
    %1369 = vmatpush1.msra.mxu0 %v642
    %1370 = vmatprep.subr.mxu0 0.0
    %1371 = vmatpush1.msra.mxu0 %v641
    %1372 = vmatprep.subr.mxu0 0.0
    %1373 = vmatpush1.msra.mxu0 %v640
    %1374 = vmatprep.subr.mxu0 0.0
    %1375 = vmatpush2.msra.mxu0 0.0
    %1376 = vmatprep.subr.mxu0 0.0
    %1377 = vmatpush2.msra.mxu0 0.0
    %1378 = vmatprep.subr.mxu0 0.0
    %1379 = vmatpush2.msra.mxu0 0.0
    %1380 = vmatprep.subr.mxu0 0.0
    %1381 = vmatpush2.msra.mxu0 0.0
    %1382 = vmatprep.subr.mxu0 0.0
    %1383 = vmatpush2.msra.mxu0 0.0
    %1384 = vmatprep.subr.mxu0 0.0
    %1385 = vmatpush2.msra.mxu0 0.0
    %1386 = vmatprep.subr.mxu0 0.0
    %1387 = vmatpush2.msra.mxu0 0.0
    %1388 = vmatprep.subr.mxu0 0.0
    %1389 = vmatpush2.msra.mxu0 0.0
    %1390 = vmatprep.subr.mxu0 0.0
    %1391 = vmatpush2.msra.mxu0 0.0
    %1392 = vmatprep.subr.mxu0 0.0
    %1393 = vmatpush2.msra.mxu0 0.0
    %1394 = vmatprep.subr.mxu0 0.0
    %1395 = vmatpush2.msra.mxu0 0.0
    %1396 = vmatprep.subr.mxu0 0.0
    %1397 = vmatpush2.msra.mxu0 0.0
    %1398 = vmatprep.subr.mxu0 0.0
    %1399 = vmatpush2.msra.mxu0 0.0
    %1400 = vmatprep.subr.mxu0 0.0
    %1401 = vmatpush2.msra.mxu0 0.0
    %1402 = vmatprep.subr.mxu0 0.0
    %1403 = vmatpush2.msra.mxu0 %v657
    %1404 = vmatprep.subr.mxu0 0.0
    %1405 = vmatpush2.msra.mxu0 %v656
    %1406 = vmatprep.mubr.f32.mxu0 %v1338
    %1407 = vmatmul.mubr.f32.gmra.mxu0 %v1314
    %v1408 = vpop.f32.mrf.mxu0
    %v1409 = vadd.f32 0.0, %v1408
    %v1410 = vpop.f32.mrf.mxu0
    %1411 = vmatprep.mubr.f32.mxu0 %v1340
    %1412 = vmatmul.mubr.f32.gmra.mxu0 %v1328
    %v1413 = vpop.f32.mrf.mxu0
    %v1414 = vadd.f32 0.0, %v1413
    %v1415 = vpop.f32.mrf.mxu0
    %1416 = vdwg.mxu0
    %v1417 = vadd.f32 %v1284, %v1409
    %v1418 = vadd.f32 %v1289, %v1414
    %v1419 = vld [vmem:[#allocation9] sm:$0x1]
    %v1421 = vlaneseq
    %v1422 = vshrl.u32 %v1421, 7
    %v1423 = vsub.s32 0, %v1422
    %v1424 = vrot.slane %v1419, %v1423
    %v1426 = vadd.f32 %v1417, %v1424
    %v1427 = vadd.f32 %v1418, %v1424
    %vm1428 = vcmp.gt.f32.partialorder %v1426, 0.0
    %vm1429 = vcmp.gt.f32.partialorder %v1427, 0.0
    %v1430 = vmul.f32 %v1426, 0.1
    %v1431 = vmul.f32 %v1427, 0.1
    %v1432 = vsel %vm1428, %v1426, %v1430
    %v1433 = vsel %vm1429, %v1427, %v1431
    %v1434 = vld [vmem:[%s5] sm:$0xff]
    %v1435 = vld [vmem:[%s5 + $0x8] sm:$0xff]
    %v1436 = vld [vmem:[%s5 + $0x10] sm:$0xff]
    %v1437 = vld [vmem:[%s5 + $0x18] sm:$0xff]
    %v1438 = vld [vmem:[%s5 + $0x20] sm:$0xff]
    %v1439 = vld [vmem:[%s5 + $0x28] sm:$0xff]
    %v1440 = vld [vmem:[%s5 + $0x30] sm:$0xff]
    %v1441 = vld [vmem:[%s5 + $0x38] sm:$0xff]
    %v1442 = vld [vmem:[%s5 + $0x40] sm:$0xff]
    %v1443 = vld [vmem:[%s5 + $0x48] sm:$0xff]
    %v1444 = vld [vmem:[%s5 + $0x50] sm:$0xff]
    %v1445 = vld [vmem:[%s5 + $0x58] sm:$0xff]
    %v1446 = vld [vmem:[%s5 + $0x60] sm:$0xff]
    %v1447 = vld [vmem:[%s5 + $0x68] sm:$0xff]
    %v1448 = vld [vmem:[%s5 + $0x70] sm:$0xff]
    %v1449 = vld [vmem:[%s5 + $0x78] sm:$0xff]
    %v1450 = vld [vmem:[#allocation10] sm:$0x1]
    %v1452 = vlaneseq
    %v1453 = vshrl.u32 %v1452, 7
    %v1454 = vsub.s32 0, %v1453
    %v1455 = vrot.slane %v1450, %v1454
    %1457 = vmatprep.subr.mxu0 0.0
    %1458 = vmatpush1.msra.mxu0 %v1449
    %1459 = vmatprep.subr.mxu0 0.0
    %1460 = vmatpush1.msra.mxu0 %v1448
    %1461 = vmatprep.subr.mxu0 0.0
    %1462 = vmatpush1.msra.mxu0 %v1447
    %1463 = vmatprep.subr.mxu0 0.0
    %1464 = vmatpush1.msra.mxu0 %v1446
    %1465 = vmatprep.subr.mxu0 0.0
    %1466 = vmatpush1.msra.mxu0 %v1445
    %1467 = vmatprep.subr.mxu0 0.0
    %1468 = vmatpush1.msra.mxu0 %v1444
    %1469 = vmatprep.subr.mxu0 0.0
    %1470 = vmatpush1.msra.mxu0 %v1443
    %1471 = vmatprep.subr.mxu0 0.0
    %1472 = vmatpush1.msra.mxu0 %v1442
    %1473 = vmatprep.subr.mxu0 0.0
    %1474 = vmatpush1.msra.mxu0 %v1441
    %1475 = vmatprep.subr.mxu0 0.0
    %1476 = vmatpush1.msra.mxu0 %v1440
    %1477 = vmatprep.subr.mxu0 0.0
    %1478 = vmatpush1.msra.mxu0 %v1439
    %1479 = vmatprep.subr.mxu0 0.0
    %1480 = vmatpush1.msra.mxu0 %v1438
    %1481 = vmatprep.subr.mxu0 0.0
    %1482 = vmatpush1.msra.mxu0 %v1437
    %1483 = vmatprep.subr.mxu0 0.0
    %1484 = vmatpush1.msra.mxu0 %v1436
    %1485 = vmatprep.subr.mxu0 0.0
    %1486 = vmatpush1.msra.mxu0 %v1435
    %1487 = vmatprep.subr.mxu0 0.0
    %1488 = vmatpush1.msra.mxu0 %v1434
    %1489 = vmatprep.subr.mxu0 0.0
    %1490 = vmatpush2.msra.mxu0 0.0
    %1491 = vmatprep.subr.mxu0 0.0
    %1492 = vmatpush2.msra.mxu0 0.0
    %1493 = vmatprep.subr.mxu0 0.0
    %1494 = vmatpush2.msra.mxu0 0.0
    %1495 = vmatprep.subr.mxu0 0.0
    %1496 = vmatpush2.msra.mxu0 0.0
    %1497 = vmatprep.subr.mxu0 0.0
    %1498 = vmatpush2.msra.mxu0 0.0
    %1499 = vmatprep.subr.mxu0 0.0
    %1500 = vmatpush2.msra.mxu0 0.0
    %1501 = vmatprep.subr.mxu0 0.0
    %1502 = vmatpush2.msra.mxu0 0.0
    %1503 = vmatprep.subr.mxu0 0.0
    %1504 = vmatpush2.msra.mxu0 0.0
    %1505 = vmatprep.subr.mxu0 0.0
    %1506 = vmatpush2.msra.mxu0 0.0
    %1507 = vmatprep.subr.mxu0 0.0
    %1508 = vmatpush2.msra.mxu0 0.0
    %1509 = vmatprep.subr.mxu0 0.0
    %1510 = vmatpush2.msra.mxu0 0.0
    %1511 = vmatprep.subr.mxu0 0.0
    %1512 = vmatpush2.msra.mxu0 0.0
    %1513 = vmatprep.subr.mxu0 0.0
    %1514 = vmatpush2.msra.mxu0 0.0
    %1515 = vmatprep.subr.mxu0 0.0
    %1516 = vmatpush2.msra.mxu0 0.0
    %1517 = vmatprep.subr.mxu0 0.0
    %1518 = vmatpush2.msra.mxu0 0.0
    %1519 = vmatprep.subr.mxu0 0.0
    %1520 = vmatpush2.msra.mxu0 0.0
    %1521 = vmatprep.mubr.f32.mxu0 0.0
    %1522 = vmatmul.mubr.f32.gmra.mxu0 %v1432
    %v1523 = vpop.f32.mrf.mxu0
    %v1524 = vadd.f32 %v1455, %v1523
    %v1525 = vpop.f32.mrf.mxu0
    %1526 = vmatprep.mubr.f32.mxu0 0.0
    %1527 = vmatmul.mubr.f32.gmra.mxu0 %v1433
    %v1528 = vpop.f32.mrf.mxu0
    %v1529 = vadd.f32 %v1455, %v1528
    %v1530 = vpop.f32.mrf.mxu0
    %1531 = vdwg.mxu0
    %vm1532 = vcmp.gt.f32.partialorder %v1524, 0.0
    %vm1533 = vcmp.gt.f32.partialorder %v1529, 0.0
    %v1534 = vmul.f32 %v1524, 0.1
    %v1535 = vmul.f32 %v1529, 0.1
    %v1536 = vsel %vm1532, %v1524, %v1534
    %v1537 = vsel %vm1533, %v1529, %v1535
    %v1538 = vadd.f32 %v1432, %v1536
    %v1539 = vadd.f32 %v1433, %v1537
    %vm1540 = vcmp.gt.f32.partialorder %v1538, 0.0
    %vm1541 = vcmp.gt.f32.partialorder %v1539, 0.0
    %v1542 = vmul.f32 %v1538, 0.1
    %v1543 = vmul.f32 %v1539, 0.1
    %v1544 = vsel %vm1540, %v1538, %v1542
    %v1545 = vsel %vm1541, %v1539, %v1543
    %v1546 = vld [vmem:[%s7] sm:$0xff]
    %v1547 = vld [vmem:[%s7 + $0x8] sm:$0xff]
    %v1548 = vld [vmem:[%s7 + $0x10] sm:$0xff]
    %v1549 = vld [vmem:[%s7 + $0x18] sm:$0xff]
    %v1550 = vld [vmem:[%s7 + $0x20] sm:$0xff]
    %v1551 = vld [vmem:[%s7 + $0x28] sm:$0xff]
    %v1552 = vld [vmem:[%s7 + $0x30] sm:$0xff]
    %v1553 = vld [vmem:[%s7 + $0x38] sm:$0xff]
    %v1554 = vld [vmem:[%s7 + $0x40] sm:$0xff]
    %v1555 = vld [vmem:[%s7 + $0x48] sm:$0xff]
    %v1556 = vld [vmem:[%s7 + $0x50] sm:$0xff]
    %v1557 = vld [vmem:[%s7 + $0x58] sm:$0xff]
    %v1558 = vld [vmem:[%s7 + $0x60] sm:$0xff]
    %v1559 = vld [vmem:[%s7 + $0x68] sm:$0xff]
    %v1560 = vld [vmem:[%s7 + $0x70] sm:$0xff]
    %v1561 = vld [vmem:[%s7 + $0x78] sm:$0xff]
    %v1562 = vld [vmem:[#allocation12] sm:$0x1]
    %v1564 = vlaneseq
    %v1565 = vshrl.u32 %v1564, 7
    %v1566 = vsub.s32 0, %v1565
    %v1567 = vrot.slane %v1562, %v1566
    %1569 = vmatprep.subr.mxu0 0.0
    %1570 = vmatpush1.msra.mxu0 %v1561
    %1571 = vmatprep.subr.mxu0 0.0
    %1572 = vmatpush1.msra.mxu0 %v1560
    %1573 = vmatprep.subr.mxu0 0.0
    %1574 = vmatpush1.msra.mxu0 %v1559
    %1575 = vmatprep.subr.mxu0 0.0
    %1576 = vmatpush1.msra.mxu0 %v1558
    %1577 = vmatprep.subr.mxu0 0.0
    %1578 = vmatpush1.msra.mxu0 %v1557
    %1579 = vmatprep.subr.mxu0 0.0
    %1580 = vmatpush1.msra.mxu0 %v1556
    %1581 = vmatprep.subr.mxu0 0.0
    %1582 = vmatpush1.msra.mxu0 %v1555
    %1583 = vmatprep.subr.mxu0 0.0
    %1584 = vmatpush1.msra.mxu0 %v1554
    %1585 = vmatprep.subr.mxu0 0.0
    %1586 = vmatpush1.msra.mxu0 %v1553
    %1587 = vmatprep.subr.mxu0 0.0
    %1588 = vmatpush1.msra.mxu0 %v1552
    %1589 = vmatprep.subr.mxu0 0.0
    %1590 = vmatpush1.msra.mxu0 %v1551
    %1591 = vmatprep.subr.mxu0 0.0
    %1592 = vmatpush1.msra.mxu0 %v1550
    %1593 = vmatprep.subr.mxu0 0.0
    %1594 = vmatpush1.msra.mxu0 %v1549
    %1595 = vmatprep.subr.mxu0 0.0
    %1596 = vmatpush1.msra.mxu0 %v1548
    %1597 = vmatprep.subr.mxu0 0.0
    %1598 = vmatpush1.msra.mxu0 %v1547
    %1599 = vmatprep.subr.mxu0 0.0
    %1600 = vmatpush1.msra.mxu0 %v1546
    %1601 = vmatprep.subr.mxu0 0.0
    %1602 = vmatpush2.msra.mxu0 0.0
    %1603 = vmatprep.subr.mxu0 0.0
    %1604 = vmatpush2.msra.mxu0 0.0
    %1605 = vmatprep.subr.mxu0 0.0
    %1606 = vmatpush2.msra.mxu0 0.0
    %1607 = vmatprep.subr.mxu0 0.0
    %1608 = vmatpush2.msra.mxu0 0.0
    %1609 = vmatprep.subr.mxu0 0.0
    %1610 = vmatpush2.msra.mxu0 0.0
    %1611 = vmatprep.subr.mxu0 0.0
    %1612 = vmatpush2.msra.mxu0 0.0
    %1613 = vmatprep.subr.mxu0 0.0
    %1614 = vmatpush2.msra.mxu0 0.0
    %1615 = vmatprep.subr.mxu0 0.0
    %1616 = vmatpush2.msra.mxu0 0.0
    %1617 = vmatprep.subr.mxu0 0.0
    %1618 = vmatpush2.msra.mxu0 0.0
    %1619 = vmatprep.subr.mxu0 0.0
    %1620 = vmatpush2.msra.mxu0 0.0
    %1621 = vmatprep.subr.mxu0 0.0
    %1622 = vmatpush2.msra.mxu0 0.0
    %1623 = vmatprep.subr.mxu0 0.0
    %1624 = vmatpush2.msra.mxu0 0.0
    %1625 = vmatprep.subr.mxu0 0.0
    %1626 = vmatpush2.msra.mxu0 0.0
    %1627 = vmatprep.subr.mxu0 0.0
    %1628 = vmatpush2.msra.mxu0 0.0
    %1629 = vmatprep.subr.mxu0 0.0
    %1630 = vmatpush2.msra.mxu0 0.0
    %1631 = vmatprep.subr.mxu0 0.0
    %1632 = vmatpush2.msra.mxu0 0.0
    %1633 = vmatprep.mubr.f32.mxu0 0.0
    %1634 = vmatmul.mubr.f32.gmra.mxu0 %v1544
    %v1635 = vpop.f32.mrf.mxu0
    %v1636 = vadd.f32 %v1567, %v1635
    %v1637 = vpop.f32.mrf.mxu0
    %1638 = vmatprep.mubr.f32.mxu0 0.0
    %1639 = vmatmul.mubr.f32.gmra.mxu0 %v1545
    %v1640 = vpop.f32.mrf.mxu0
    %v1641 = vadd.f32 %v1567, %v1640
    %v1642 = vpop.f32.mrf.mxu0
    %1643 = vdwg.mxu0
    %vm1644 = vcmp.gt.f32.partialorder %v1636, 0.0
    %vm1645 = vcmp.gt.f32.partialorder %v1641, 0.0
    %v1646 = vmul.f32 %v1636, 0.1
    %v1647 = vmul.f32 %v1641, 0.1
    %v1648 = vsel %vm1644, %v1636, %v1646
    %v1649 = vsel %vm1645, %v1641, %v1647
    %v1650 = vld [vmem:[%s9] sm:$0xff]
    %v1651 = vld [vmem:[%s9 + $0x8] sm:$0xff]
    %v1652 = vld [vmem:[%s9 + $0x10] sm:$0xff]
    %v1653 = vld [vmem:[%s9 + $0x18] sm:$0xff]
    %v1654 = vld [vmem:[%s9 + $0x20] sm:$0xff]
    %v1655 = vld [vmem:[%s9 + $0x28] sm:$0xff]
    %v1656 = vld [vmem:[%s9 + $0x30] sm:$0xff]
    %v1657 = vld [vmem:[%s9 + $0x38] sm:$0xff]
    %vm1658 = vcmask 523264
    %v1660 = vsel %vm1658, %v1648, 0
    %v1663 = vsel %vm1658, %v1649, 0
    %1665 = vmatprep.subr.mxu0 0.0
    %1666 = vmatpush1.msra.mxu0 0.0
    %1667 = vmatprep.subr.mxu0 0.0
    %1668 = vmatpush1.msra.mxu0 0.0
    %1669 = vmatprep.subr.mxu0 0.0
    %1670 = vmatpush1.msra.mxu0 0.0
    %1671 = vmatprep.subr.mxu0 0.0
    %1672 = vmatpush1.msra.mxu0 0.0
    %1673 = vmatprep.subr.mxu0 0.0
    %1674 = vmatpush1.msra.mxu0 0.0
    %1675 = vmatprep.subr.mxu0 0.0
    %1676 = vmatpush1.msra.mxu0 0.0
    %1677 = vmatprep.subr.mxu0 0.0
    %1678 = vmatpush1.msra.mxu0 0.0
    %1679 = vmatprep.subr.mxu0 0.0
    %1680 = vmatpush1.msra.mxu0 0.0
    %1681 = vmatprep.subr.mxu0 0.0
    %1682 = vmatpush1.msra.mxu0 %v1657
    %1683 = vmatprep.subr.mxu0 0.0
    %1684 = vmatpush1.msra.mxu0 %v1656
    %1685 = vmatprep.subr.mxu0 0.0
    %1686 = vmatpush1.msra.mxu0 %v1655
    %1687 = vmatprep.subr.mxu0 0.0
    %1688 = vmatpush1.msra.mxu0 %v1654
    %1689 = vmatprep.subr.mxu0 0.0
    %1690 = vmatpush1.msra.mxu0 %v1653
    %1691 = vmatprep.subr.mxu0 0.0
    %1692 = vmatpush1.msra.mxu0 %v1652
    %1693 = vmatprep.subr.mxu0 0.0
    %1694 = vmatpush1.msra.mxu0 %v1651
    %1695 = vmatprep.subr.mxu0 0.0
    %1696 = vmatpush1.msra.mxu0 %v1650
    %1697 = vmatprep.subr.mxu0 0.0
    %1698 = vmatpush2.msra.mxu0 0.0
    %1699 = vmatprep.subr.mxu0 0.0
    %1700 = vmatpush2.msra.mxu0 0.0
    %1701 = vmatprep.subr.mxu0 0.0
    %1702 = vmatpush2.msra.mxu0 0.0
    %1703 = vmatprep.subr.mxu0 0.0
    %1704 = vmatpush2.msra.mxu0 0.0
    %1705 = vmatprep.subr.mxu0 0.0
    %1706 = vmatpush2.msra.mxu0 0.0
    %1707 = vmatprep.subr.mxu0 0.0
    %1708 = vmatpush2.msra.mxu0 0.0
    %1709 = vmatprep.subr.mxu0 0.0
    %1710 = vmatpush2.msra.mxu0 0.0
    %1711 = vmatprep.subr.mxu0 0.0
    %1712 = vmatpush2.msra.mxu0 0.0
    %1713 = vmatprep.subr.mxu0 0.0
    %1714 = vmatpush2.msra.mxu0 0.0
    %1715 = vmatprep.subr.mxu0 0.0
    %1716 = vmatpush2.msra.mxu0 0.0
    %1717 = vmatprep.subr.mxu0 0.0
    %1718 = vmatpush2.msra.mxu0 0.0
    %1719 = vmatprep.subr.mxu0 0.0
    %1720 = vmatpush2.msra.mxu0 0.0
    %1721 = vmatprep.subr.mxu0 0.0
    %1722 = vmatpush2.msra.mxu0 0.0
    %1723 = vmatprep.subr.mxu0 0.0
    %1724 = vmatpush2.msra.mxu0 0.0
    %1725 = vmatprep.subr.mxu0 0.0
    %1726 = vmatpush2.msra.mxu0 0.0
    %1727 = vmatprep.subr.mxu0 0.0
    %1728 = vmatpush2.msra.mxu0 0.0
    %1729 = vmatprep.mubr.f32.mxu0 0.0
    %1730 = vmatmul.mubr.f32.gmra.mxu0 %v1660
    %v1731 = vpop.f32.mrf.mxu0
    %v1732 = vadd.f32 0.0, %v1731
    %v1733 = vpop.f32.mrf.mxu0
    %1734 = vmatprep.mubr.f32.mxu0 0.0
    %1735 = vmatmul.mubr.f32.gmra.mxu0 %v1663
    %v1736 = vpop.f32.mrf.mxu0
    %v1737 = vadd.f32 0.0, %v1736
    %v1738 = vpop.f32.mrf.mxu0
    %1739 = vdwg.mxu0
    %v1742 = vcombine.high %v1732, %v1732
    %v1744 = vunpack.c.l.s4 1966171168
    %v1745 = vunpack.c.0.s8 %v1744
    %v1746 = vlaneseq
    %v1747 = vshrl.u32 %v1746, 7
    %v1748 = vsub.s32 %v1745, %v1747
    %v1749 = vrot.slane %v1732, %v1748
    %v1751 = vunpack.c.l.s4 1966171168
    %v1752 = vunpack.c.0.s8 %v1751
    %v1753 = vlaneseq
    %v1754 = vshrl.u32 %v1753, 7
    %v1755 = vsub.s32 %v1752, %v1754
    %v1756 = vrot.slane %v1742, %v1755
    %v1757 = vcombine.high %v1749, %v1749
    %v1758 = vcombine.high %v1756, %v1756
    %v1760 = vunpack.c.l.s4 1966171168
    %v1761 = vunpack.c.0.s8 %v1760
    %v1762 = vlaneseq
    %v1763 = vshrl.u32 %v1762, 7
    %v1764 = vsub.s32 %v1761, %v1763
    %v1765 = vrot.slane %v1749, %v1764
    %v1767 = vunpack.c.l.s4 1966171168
    %v1768 = vunpack.c.0.s8 %v1767
    %v1769 = vlaneseq
    %v1770 = vshrl.u32 %v1769, 7
    %v1771 = vsub.s32 %v1768, %v1770
    %v1772 = vrot.slane %v1756, %v1771
    %v1774 = vunpack.c.l.s4 1966171168
    %v1775 = vunpack.c.0.s8 %v1774
    %v1776 = vlaneseq
    %v1777 = vshrl.u32 %v1776, 7
    %v1778 = vsub.s32 %v1775, %v1777
    %v1779 = vrot.slane %v1757, %v1778
    %v1781 = vunpack.c.l.s4 1966171168
    %v1782 = vunpack.c.0.s8 %v1781
    %v1783 = vlaneseq
    %v1784 = vshrl.u32 %v1783, 7
    %v1785 = vsub.s32 %v1782, %v1784
    %v1786 = vrot.slane %v1758, %v1785
    %v1787 = vcombine.high %v1765, %v1765
    %v1788 = vcombine.high %v1772, %v1772
    %v1789 = vcombine.high %v1779, %v1779
    %v1790 = vcombine.high %v1786, %v1786
    %v1791 = vcombine.high %v1737, %v1737
    %v1793 = vunpack.c.l.s4 1966171168
    %v1794 = vunpack.c.0.s8 %v1793
    %v1795 = vlaneseq
    %v1796 = vshrl.u32 %v1795, 7
    %v1797 = vsub.s32 %v1794, %v1796
    %v1798 = vrot.slane %v1737, %v1797
    %v1800 = vunpack.c.l.s4 1966171168
    %v1801 = vunpack.c.0.s8 %v1800
    %v1802 = vlaneseq
    %v1803 = vshrl.u32 %v1802, 7
    %v1804 = vsub.s32 %v1801, %v1803
    %v1805 = vrot.slane %v1791, %v1804
    %v1806 = vcombine.high %v1798, %v1798
    %v1807 = vcombine.high %v1805, %v1805
    %v1809 = vunpack.c.l.s4 1966171168
    %v1810 = vunpack.c.0.s8 %v1809
    %v1811 = vlaneseq
    %v1812 = vshrl.u32 %v1811, 7
    %v1813 = vsub.s32 %v1810, %v1812
    %v1814 = vrot.slane %v1798, %v1813
    %v1816 = vunpack.c.l.s4 1966171168
    %v1817 = vunpack.c.0.s8 %v1816
    %v1818 = vlaneseq
    %v1819 = vshrl.u32 %v1818, 7
    %v1820 = vsub.s32 %v1817, %v1819
    %v1821 = vrot.slane %v1805, %v1820
    %v1823 = vunpack.c.l.s4 1966171168
    %v1824 = vunpack.c.0.s8 %v1823
    %v1825 = vlaneseq
    %v1826 = vshrl.u32 %v1825, 7
    %v1827 = vsub.s32 %v1824, %v1826
    %v1828 = vrot.slane %v1806, %v1827
    %v1830 = vunpack.c.l.s4 1966171168
    %v1831 = vunpack.c.0.s8 %v1830
    %v1832 = vlaneseq
    %v1833 = vshrl.u32 %v1832, 7
    %v1834 = vsub.s32 %v1831, %v1833
    %v1835 = vrot.slane %v1807, %v1834
    %v1836 = vcombine.high %v1814, %v1814
    %v1837 = vcombine.high %v1821, %v1821
    %v1838 = vcombine.high %v1828, %v1828
    %v1839 = vcombine.high %v1835, %v1835
    %v1840 = vlaneseq
    %v1841 = vshrl.u32 %v1840, 7
    %v1842 = vsub.s32 0, %v1841
    %v1843 = vrot.slane %v1765, %v1842
    %v1844 = vlaneseq
    %v1845 = vshrl.u32 %v1844, 7
    %v1846 = vsub.s32 0, %v1845
    %v1847 = vrot.slane %v1779, %v1846
    %v1848 = vlaneseq
    %v1849 = vshrl.u32 %v1848, 7
    %v1850 = vsub.s32 0, %v1849
    %v1851 = vrot.slane %v1787, %v1850
    %v1852 = vlaneseq
    %v1853 = vshrl.u32 %v1852, 7
    %v1854 = vsub.s32 0, %v1853
    %v1855 = vrot.slane %v1789, %v1854
    %v1856 = vlaneseq
    %v1857 = vshrl.u32 %v1856, 7
    %v1858 = vsub.s32 0, %v1857
    %v1859 = vrot.slane %v1772, %v1858
    %v1860 = vlaneseq
    %v1861 = vshrl.u32 %v1860, 7
    %v1862 = vsub.s32 0, %v1861
    %v1863 = vrot.slane %v1786, %v1862
    %v1864 = vlaneseq
    %v1865 = vshrl.u32 %v1864, 7
    %v1866 = vsub.s32 0, %v1865
    %v1867 = vrot.slane %v1788, %v1866
    %v1868 = vlaneseq
    %v1869 = vshrl.u32 %v1868, 7
    %v1870 = vsub.s32 0, %v1869
    %v1871 = vrot.slane %v1790, %v1870
    %v1872 = vlaneseq
    %v1873 = vshrl.u32 %v1872, 7
    %v1874 = vsub.s32 0, %v1873
    %v1875 = vrot.slane %v1814, %v1874
    %v1876 = vlaneseq
    %v1877 = vshrl.u32 %v1876, 7
    %v1878 = vsub.s32 0, %v1877
    %v1879 = vrot.slane %v1828, %v1878
    %v1880 = vlaneseq
    %v1881 = vshrl.u32 %v1880, 7
    %v1882 = vsub.s32 0, %v1881
    %v1883 = vrot.slane %v1836, %v1882
    %v1884 = vlaneseq
    %v1885 = vshrl.u32 %v1884, 7
    %v1886 = vsub.s32 0, %v1885
    %v1887 = vrot.slane %v1838, %v1886
    %v1888 = vlaneseq
    %v1889 = vshrl.u32 %v1888, 7
    %v1890 = vsub.s32 0, %v1889
    %v1891 = vrot.slane %v1821, %v1890
    %v1892 = vlaneseq
    %v1893 = vshrl.u32 %v1892, 7
    %v1894 = vsub.s32 0, %v1893
    %v1895 = vrot.slane %v1835, %v1894
    %v1896 = vlaneseq
    %v1897 = vshrl.u32 %v1896, 7
    %v1898 = vsub.s32 0, %v1897
    %v1899 = vrot.slane %v1837, %v1898
    %v1900 = vlaneseq
    %v1901 = vshrl.u32 %v1900, 7
    %v1902 = vsub.s32 0, %v1901
    %v1903 = vrot.slane %v1839, %v1902
    %1904 = vst [vmem:[#allocation4] sm:$0xff] 0.0
    %1905 = vst.msk [vmem:[#allocation4 + $0x8] sm:$0xff] %vm532, 0.0
    %1906 = vst [vmem:[#allocation4 + $0x10] sm:$0xff] 0.0
    %1907 = vst.msk [vmem:[#allocation4 + $0x18] sm:$0xff] %vm532, 0.0
    %1908 = vst [vmem:[#allocation4 + $0x20] sm:$0x3] 0.0
    %1909 = vst.msk [vmem:[#allocation4 + $0x28] sm:$0x3] %vm537, 0.0
    %1910 = vst [vmem:[#allocation4 + $0x30] sm:$0xff] 0.0
    %1911 = vst.msk [vmem:[#allocation4 + $0x38] sm:$0xff] %vm532, 0.0
    %1912 = vst [vmem:[#allocation4 + $0x40] sm:$0xff] 0.0
    %1913 = vst.msk [vmem:[#allocation4 + $0x48] sm:$0xff] %vm532, 0.0
    %1914 = vst [vmem:[#allocation4 + $0x50] sm:$0x3] 0.0
    %1915 = vst.msk [vmem:[#allocation4 + $0x58] sm:$0x3] %vm537, 0.0
    %v1916 = vcombine.low %v1843, %v1847
    %v1917 = vcombine.low %v1851, %v1855
    %v1919 = vunpack.c.l.s4 1983009808
    %v1920 = vunpack.c.0.s8 %v1919
    %v1921 = vlaneseq
    %v1922 = vshrl.u32 %v1921, 7
    %v1923 = vsub.s32 %v1920, %v1922
    %v1924 = vrot.slane %v1916, %v1923
    %v1926 = vunpack.c.l.s4 1983009808
    %v1927 = vunpack.c.0.s8 %v1926
    %v1928 = vlaneseq
    %v1929 = vshrl.u32 %v1928, 7
    %v1930 = vsub.s32 %v1927, %v1929
    %v1931 = vrot.slane %v1917, %v1930
    %v1932 = vcombine.low %v1924, %v1931
    %v1933 = vcombine.low %v1859, %v1863
    %v1934 = vcombine.low %v1867, %v1871
    %v1936 = vunpack.c.l.s4 1983009808
    %v1937 = vunpack.c.0.s8 %v1936
    %v1938 = vlaneseq
    %v1939 = vshrl.u32 %v1938, 7
    %v1940 = vsub.s32 %v1937, %v1939
    %v1941 = vrot.slane %v1933, %v1940
    %v1943 = vunpack.c.l.s4 1983009808
    %v1944 = vunpack.c.0.s8 %v1943
    %v1945 = vlaneseq
    %v1946 = vshrl.u32 %v1945, 7
    %v1947 = vsub.s32 %v1944, %v1946
    %v1948 = vrot.slane %v1934, %v1947
    %v1949 = vcombine.low %v1941, %v1948
    %v1950 = vcombine.low %v1875, %v1879
    %v1951 = vcombine.low %v1883, %v1887
    %v1953 = vunpack.c.l.s4 1983009808
    %v1954 = vunpack.c.0.s8 %v1953
    %v1955 = vlaneseq
    %v1956 = vshrl.u32 %v1955, 7
    %v1957 = vsub.s32 %v1954, %v1956
    %v1958 = vrot.slane %v1950, %v1957
    %v1960 = vunpack.c.l.s4 1983009808
    %v1961 = vunpack.c.0.s8 %v1960
    %v1962 = vlaneseq
    %v1963 = vshrl.u32 %v1962, 7
    %v1964 = vsub.s32 %v1961, %v1963
    %v1965 = vrot.slane %v1951, %v1964
    %v1966 = vcombine.low %v1958, %v1965
    %v1967 = vcombine.low %v1891, %v1895
    %v1968 = vcombine.low %v1899, %v1903
    %v1970 = vunpack.c.l.s4 1983009808
    %v1971 = vunpack.c.0.s8 %v1970
    %v1972 = vlaneseq
    %v1973 = vshrl.u32 %v1972, 7
    %v1974 = vsub.s32 %v1971, %v1973
    %v1975 = vrot.slane %v1967, %v1974
    %v1977 = vunpack.c.l.s4 1983009808
    %v1978 = vunpack.c.0.s8 %v1977
    %v1979 = vlaneseq
    %v1980 = vshrl.u32 %v1979, 7
    %v1981 = vsub.s32 %v1978, %v1980
    %v1982 = vrot.slane %v1968, %v1981
    %v1983 = vcombine.low %v1975, %v1982
    %v1984 = vrot.slane %v1932, 7
    %v1985 = vrot.slane %v1949, 7
    %v1986 = vsel %vm549, %v1984, %v1985
    %v1987 = vrot.slane %v1966, 7
    %v1988 = vrot.slane %v1983, 7
    %v1989 = vsel %vm549, %v1987, %v1988
    %1990 = vrot.lane.b32.xlu0 %v1984, 8
    %v1991 = vpop.permute.xlu0 %1990
    %1992 = vrot.lane.b32.xlu0 %v1986, 8
    %v1993 = vpop.permute.xlu0 %1992
    %1994 = vrot.lane.b32.xlu0 %v1985, 8
    %v1995 = vpop.permute.xlu0 %1994
    %1996 = vrot.lane.b32.xlu0 %v1987, 8
    %v1997 = vpop.permute.xlu0 %1996
    %1998 = vrot.lane.b32.xlu0 %v1989, 8
    %v1999 = vpop.permute.xlu0 %1998
    %2000 = vrot.lane.b32.xlu0 %v1988, 8
    %v2001 = vpop.permute.xlu0 %2000
    %2008 = vst.msk [vmem:[#allocation4] sm:$0xfe] %vm574, %v1991
    %2009 = vst.msk [vmem:[#allocation4 + $0x8] sm:$0xfe] %vm576, %v1991
    %2010 = vst.msk [vmem:[#allocation4 + $0x10] sm:$0xff] %vm578, %v1993
    %2011 = vst.msk [vmem:[#allocation4 + $0x18] sm:$0xff] %vm580, %v1993
    %2012 = vst.msk [vmem:[#allocation4 + $0x20] sm:$0x1] %vm582, %v1995
    %2013 = vst.msk [vmem:[#allocation4 + $0x28] sm:$0x1] %vm584, %v1995
    %2014 = vst.msk [vmem:[#allocation4 + $0x30] sm:$0xfe] %vm574, %v1997
    %2015 = vst.msk [vmem:[#allocation4 + $0x38] sm:$0xfe] %vm576, %v1997
    %2016 = vst.msk [vmem:[#allocation4 + $0x40] sm:$0xff] %vm578, %v1999
    %2017 = vst.msk [vmem:[#allocation4 + $0x48] sm:$0xff] %vm580, %v1999
    %2018 = vst.msk [vmem:[#allocation4 + $0x50] sm:$0x1] %vm582, %v2001
    %2019 = vst.msk [vmem:[#allocation4 + $0x58] sm:$0x1] %vm584, %v2001
    %v2020 = vld [vmem:[#allocation4] sm:$0xff]
    %v2021 = vld [vmem:[#allocation4 + $0x8] sm:$0xff]
    %v2022 = vld [vmem:[#allocation4 + $0x10] sm:$0xff]
    %v2023 = vld [vmem:[#allocation4 + $0x18] sm:$0xff]
    %v2024 = vld [vmem:[#allocation4 + $0x20] sm:$0x3]
    %v2025 = vld [vmem:[#allocation4 + $0x28] sm:$0x3]
    %v2026 = vld [vmem:[#allocation4 + $0x30] sm:$0xff]
    %v2027 = vld [vmem:[#allocation4 + $0x38] sm:$0xff]
    %v2028 = vld [vmem:[#allocation4 + $0x40] sm:$0xff]
    %v2029 = vld [vmem:[#allocation4 + $0x48] sm:$0xff]
    %v2030 = vld [vmem:[#allocation4 + $0x50] sm:$0x3]
    %v2031 = vld [vmem:[#allocation4 + $0x58] sm:$0x3]
    %v2032 = vld [vmem:[#allocation13] sm:$0xff]
    %v2033 = vld [vmem:[#allocation13 + $0x8] sm:$0xff]
    %v2034 = vld [vmem:[#allocation13 + $0x10] sm:$0xff]
    %v2035 = vld [vmem:[#allocation13 + $0x18] sm:$0xff]
    %v2036 = vld [vmem:[#allocation13 + $0x20] sm:$0xff]
    %v2037 = vld [vmem:[#allocation13 + $0x28] sm:$0xff]
    %v2038 = vld [vmem:[#allocation13 + $0x30] sm:$0xff]
    %v2039 = vld [vmem:[#allocation13 + $0x38] sm:$0xff]
    %v2040 = vld [vmem:[#allocation13 + $0x40] sm:$0xff]
    %v2041 = vld [vmem:[#allocation13 + $0x48] sm:$0xff]
    %v2042 = vld [vmem:[#allocation13 + $0x50] sm:$0xff]
    %v2043 = vld [vmem:[#allocation13 + $0x58] sm:$0xff]
    %v2044 = vld [vmem:[#allocation13 + $0x60] sm:$0xff]
    %v2045 = vld [vmem:[#allocation13 + $0x68] sm:$0xff]
    %v2046 = vld [vmem:[#allocation13 + $0x70] sm:$0xff]
    %v2047 = vld [vmem:[#allocation13 + $0x78] sm:$0xff]
    %v2048 = vld [vmem:[#allocation13 + $0x80] sm:$0xff]
    %v2049 = vld [vmem:[#allocation13 + $0x88] sm:$0xff]
    %v2050 = vld [vmem:[#allocation13 + $0x90] sm:$0xff]
    %v2051 = vld [vmem:[#allocation13 + $0x98] sm:$0xff]
    %v2052 = vld [vmem:[#allocation13 + $0xa0] sm:$0xff]
    %v2053 = vld [vmem:[#allocation13 + $0xa8] sm:$0xff]
    %v2054 = vld [vmem:[#allocation13 + $0xb0] sm:$0xff]
    %v2055 = vld [vmem:[#allocation13 + $0xb8] sm:$0xff]
    %v2056 = vld [vmem:[#allocation13 + $0xc0] sm:$0xff]
    %v2057 = vld [vmem:[#allocation13 + $0xc8] sm:$0xff]
    %v2058 = vld [vmem:[#allocation13 + $0xd0] sm:$0xff]
    %v2059 = vld [vmem:[#allocation13 + $0xd8] sm:$0xff]
    %v2060 = vld [vmem:[#allocation13 + $0xe0] sm:$0xff]
    %v2061 = vld [vmem:[#allocation13 + $0xe8] sm:$0xff]
    %v2062 = vld [vmem:[#allocation13 + $0xf0] sm:$0xff]
    %v2063 = vld [vmem:[#allocation13 + $0xf8] sm:$0xff]
    %v2064 = vld [vmem:[#allocation13 + $0x100] sm:$0xff]
    %v2065 = vld [vmem:[#allocation13 + $0x108] sm:$0xff]
    %v2066 = vld [vmem:[#allocation13 + $0x110] sm:$0xff]
    %v2067 = vld [vmem:[#allocation13 + $0x118] sm:$0xff]
    %v2068 = vld [vmem:[#allocation13 + $0x120] sm:$0xff]
    %v2069 = vld [vmem:[#allocation13 + $0x128] sm:$0xff]
    %v2070 = vld [vmem:[#allocation13 + $0x130] sm:$0xff]
    %v2071 = vld [vmem:[#allocation13 + $0x138] sm:$0xff]
    %v2072 = vld [vmem:[#allocation13 + $0x140] sm:$0xff]
    %v2073 = vld [vmem:[#allocation13 + $0x148] sm:$0xff]
    %v2074 = vld [vmem:[#allocation13 + $0x150] sm:$0xff]
    %v2075 = vld [vmem:[#allocation13 + $0x158] sm:$0xff]
    %v2076 = vld [vmem:[#allocation13 + $0x160] sm:$0xff]
    %v2077 = vld [vmem:[#allocation13 + $0x168] sm:$0xff]
    %v2078 = vld [vmem:[#allocation13 + $0x170] sm:$0xff]
    %v2079 = vld [vmem:[#allocation13 + $0x178] sm:$0xff]
    %v2080 = vld [vmem:[#allocation13 + $0x180] sm:$0xff]
    %v2081 = vld [vmem:[#allocation13 + $0x188] sm:$0xff]
    %v2082 = vld [vmem:[#allocation13 + $0x190] sm:$0xff]
    %v2083 = vld [vmem:[#allocation13 + $0x198] sm:$0xff]
    %v2084 = vld [vmem:[#allocation13 + $0x1a0] sm:$0xff]
    %v2085 = vld [vmem:[#allocation13 + $0x1a8] sm:$0xff]
    %v2098 = vrot.slane %v2020, 1
    %v2099 = vrot.slane %v2022, 1
    %v2100 = vsel %vm203, %v2098, %v2099
    %v2101 = vrot.slane %v2021, 1
    %v2102 = vrot.slane %v2023, 1
    %v2103 = vsel %vm203, %v2101, %v2102
    %v2104 = vrot.slane %v2024, 1
    %v2105 = vsel %vm203, %v2099, %v2104
    %v2106 = vrot.slane %v2025, 1
    %v2107 = vsel %vm203, %v2102, %v2106
    %v2108 = vrot.slane %v2026, 1
    %v2109 = vrot.slane %v2028, 1
    %v2110 = vsel %vm203, %v2108, %v2109
    %v2111 = vrot.slane %v2027, 1
    %v2112 = vrot.slane %v2029, 1
    %v2113 = vsel %vm203, %v2111, %v2112
    %v2114 = vrot.slane %v2030, 1
    %v2115 = vsel %vm203, %v2109, %v2114
    %v2116 = vrot.slane %v2031, 1
    %v2117 = vsel %vm203, %v2112, %v2116
    %v2122 = vsel %vm532, %v2103, 0
    %v2124 = vsel %vm532, %v2107, 0
    %v2126 = vsel %vm532, %v2113, 0
    %v2128 = vsel %vm532, %v2117, 0
    %2130 = vmatprep.subr.mxu0 0.0
    %2131 = vmatpush1.msra.mxu0 %v2065
    %2132 = vmatprep.subr.mxu0 0.0
    %2133 = vmatpush1.msra.mxu0 %v2064
    %2134 = vmatprep.subr.mxu0 0.0
    %2135 = vmatpush1.msra.mxu0 %v2063
    %2136 = vmatprep.subr.mxu0 0.0
    %2137 = vmatpush1.msra.mxu0 %v2062
    %2138 = vmatprep.subr.mxu0 0.0
    %2139 = vmatpush1.msra.mxu0 %v2061
    %2140 = vmatprep.subr.mxu0 0.0
    %2141 = vmatpush1.msra.mxu0 %v2060
    %2142 = vmatprep.subr.mxu0 0.0
    %2143 = vmatpush1.msra.mxu0 %v2059
    %2144 = vmatprep.subr.mxu0 0.0
    %2145 = vmatpush1.msra.mxu0 %v2058
    %2146 = vmatprep.subr.mxu0 0.0
    %2147 = vmatpush1.msra.mxu0 %v2057
    %2148 = vmatprep.subr.mxu0 0.0
    %2149 = vmatpush1.msra.mxu0 %v2056
    %2150 = vmatprep.subr.mxu0 0.0
    %2151 = vmatpush1.msra.mxu0 %v2055
    %2152 = vmatprep.subr.mxu0 0.0
    %2153 = vmatpush1.msra.mxu0 %v2054
    %2154 = vmatprep.subr.mxu0 0.0
    %2155 = vmatpush1.msra.mxu0 %v2053
    %2156 = vmatprep.subr.mxu0 0.0
    %2157 = vmatpush1.msra.mxu0 %v2052
    %2158 = vmatprep.subr.mxu0 0.0
    %2159 = vmatpush1.msra.mxu0 %v2051
    %2160 = vmatprep.subr.mxu0 0.0
    %2161 = vmatpush1.msra.mxu0 %v2050
    %2162 = vmatprep.subr.mxu0 0.0
    %2163 = vmatpush2.msra.mxu0 0.0
    %2164 = vmatprep.subr.mxu0 0.0
    %2165 = vmatpush2.msra.mxu0 0.0
    %2166 = vmatprep.subr.mxu0 0.0
    %2167 = vmatpush2.msra.mxu0 0.0
    %2168 = vmatprep.subr.mxu0 0.0
    %2169 = vmatpush2.msra.mxu0 0.0
    %2170 = vmatprep.subr.mxu0 0.0
    %2171 = vmatpush2.msra.mxu0 0.0
    %2172 = vmatprep.subr.mxu0 0.0
    %2173 = vmatpush2.msra.mxu0 0.0
    %2174 = vmatprep.subr.mxu0 0.0
    %2175 = vmatpush2.msra.mxu0 0.0
    %2176 = vmatprep.subr.mxu0 0.0
    %2177 = vmatpush2.msra.mxu0 0.0
    %2178 = vmatprep.subr.mxu0 0.0
    %2179 = vmatpush2.msra.mxu0 0.0
    %2180 = vmatprep.subr.mxu0 0.0
    %2181 = vmatpush2.msra.mxu0 0.0
    %2182 = vmatprep.subr.mxu0 0.0
    %2183 = vmatpush2.msra.mxu0 0.0
    %2184 = vmatprep.subr.mxu0 0.0
    %2185 = vmatpush2.msra.mxu0 0.0
    %2186 = vmatprep.subr.mxu0 0.0
    %2187 = vmatpush2.msra.mxu0 0.0
    %2188 = vmatprep.subr.mxu0 0.0
    %2189 = vmatpush2.msra.mxu0 0.0
    %2190 = vmatprep.subr.mxu0 0.0
    %2191 = vmatpush2.msra.mxu0 %v2067
    %2192 = vmatprep.subr.mxu0 0.0
    %2193 = vmatpush2.msra.mxu0 %v2066
    %2194 = vmatprep.mubr.f32.mxu0 %v2122
    %2195 = vmatmul.mubr.f32.gmra.mxu0 %v2100
    %v2196 = vpop.f32.mrf.mxu0
    %v2197 = vadd.f32 0.0, %v2196
    %v2198 = vpop.f32.mrf.mxu0
    %2199 = vmatprep.mubr.f32.mxu0 %v2124
    %2200 = vmatmul.mubr.f32.gmra.mxu0 %v2105
    %v2201 = vpop.f32.mrf.mxu0
    %v2202 = vadd.f32 0.0, %v2201
    %v2203 = vpop.f32.mrf.mxu0
    %2204 = vmatprep.mubr.f32.mxu0 %v2126
    %2205 = vmatmul.mubr.f32.gmra.mxu0 %v2110
    %v2206 = vpop.f32.mrf.mxu0
    %v2207 = vadd.f32 0.0, %v2206
    %v2208 = vpop.f32.mrf.mxu0
    %2209 = vmatprep.mubr.f32.mxu0 %v2128
    %2210 = vmatmul.mubr.f32.gmra.mxu0 %v2115
    %v2211 = vpop.f32.mrf.mxu0
    %v2212 = vadd.f32 0.0, %v2211
    %v2213 = vpop.f32.mrf.mxu0
    %2214 = vdwg.mxu0
    %v2215 = vsel %vm532, %v2021, 0
    %v2217 = vsel %vm532, %v2023, 0
    %v2219 = vsel %vm532, %v2027, 0
    %v2221 = vsel %vm532, %v2029, 0
    %2223 = vmatprep.subr.mxu0 0.0
    %2224 = vmatpush1.msra.mxu0 %v2047
    %2225 = vmatprep.subr.mxu0 0.0
    %2226 = vmatpush1.msra.mxu0 %v2046
    %2227 = vmatprep.subr.mxu0 0.0
    %2228 = vmatpush1.msra.mxu0 %v2045
    %2229 = vmatprep.subr.mxu0 0.0
    %2230 = vmatpush1.msra.mxu0 %v2044
    %2231 = vmatprep.subr.mxu0 0.0
    %2232 = vmatpush1.msra.mxu0 %v2043
    %2233 = vmatprep.subr.mxu0 0.0
    %2234 = vmatpush1.msra.mxu0 %v2042
    %2235 = vmatprep.subr.mxu0 0.0
    %2236 = vmatpush1.msra.mxu0 %v2041
    %2237 = vmatprep.subr.mxu0 0.0
    %2238 = vmatpush1.msra.mxu0 %v2040
    %2239 = vmatprep.subr.mxu0 0.0
    %2240 = vmatpush1.msra.mxu0 %v2039
    %2241 = vmatprep.subr.mxu0 0.0
    %2242 = vmatpush1.msra.mxu0 %v2038
    %2243 = vmatprep.subr.mxu0 0.0
    %2244 = vmatpush1.msra.mxu0 %v2037
    %2245 = vmatprep.subr.mxu0 0.0
    %2246 = vmatpush1.msra.mxu0 %v2036
    %2247 = vmatprep.subr.mxu0 0.0
    %2248 = vmatpush1.msra.mxu0 %v2035
    %2249 = vmatprep.subr.mxu0 0.0
    %2250 = vmatpush1.msra.mxu0 %v2034
    %2251 = vmatprep.subr.mxu0 0.0
    %2252 = vmatpush1.msra.mxu0 %v2033
    %2253 = vmatprep.subr.mxu0 0.0
    %2254 = vmatpush1.msra.mxu0 %v2032
    %2255 = vmatprep.subr.mxu0 0.0
    %2256 = vmatpush2.msra.mxu0 0.0
    %2257 = vmatprep.subr.mxu0 0.0
    %2258 = vmatpush2.msra.mxu0 0.0
    %2259 = vmatprep.subr.mxu0 0.0
    %2260 = vmatpush2.msra.mxu0 0.0
    %2261 = vmatprep.subr.mxu0 0.0
    %2262 = vmatpush2.msra.mxu0 0.0
    %2263 = vmatprep.subr.mxu0 0.0
    %2264 = vmatpush2.msra.mxu0 0.0
    %2265 = vmatprep.subr.mxu0 0.0
    %2266 = vmatpush2.msra.mxu0 0.0
    %2267 = vmatprep.subr.mxu0 0.0
    %2268 = vmatpush2.msra.mxu0 0.0
    %2269 = vmatprep.subr.mxu0 0.0
    %2270 = vmatpush2.msra.mxu0 0.0
    %2271 = vmatprep.subr.mxu0 0.0
    %2272 = vmatpush2.msra.mxu0 0.0
    %2273 = vmatprep.subr.mxu0 0.0
    %2274 = vmatpush2.msra.mxu0 0.0
    %2275 = vmatprep.subr.mxu0 0.0
    %2276 = vmatpush2.msra.mxu0 0.0
    %2277 = vmatprep.subr.mxu0 0.0
    %2278 = vmatpush2.msra.mxu0 0.0
    %2279 = vmatprep.subr.mxu0 0.0
    %2280 = vmatpush2.msra.mxu0 0.0
    %2281 = vmatprep.subr.mxu0 0.0
    %2282 = vmatpush2.msra.mxu0 0.0
    %2283 = vmatprep.subr.mxu0 0.0
    %2284 = vmatpush2.msra.mxu0 %v2049
    %2285 = vmatprep.subr.mxu0 0.0
    %2286 = vmatpush2.msra.mxu0 %v2048
    %2287 = vmatprep.mubr.f32.mxu0 %v2215
    %2288 = vmatmul.mubr.f32.gmra.mxu0 %v2020
    %v2289 = vpop.f32.mrf.mxu0
    %v2290 = vadd.f32 %v2197, %v2289
    %v2291 = vpop.f32.mrf.mxu0
    %2292 = vmatprep.mubr.f32.mxu0 %v2217
    %2293 = vmatmul.mubr.f32.gmra.mxu0 %v2022
    %v2294 = vpop.f32.mrf.mxu0
    %v2295 = vadd.f32 %v2202, %v2294
    %v2296 = vpop.f32.mrf.mxu0
    %2297 = vmatprep.mubr.f32.mxu0 %v2219
    %2298 = vmatmul.mubr.f32.gmra.mxu0 %v2026
    %v2299 = vpop.f32.mrf.mxu0
    %v2300 = vadd.f32 %v2207, %v2299
    %v2301 = vpop.f32.mrf.mxu0
    %2302 = vmatprep.mubr.f32.mxu0 %v2221
    %2303 = vmatmul.mubr.f32.gmra.mxu0 %v2028
    %v2304 = vpop.f32.mrf.mxu0
    %v2305 = vadd.f32 %v2212, %v2304
    %v2306 = vpop.f32.mrf.mxu0
    %2307 = vdwg.mxu0
    %v2308 = vrot.slane %v2020, 2
    %v2309 = vrot.slane %v2022, 2
    %v2310 = vsel %vm400, %v2308, %v2309
    %v2311 = vrot.slane %v2021, 2
    %v2312 = vrot.slane %v2023, 2
    %v2313 = vsel %vm400, %v2311, %v2312
    %v2314 = vrot.slane %v2024, 2
    %v2315 = vsel %vm400, %v2309, %v2314
    %v2316 = vrot.slane %v2025, 2
    %v2317 = vsel %vm400, %v2312, %v2316
    %v2318 = vrot.slane %v2026, 2
    %v2319 = vrot.slane %v2028, 2
    %v2320 = vsel %vm400, %v2318, %v2319
    %v2321 = vrot.slane %v2027, 2
    %v2322 = vrot.slane %v2029, 2
    %v2323 = vsel %vm400, %v2321, %v2322
    %v2324 = vrot.slane %v2030, 2
    %v2325 = vsel %vm400, %v2319, %v2324
    %v2326 = vrot.slane %v2031, 2
    %v2327 = vsel %vm400, %v2322, %v2326
    %v2332 = vsel %vm532, %v2313, 0
    %v2334 = vsel %vm532, %v2317, 0
    %v2336 = vsel %vm532, %v2323, 0
    %v2338 = vsel %vm532, %v2327, 0
    %2340 = vmatprep.subr.mxu0 0.0
    %2341 = vmatpush1.msra.mxu0 %v2083
    %2342 = vmatprep.subr.mxu0 0.0
    %2343 = vmatpush1.msra.mxu0 %v2082
    %2344 = vmatprep.subr.mxu0 0.0
    %2345 = vmatpush1.msra.mxu0 %v2081
    %2346 = vmatprep.subr.mxu0 0.0
    %2347 = vmatpush1.msra.mxu0 %v2080
    %2348 = vmatprep.subr.mxu0 0.0
    %2349 = vmatpush1.msra.mxu0 %v2079
    %2350 = vmatprep.subr.mxu0 0.0
    %2351 = vmatpush1.msra.mxu0 %v2078
    %2352 = vmatprep.subr.mxu0 0.0
    %2353 = vmatpush1.msra.mxu0 %v2077
    %2354 = vmatprep.subr.mxu0 0.0
    %2355 = vmatpush1.msra.mxu0 %v2076
    %2356 = vmatprep.subr.mxu0 0.0
    %2357 = vmatpush1.msra.mxu0 %v2075
    %2358 = vmatprep.subr.mxu0 0.0
    %2359 = vmatpush1.msra.mxu0 %v2074
    %2360 = vmatprep.subr.mxu0 0.0
    %2361 = vmatpush1.msra.mxu0 %v2073
    %2362 = vmatprep.subr.mxu0 0.0
    %2363 = vmatpush1.msra.mxu0 %v2072
    %2364 = vmatprep.subr.mxu0 0.0
    %2365 = vmatpush1.msra.mxu0 %v2071
    %2366 = vmatprep.subr.mxu0 0.0
    %2367 = vmatpush1.msra.mxu0 %v2070
    %2368 = vmatprep.subr.mxu0 0.0
    %2369 = vmatpush1.msra.mxu0 %v2069
    %2370 = vmatprep.subr.mxu0 0.0
    %2371 = vmatpush1.msra.mxu0 %v2068
    %2372 = vmatprep.subr.mxu0 0.0
    %2373 = vmatpush2.msra.mxu0 0.0
    %2374 = vmatprep.subr.mxu0 0.0
    %2375 = vmatpush2.msra.mxu0 0.0
    %2376 = vmatprep.subr.mxu0 0.0
    %2377 = vmatpush2.msra.mxu0 0.0
    %2378 = vmatprep.subr.mxu0 0.0
    %2379 = vmatpush2.msra.mxu0 0.0
    %2380 = vmatprep.subr.mxu0 0.0
    %2381 = vmatpush2.msra.mxu0 0.0
    %2382 = vmatprep.subr.mxu0 0.0
    %2383 = vmatpush2.msra.mxu0 0.0
    %2384 = vmatprep.subr.mxu0 0.0
    %2385 = vmatpush2.msra.mxu0 0.0
    %2386 = vmatprep.subr.mxu0 0.0
    %2387 = vmatpush2.msra.mxu0 0.0
    %2388 = vmatprep.subr.mxu0 0.0
    %2389 = vmatpush2.msra.mxu0 0.0
    %2390 = vmatprep.subr.mxu0 0.0
    %2391 = vmatpush2.msra.mxu0 0.0
    %2392 = vmatprep.subr.mxu0 0.0
    %2393 = vmatpush2.msra.mxu0 0.0
    %2394 = vmatprep.subr.mxu0 0.0
    %2395 = vmatpush2.msra.mxu0 0.0
    %2396 = vmatprep.subr.mxu0 0.0
    %2397 = vmatpush2.msra.mxu0 0.0
    %2398 = vmatprep.subr.mxu0 0.0
    %2399 = vmatpush2.msra.mxu0 0.0
    %2400 = vmatprep.subr.mxu0 0.0
    %2401 = vmatpush2.msra.mxu0 %v2085
    %2402 = vmatprep.subr.mxu0 0.0
    %2403 = vmatpush2.msra.mxu0 %v2084
    %2404 = vmatprep.mubr.f32.mxu0 %v2332
    %2405 = vmatmul.mubr.f32.gmra.mxu0 %v2310
    %v2406 = vpop.f32.mrf.mxu0
    %v2407 = vadd.f32 0.0, %v2406
    %v2408 = vpop.f32.mrf.mxu0
    %2409 = vmatprep.mubr.f32.mxu0 %v2334
    %2410 = vmatmul.mubr.f32.gmra.mxu0 %v2315
    %v2411 = vpop.f32.mrf.mxu0
    %v2412 = vadd.f32 0.0, %v2411
    %v2413 = vpop.f32.mrf.mxu0
    %2414 = vmatprep.mubr.f32.mxu0 %v2336
    %2415 = vmatmul.mubr.f32.gmra.mxu0 %v2320
    %v2416 = vpop.f32.mrf.mxu0
    %v2417 = vadd.f32 0.0, %v2416
    %v2418 = vpop.f32.mrf.mxu0
    %2419 = vmatprep.mubr.f32.mxu0 %v2338
    %2420 = vmatmul.mubr.f32.gmra.mxu0 %v2325
    %v2421 = vpop.f32.mrf.mxu0
    %v2422 = vadd.f32 0.0, %v2421
    %v2423 = vpop.f32.mrf.mxu0
    %2424 = vdwg.mxu0
    %v2425 = vadd.f32 %v2290, %v2407
    %v2426 = vadd.f32 %v2295, %v2412
    %v2427 = vadd.f32 %v2300, %v2417
    %v2428 = vadd.f32 %v2305, %v2422
    %v2429 = vld [vmem:[#allocation3] sm:$0xff]
    %v2430 = vld [vmem:[#allocation3 + $0x8] sm:$0xff]
    %v2431 = vld [vmem:[#allocation3 + $0x10] sm:$0xff]
    %v2432 = vld [vmem:[#allocation3 + $0x18] sm:$0xff]
    %v2433 = vld [vmem:[#allocation3 + $0x20] sm:$0x3]
    %v2434 = vld [vmem:[#allocation3 + $0x28] sm:$0x3]
    %v2435 = vld [vmem:[#allocation3 + $0x30] sm:$0xff]
    %v2436 = vld [vmem:[#allocation3 + $0x38] sm:$0xff]
    %v2437 = vld [vmem:[#allocation3 + $0x40] sm:$0xff]
    %v2438 = vld [vmem:[#allocation3 + $0x48] sm:$0xff]
    %v2439 = vld [vmem:[#allocation3 + $0x50] sm:$0x3]
    %v2440 = vld [vmem:[#allocation3 + $0x58] sm:$0x3]
    %v2441 = vld [vmem:[#allocation15] sm:$0xff]
    %v2442 = vld [vmem:[#allocation15 + $0x8] sm:$0xff]
    %v2443 = vld [vmem:[#allocation15 + $0x10] sm:$0xff]
    %v2444 = vld [vmem:[#allocation15 + $0x18] sm:$0xff]
    %v2445 = vld [vmem:[#allocation15 + $0x20] sm:$0xff]
    %v2446 = vld [vmem:[#allocation15 + $0x28] sm:$0xff]
    %v2447 = vld [vmem:[#allocation15 + $0x30] sm:$0xff]
    %v2448 = vld [vmem:[#allocation15 + $0x38] sm:$0xff]
    %v2449 = vld [vmem:[#allocation15 + $0x40] sm:$0xff]
    %v2450 = vld [vmem:[#allocation15 + $0x48] sm:$0xff]
    %v2451 = vld [vmem:[#allocation15 + $0x50] sm:$0xff]
    %v2452 = vld [vmem:[#allocation15 + $0x58] sm:$0xff]
    %v2453 = vld [vmem:[#allocation15 + $0x60] sm:$0xff]
    %v2454 = vld [vmem:[#allocation15 + $0x68] sm:$0xff]
    %v2455 = vld [vmem:[#allocation15 + $0x70] sm:$0xff]
    %v2456 = vld [vmem:[#allocation15 + $0x78] sm:$0xff]
    %v2457 = vld [vmem:[#allocation15 + $0x80] sm:$0xff]
    %v2458 = vld [vmem:[#allocation15 + $0x88] sm:$0xff]
    %v2459 = vld [vmem:[#allocation15 + $0x90] sm:$0xff]
    %v2460 = vld [vmem:[#allocation15 + $0x98] sm:$0xff]
    %v2461 = vld [vmem:[#allocation15 + $0xa0] sm:$0xff]
    %v2462 = vld [vmem:[#allocation15 + $0xa8] sm:$0xff]
    %v2463 = vld [vmem:[#allocation15 + $0xb0] sm:$0xff]
    %v2464 = vld [vmem:[#allocation15 + $0xb8] sm:$0xff]
    %v2465 = vld [vmem:[#allocation15 + $0xc0] sm:$0xff]
    %v2466 = vld [vmem:[#allocation15 + $0xc8] sm:$0xff]
    %v2467 = vld [vmem:[#allocation15 + $0xd0] sm:$0xff]
    %v2468 = vld [vmem:[#allocation15 + $0xd8] sm:$0xff]
    %v2469 = vld [vmem:[#allocation15 + $0xe0] sm:$0xff]
    %v2470 = vld [vmem:[#allocation15 + $0xe8] sm:$0xff]
    %v2471 = vld [vmem:[#allocation15 + $0xf0] sm:$0xff]
    %v2472 = vld [vmem:[#allocation15 + $0xf8] sm:$0xff]
    %v2473 = vld [vmem:[#allocation15 + $0x100] sm:$0xff]
    %v2474 = vld [vmem:[#allocation15 + $0x108] sm:$0xff]
    %v2475 = vld [vmem:[#allocation15 + $0x110] sm:$0xff]
    %v2476 = vld [vmem:[#allocation15 + $0x118] sm:$0xff]
    %v2477 = vld [vmem:[#allocation15 + $0x120] sm:$0xff]
    %v2478 = vld [vmem:[#allocation15 + $0x128] sm:$0xff]
    %v2479 = vld [vmem:[#allocation15 + $0x130] sm:$0xff]
    %v2480 = vld [vmem:[#allocation15 + $0x138] sm:$0xff]
    %v2481 = vld [vmem:[#allocation15 + $0x140] sm:$0xff]
    %v2482 = vld [vmem:[#allocation15 + $0x148] sm:$0xff]
    %v2483 = vld [vmem:[#allocation15 + $0x150] sm:$0xff]
    %v2484 = vld [vmem:[#allocation15 + $0x158] sm:$0xff]
    %v2485 = vld [vmem:[#allocation15 + $0x160] sm:$0xff]
    %v2486 = vld [vmem:[#allocation15 + $0x168] sm:$0xff]
    %v2487 = vld [vmem:[#allocation15 + $0x170] sm:$0xff]
    %v2488 = vld [vmem:[#allocation15 + $0x178] sm:$0xff]
    %v2489 = vld [vmem:[#allocation15 + $0x180] sm:$0xff]
    %v2490 = vld [vmem:[#allocation15 + $0x188] sm:$0xff]
    %v2491 = vld [vmem:[#allocation15 + $0x190] sm:$0xff]
    %v2492 = vld [vmem:[#allocation15 + $0x198] sm:$0xff]
    %v2493 = vld [vmem:[#allocation15 + $0x1a0] sm:$0xff]
    %v2494 = vld [vmem:[#allocation15 + $0x1a8] sm:$0xff]
    %v2496 = vsel %vm532, %v2430, 0
    %v2499 = vsel %vm532, %v2432, 0
    %v2502 = vsel %vm532, %v2436, 0
    %v2505 = vsel %vm532, %v2438, 0
    %2507 = vmatprep.subr.mxu0 0.0
    %2508 = vmatpush1.msra.mxu0 %v2456
    %2509 = vmatprep.subr.mxu0 0.0
    %2510 = vmatpush1.msra.mxu0 %v2455
    %2511 = vmatprep.subr.mxu0 0.0
    %2512 = vmatpush1.msra.mxu0 %v2454
    %2513 = vmatprep.subr.mxu0 0.0
    %2514 = vmatpush1.msra.mxu0 %v2453
    %2515 = vmatprep.subr.mxu0 0.0
    %2516 = vmatpush1.msra.mxu0 %v2452
    %2517 = vmatprep.subr.mxu0 0.0
    %2518 = vmatpush1.msra.mxu0 %v2451
    %2519 = vmatprep.subr.mxu0 0.0
    %2520 = vmatpush1.msra.mxu0 %v2450
    %2521 = vmatprep.subr.mxu0 0.0
    %2522 = vmatpush1.msra.mxu0 %v2449
    %2523 = vmatprep.subr.mxu0 0.0
    %2524 = vmatpush1.msra.mxu0 %v2448
    %2525 = vmatprep.subr.mxu0 0.0
    %2526 = vmatpush1.msra.mxu0 %v2447
    %2527 = vmatprep.subr.mxu0 0.0
    %2528 = vmatpush1.msra.mxu0 %v2446
    %2529 = vmatprep.subr.mxu0 0.0
    %2530 = vmatpush1.msra.mxu0 %v2445
    %2531 = vmatprep.subr.mxu0 0.0
    %2532 = vmatpush1.msra.mxu0 %v2444
    %2533 = vmatprep.subr.mxu0 0.0
    %2534 = vmatpush1.msra.mxu0 %v2443
    %2535 = vmatprep.subr.mxu0 0.0
    %2536 = vmatpush1.msra.mxu0 %v2442
    %2537 = vmatprep.subr.mxu0 0.0
    %2538 = vmatpush1.msra.mxu0 %v2441
    %2539 = vmatprep.subr.mxu0 0.0
    %2540 = vmatpush2.msra.mxu0 0.0
    %2541 = vmatprep.subr.mxu0 0.0
    %2542 = vmatpush2.msra.mxu0 0.0
    %2543 = vmatprep.subr.mxu0 0.0
    %2544 = vmatpush2.msra.mxu0 0.0
    %2545 = vmatprep.subr.mxu0 0.0
    %2546 = vmatpush2.msra.mxu0 0.0
    %2547 = vmatprep.subr.mxu0 0.0
    %2548 = vmatpush2.msra.mxu0 0.0
    %2549 = vmatprep.subr.mxu0 0.0
    %2550 = vmatpush2.msra.mxu0 0.0
    %2551 = vmatprep.subr.mxu0 0.0
    %2552 = vmatpush2.msra.mxu0 0.0
    %2553 = vmatprep.subr.mxu0 0.0
    %2554 = vmatpush2.msra.mxu0 0.0
    %2555 = vmatprep.subr.mxu0 0.0
    %2556 = vmatpush2.msra.mxu0 0.0
    %2557 = vmatprep.subr.mxu0 0.0
    %2558 = vmatpush2.msra.mxu0 0.0
    %2559 = vmatprep.subr.mxu0 0.0
    %2560 = vmatpush2.msra.mxu0 0.0
    %2561 = vmatprep.subr.mxu0 0.0
    %2562 = vmatpush2.msra.mxu0 0.0
    %2563 = vmatprep.subr.mxu0 0.0
    %2564 = vmatpush2.msra.mxu0 0.0
    %2565 = vmatprep.subr.mxu0 0.0
    %2566 = vmatpush2.msra.mxu0 0.0
    %2567 = vmatprep.subr.mxu0 0.0
    %2568 = vmatpush2.msra.mxu0 %v2458
    %2569 = vmatprep.subr.mxu0 0.0
    %2570 = vmatpush2.msra.mxu0 %v2457
    %2571 = vmatprep.mubr.f32.mxu0 %v2496
    %2572 = vmatmul.mubr.f32.gmra.mxu0 %v2429
    %v2573 = vpop.f32.mrf.mxu0
    %v2574 = vadd.f32 0.0, %v2573
    %v2575 = vpop.f32.mrf.mxu0
    %2576 = vmatprep.mubr.f32.mxu0 %v2499
    %2577 = vmatmul.mubr.f32.gmra.mxu0 %v2431
    %v2578 = vpop.f32.mrf.mxu0
    %v2579 = vadd.f32 0.0, %v2578
    %v2580 = vpop.f32.mrf.mxu0
    %2581 = vmatprep.mubr.f32.mxu0 %v2502
    %2582 = vmatmul.mubr.f32.gmra.mxu0 %v2435
    %v2583 = vpop.f32.mrf.mxu0
    %v2584 = vadd.f32 0.0, %v2583
    %v2585 = vpop.f32.mrf.mxu0
    %2586 = vmatprep.mubr.f32.mxu0 %v2505
    %2587 = vmatmul.mubr.f32.gmra.mxu0 %v2437
    %v2588 = vpop.f32.mrf.mxu0
    %v2589 = vadd.f32 0.0, %v2588
    %v2590 = vpop.f32.mrf.mxu0
    %2591 = vdwg.mxu0
    %v2592 = vadd.f32 %v2425, %v2574
    %v2593 = vadd.f32 %v2426, %v2579
    %v2594 = vadd.f32 %v2427, %v2584
    %v2595 = vadd.f32 %v2428, %v2589
    %v2604 = vrot.slane %v2429, 1
    %v2605 = vrot.slane %v2431, 1
    %v2606 = vsel %vm203, %v2604, %v2605
    %v2607 = vrot.slane %v2430, 1
    %v2608 = vrot.slane %v2432, 1
    %v2609 = vsel %vm203, %v2607, %v2608
    %v2610 = vrot.slane %v2433, 1
    %v2611 = vsel %vm203, %v2605, %v2610
    %v2612 = vrot.slane %v2434, 1
    %v2613 = vsel %vm203, %v2608, %v2612
    %v2614 = vrot.slane %v2435, 1
    %v2615 = vrot.slane %v2437, 1
    %v2616 = vsel %vm203, %v2614, %v2615
    %v2617 = vrot.slane %v2436, 1
    %v2618 = vrot.slane %v2438, 1
    %v2619 = vsel %vm203, %v2617, %v2618
    %v2620 = vrot.slane %v2439, 1
    %v2621 = vsel %vm203, %v2615, %v2620
    %v2622 = vrot.slane %v2440, 1
    %v2623 = vsel %vm203, %v2618, %v2622
    %v2628 = vsel %vm532, %v2609, 0
    %v2630 = vsel %vm532, %v2613, 0
    %v2632 = vsel %vm532, %v2619, 0
    %v2634 = vsel %vm532, %v2623, 0
    %2636 = vmatprep.subr.mxu0 0.0
    %2637 = vmatpush1.msra.mxu0 %v2474
    %2638 = vmatprep.subr.mxu0 0.0
    %2639 = vmatpush1.msra.mxu0 %v2473
    %2640 = vmatprep.subr.mxu0 0.0
    %2641 = vmatpush1.msra.mxu0 %v2472
    %2642 = vmatprep.subr.mxu0 0.0
    %2643 = vmatpush1.msra.mxu0 %v2471
    %2644 = vmatprep.subr.mxu0 0.0
    %2645 = vmatpush1.msra.mxu0 %v2470
    %2646 = vmatprep.subr.mxu0 0.0
    %2647 = vmatpush1.msra.mxu0 %v2469
    %2648 = vmatprep.subr.mxu0 0.0
    %2649 = vmatpush1.msra.mxu0 %v2468
    %2650 = vmatprep.subr.mxu0 0.0
    %2651 = vmatpush1.msra.mxu0 %v2467
    %2652 = vmatprep.subr.mxu0 0.0
    %2653 = vmatpush1.msra.mxu0 %v2466
    %2654 = vmatprep.subr.mxu0 0.0
    %2655 = vmatpush1.msra.mxu0 %v2465
    %2656 = vmatprep.subr.mxu0 0.0
    %2657 = vmatpush1.msra.mxu0 %v2464
    %2658 = vmatprep.subr.mxu0 0.0
    %2659 = vmatpush1.msra.mxu0 %v2463
    %2660 = vmatprep.subr.mxu0 0.0
    %2661 = vmatpush1.msra.mxu0 %v2462
    %2662 = vmatprep.subr.mxu0 0.0
    %2663 = vmatpush1.msra.mxu0 %v2461
    %2664 = vmatprep.subr.mxu0 0.0
    %2665 = vmatpush1.msra.mxu0 %v2460
    %2666 = vmatprep.subr.mxu0 0.0
    %2667 = vmatpush1.msra.mxu0 %v2459
    %2668 = vmatprep.subr.mxu0 0.0
    %2669 = vmatpush2.msra.mxu0 0.0
    %2670 = vmatprep.subr.mxu0 0.0
    %2671 = vmatpush2.msra.mxu0 0.0
    %2672 = vmatprep.subr.mxu0 0.0
    %2673 = vmatpush2.msra.mxu0 0.0
    %2674 = vmatprep.subr.mxu0 0.0
    %2675 = vmatpush2.msra.mxu0 0.0
    %2676 = vmatprep.subr.mxu0 0.0
    %2677 = vmatpush2.msra.mxu0 0.0
    %2678 = vmatprep.subr.mxu0 0.0
    %2679 = vmatpush2.msra.mxu0 0.0
    %2680 = vmatprep.subr.mxu0 0.0
    %2681 = vmatpush2.msra.mxu0 0.0
    %2682 = vmatprep.subr.mxu0 0.0
    %2683 = vmatpush2.msra.mxu0 0.0
    %2684 = vmatprep.subr.mxu0 0.0
    %2685 = vmatpush2.msra.mxu0 0.0
    %2686 = vmatprep.subr.mxu0 0.0
    %2687 = vmatpush2.msra.mxu0 0.0
    %2688 = vmatprep.subr.mxu0 0.0
    %2689 = vmatpush2.msra.mxu0 0.0
    %2690 = vmatprep.subr.mxu0 0.0
    %2691 = vmatpush2.msra.mxu0 0.0
    %2692 = vmatprep.subr.mxu0 0.0
    %2693 = vmatpush2.msra.mxu0 0.0
    %2694 = vmatprep.subr.mxu0 0.0
    %2695 = vmatpush2.msra.mxu0 0.0
    %2696 = vmatprep.subr.mxu0 0.0
    %2697 = vmatpush2.msra.mxu0 %v2476
    %2698 = vmatprep.subr.mxu0 0.0
    %2699 = vmatpush2.msra.mxu0 %v2475
    %2700 = vmatprep.mubr.f32.mxu0 %v2628
    %2701 = vmatmul.mubr.f32.gmra.mxu0 %v2606
    %v2702 = vpop.f32.mrf.mxu0
    %v2703 = vadd.f32 0.0, %v2702
    %v2704 = vpop.f32.mrf.mxu0
    %2705 = vmatprep.mubr.f32.mxu0 %v2630
    %2706 = vmatmul.mubr.f32.gmra.mxu0 %v2611
    %v2707 = vpop.f32.mrf.mxu0
    %v2708 = vadd.f32 0.0, %v2707
    %v2709 = vpop.f32.mrf.mxu0
    %2710 = vmatprep.mubr.f32.mxu0 %v2632
    %2711 = vmatmul.mubr.f32.gmra.mxu0 %v2616
    %v2712 = vpop.f32.mrf.mxu0
    %v2713 = vadd.f32 0.0, %v2712
    %v2714 = vpop.f32.mrf.mxu0
    %2715 = vmatprep.mubr.f32.mxu0 %v2634
    %2716 = vmatmul.mubr.f32.gmra.mxu0 %v2621
    %v2717 = vpop.f32.mrf.mxu0
    %v2718 = vadd.f32 0.0, %v2717
    %v2719 = vpop.f32.mrf.mxu0
    %2720 = vdwg.mxu0
    %v2721 = vadd.f32 %v2592, %v2703
    %v2722 = vadd.f32 %v2593, %v2708
    %v2723 = vadd.f32 %v2594, %v2713
    %v2724 = vadd.f32 %v2595, %v2718
    %v2725 = vrot.slane %v2429, 2
    %v2726 = vrot.slane %v2431, 2
    %v2727 = vsel %vm400, %v2725, %v2726
    %v2728 = vrot.slane %v2430, 2
    %v2729 = vrot.slane %v2432, 2
    %v2730 = vsel %vm400, %v2728, %v2729
    %v2731 = vrot.slane %v2433, 2
    %v2732 = vsel %vm400, %v2726, %v2731
    %v2733 = vrot.slane %v2434, 2
    %v2734 = vsel %vm400, %v2729, %v2733
    %v2735 = vrot.slane %v2435, 2
    %v2736 = vrot.slane %v2437, 2
    %v2737 = vsel %vm400, %v2735, %v2736
    %v2738 = vrot.slane %v2436, 2
    %v2739 = vrot.slane %v2438, 2
    %v2740 = vsel %vm400, %v2738, %v2739
    %v2741 = vrot.slane %v2439, 2
    %v2742 = vsel %vm400, %v2736, %v2741
    %v2743 = vrot.slane %v2440, 2
    %v2744 = vsel %vm400, %v2739, %v2743
    %v2749 = vsel %vm532, %v2730, 0
    %v2751 = vsel %vm532, %v2734, 0
    %v2753 = vsel %vm532, %v2740, 0
    %v2755 = vsel %vm532, %v2744, 0
    %2757 = vmatprep.subr.mxu0 0.0
    %2758 = vmatpush1.msra.mxu0 %v2492
    %2759 = vmatprep.subr.mxu0 0.0
    %2760 = vmatpush1.msra.mxu0 %v2491
    %2761 = vmatprep.subr.mxu0 0.0
    %2762 = vmatpush1.msra.mxu0 %v2490
    %2763 = vmatprep.subr.mxu0 0.0
    %2764 = vmatpush1.msra.mxu0 %v2489
    %2765 = vmatprep.subr.mxu0 0.0
    %2766 = vmatpush1.msra.mxu0 %v2488
    %2767 = vmatprep.subr.mxu0 0.0
    %2768 = vmatpush1.msra.mxu0 %v2487
    %2769 = vmatprep.subr.mxu0 0.0
    %2770 = vmatpush1.msra.mxu0 %v2486
    %2771 = vmatprep.subr.mxu0 0.0
    %2772 = vmatpush1.msra.mxu0 %v2485
    %2773 = vmatprep.subr.mxu0 0.0
    %2774 = vmatpush1.msra.mxu0 %v2484
    %2775 = vmatprep.subr.mxu0 0.0
    %2776 = vmatpush1.msra.mxu0 %v2483
    %2777 = vmatprep.subr.mxu0 0.0
    %2778 = vmatpush1.msra.mxu0 %v2482
    %2779 = vmatprep.subr.mxu0 0.0
    %2780 = vmatpush1.msra.mxu0 %v2481
    %2781 = vmatprep.subr.mxu0 0.0
    %2782 = vmatpush1.msra.mxu0 %v2480
    %2783 = vmatprep.subr.mxu0 0.0
    %2784 = vmatpush1.msra.mxu0 %v2479
    %2785 = vmatprep.subr.mxu0 0.0
    %2786 = vmatpush1.msra.mxu0 %v2478
    %2787 = vmatprep.subr.mxu0 0.0
    %2788 = vmatpush1.msra.mxu0 %v2477
    %2789 = vmatprep.subr.mxu0 0.0
    %2790 = vmatpush2.msra.mxu0 0.0
    %2791 = vmatprep.subr.mxu0 0.0
    %2792 = vmatpush2.msra.mxu0 0.0
    %2793 = vmatprep.subr.mxu0 0.0
    %2794 = vmatpush2.msra.mxu0 0.0
    %2795 = vmatprep.subr.mxu0 0.0
    %2796 = vmatpush2.msra.mxu0 0.0
    %2797 = vmatprep.subr.mxu0 0.0
    %2798 = vmatpush2.msra.mxu0 0.0
    %2799 = vmatprep.subr.mxu0 0.0
    %2800 = vmatpush2.msra.mxu0 0.0
    %2801 = vmatprep.subr.mxu0 0.0
    %2802 = vmatpush2.msra.mxu0 0.0
    %2803 = vmatprep.subr.mxu0 0.0
    %2804 = vmatpush2.msra.mxu0 0.0
    %2805 = vmatprep.subr.mxu0 0.0
    %2806 = vmatpush2.msra.mxu0 0.0
    %2807 = vmatprep.subr.mxu0 0.0
    %2808 = vmatpush2.msra.mxu0 0.0
    %2809 = vmatprep.subr.mxu0 0.0
    %2810 = vmatpush2.msra.mxu0 0.0
    %2811 = vmatprep.subr.mxu0 0.0
    %2812 = vmatpush2.msra.mxu0 0.0
    %2813 = vmatprep.subr.mxu0 0.0
    %2814 = vmatpush2.msra.mxu0 0.0
    %2815 = vmatprep.subr.mxu0 0.0
    %2816 = vmatpush2.msra.mxu0 0.0
    %2817 = vmatprep.subr.mxu0 0.0
    %2818 = vmatpush2.msra.mxu0 %v2494
    %2819 = vmatprep.subr.mxu0 0.0
    %2820 = vmatpush2.msra.mxu0 %v2493
    %2821 = vmatprep.mubr.f32.mxu0 %v2749
    %2822 = vmatmul.mubr.f32.gmra.mxu0 %v2727
    %v2823 = vpop.f32.mrf.mxu0
    %v2824 = vadd.f32 0.0, %v2823
    %v2825 = vpop.f32.mrf.mxu0
    %2826 = vmatprep.mubr.f32.mxu0 %v2751
    %2827 = vmatmul.mubr.f32.gmra.mxu0 %v2732
    %v2828 = vpop.f32.mrf.mxu0
    %v2829 = vadd.f32 0.0, %v2828
    %v2830 = vpop.f32.mrf.mxu0
    %2831 = vmatprep.mubr.f32.mxu0 %v2753
    %2832 = vmatmul.mubr.f32.gmra.mxu0 %v2737
    %v2833 = vpop.f32.mrf.mxu0
    %v2834 = vadd.f32 0.0, %v2833
    %v2835 = vpop.f32.mrf.mxu0
    %2836 = vmatprep.mubr.f32.mxu0 %v2755
    %2837 = vmatmul.mubr.f32.gmra.mxu0 %v2742
    %v2838 = vpop.f32.mrf.mxu0
    %v2839 = vadd.f32 0.0, %v2838
    %v2840 = vpop.f32.mrf.mxu0
    %2841 = vdwg.mxu0
    %v2842 = vadd.f32 %v2721, %v2824
    %v2843 = vadd.f32 %v2722, %v2829
    %v2844 = vadd.f32 %v2723, %v2834
    %v2845 = vadd.f32 %v2724, %v2839
    %v2846 = vld [vmem:[%s12] sm:$0x1]
    %v2848 = vlaneseq
    %v2849 = vshrl.u32 %v2848, 7
    %v2850 = vsub.s32 0, %v2849
    %v2851 = vrot.slane %v2846, %v2850
    %v2853 = vadd.f32 %v2842, %v2851
    %v2854 = vadd.f32 %v2843, %v2851
    %v2855 = vadd.f32 %v2844, %v2851
    %v2856 = vadd.f32 %v2845, %v2851
    %2857 = vst [vmem:[%s13] sm:$0xff] %v2853
    %2858 = vst [vmem:[%s13 + $0x8] sm:$0xff] %v2854
    %2859 = vst [vmem:[%s13 + $0x10] sm:$0xff] %v2855
    %2860 = vst [vmem:[%s13 + $0x18] sm:$0xff] %v2856
    // Predicated region
    $region82: #{forward.1} parent=1 // pred_check
      _
    $region83: #{forward.1} parent=1 // pred_check_branch
      %2862 = sbr.rel (0) target = $region85
    $region84: #{forward.1} parent=1 // pred_region
      _
    $region85: #{forward.1} parent=1 // pred_fallthru
      _
    // Predicated region
    $region86: #{forward.1} parent=1 // pred_check
      _
    $region87: #{forward.1} parent=1 // pred_check_branch
      %2864 = sbr.rel (0) target = $region89
    $region88: #{forward.1} parent=1 // pred_region
      _
    $region89: #{forward.1} parent=1 // pred_fallthru
      _
    %2865 = vsyncpa [#allocation6], 1
    %2866 = vsyncpa [#allocation8], 1
    %2867 = vsyncpa [#allocation11], 1
    %2868 = vsyncpa [#allocation14], 1

</llo_original>
